<compile_context>
chip_gen: v7x
topology: tpu7x:2x2x1
jax: 0.10.0
libtpu: 0.0.40
codegen_flags: <defaults>
</compile_context>

<pallas_src>
import functools

import jax
import jax.numpy as jnp
import numpy as np
from jax import lax
from jax.experimental import pallas as pl
from jax.experimental.pallas import tpu as pltpu


_PAD_L = 8   # left zero-pad columns in the padded VMEM scratch (aligned interior stores)
_PAD_R = 8   # right zero-pad columns


def _round_up(x, m):
    return (x + m - 1) // m * m


# ----------------------------- in-kernel helpers -----------------------------

def _conv3x3(pad_ref, w_ref, b_ref, out_rows, W, fuse_taps, row_chunk):
    """3x3 'same' conv of a 128-lane tensor held in a zero-column-padded scratch.

    pad_ref : (out_rows + 2, W + _PAD_L + _PAD_R, 128) scratch (matmul dtype),
              row i holds input row (first_out_row - 1 + i), interior at cols
              [_PAD_L, _PAD_L + W); columns _PAD_L-1 and _PAD_L+W are zero.
    w_ref   : (9*128, 128) weights; row block t = dy*3+dx.
    b_ref   : (1, 128) float32 bias.
    returns : (out_rows, W, 128) float32, ReLU applied.
    """
    outs = []
    r = 0
    while r < out_rows:
        mc = min(row_chunk, out_rows - r)
        if fuse_taps:
            # One K = 9*128 = 1152 matmul per row chunk (v6e/v7x 256-deep MXU).
            pieces = [pad_ref[r + dy:r + dy + mc,
                              _PAD_L - 1 + dx:_PAD_L - 1 + dx + W, :]
                      for dy in range(3) for dx in range(3)]
            slab = jnp.concatenate(pieces, axis=-1).reshape(mc * W, 9 * 128)
            acc = jnp.dot(slab, w_ref[...], preferred_element_type=jnp.float32)
        else:
            # Nine native K=128 matmuls, no im2col slab (v5e: 128-deep MXU,
            # single vector-store slot -> avoid the slab copies).
            acc = None
            t = 0
            for dy in range(3):
                for dx in range(3):
                    piece = pad_ref[r + dy:r + dy + mc,
                                    _PAD_L - 1 + dx:_PAD_L - 1 + dx + W, :]
                    part = jnp.dot(piece.reshape(mc * W, 128),
                                   w_ref[t * 128:(t + 1) * 128, :],
                                   preferred_element_type=jnp.float32)
                    acc = part if acc is None else acc + part
                    t += 1
        outs.append(jnp.maximum(acc + b_ref[...], 0.0).reshape(mc, W, 128))
        r += mc
    return outs[0] if len(outs) == 1 else jnp.concatenate(outs, axis=0)


# ---------------------------------- kernel -----------------------------------

def _motion_encoder_kernel(x0_ref, disp_ref, w1_ref, b1_ref, w2_ref, b2_ref,
                           w3_ref, b3_ref, out_ref, pad1_ref, pad2_ref,
                           *, S, W, C0P, n_strips, fuse_taps, row_chunk):
    s = pl.program_id(1)
    col_l = _PAD_L - 1
    col_r = _PAD_L + W

    # Zero only the two padding columns the 3x3 taps actually read (x = -1, W).
    pad1_ref[:, col_l:col_l + 1, :] = jnp.zeros((S + 4, 1, 128), pad1_ref.dtype)
    pad1_ref[:, col_r:col_r + 1, :] = jnp.zeros((S + 4, 1, 128), pad1_ref.dtype)
    pad2_ref[:, col_l:col_l + 1, :] = jnp.zeros((S + 2, 1, 128), pad2_ref.dtype)
    pad2_ref[:, col_r:col_r + 1, :] = jnp.zeros((S + 2, 1, 128), pad2_ref.dtype)

    # ---- stage 1: convc1 (1x1) + convd1 (7x7, pre-im2col'd) in ONE matmul ----
    x0 = x0_ref[0].reshape((S + 4) * W, C0P)
    h1 = jnp.dot(x0, w1_ref[...], preferred_element_type=jnp.float32)
    h1 = jnp.maximum(h1 + b1_ref[...], 0.0).reshape(S + 4, W, 128)
    pad1_ref[:, _PAD_L:_PAD_L + W, :] = h1.astype(pad1_ref.dtype)

    # Out-of-image halo rows must be exactly zero (they are the zero padding of
    # the next 3x3 conv), not relu(bias).  Only boundary strips pay for it.
    @pl.when(s == 0)
    def _():
        pad1_ref[0:2, _PAD_L:_PAD_L + W, :] = jnp.zeros((2, W, 128), pad1_ref.dtype)

    @pl.when(s == n_strips - 1)
    def _():
        pad1_ref[S + 2:S + 4, _PAD_L:_PAD_L + W, :] = jnp.zeros((2, W, 128),
                                                                pad1_ref.dtype)

    # ---- stage 2: convc2 + convd2 as one grouped (block-diagonal) 3x3 conv ---
    h2 = _conv3x3(pad1_ref, w2_ref, b2_ref, S + 2, W, fuse_taps, row_chunk)
    pad2_ref[:, _PAD_L:_PAD_L + W, :] = h2.astype(pad2_ref.dtype)

    @pl.when(s == 0)
    def _():
        pad2_ref[0:1, _PAD_L:_PAD_L + W, :] = jnp.zeros((1, W, 128), pad2_ref.dtype)

    @pl.when(s == n_strips - 1)
    def _():
        pad2_ref[S + 1:S + 2, _PAD_L:_PAD_L + W, :] = jnp.zeros((1, W, 128),
                                                                pad2_ref.dtype)

    # ---- stage 3: final 3x3 conv (127 outputs padded to 128 lanes) -----------
    h3 = _conv3x3(pad2_ref, w3_ref, b3_ref, S, W, fuse_taps, row_chunk)

    # lane 127 <- raw disparity in exact float32 (torch.cat([out, disp], dim=1)).
    disp = disp_ref[0].reshape(S, W, 1)
    lane = lax.broadcasted_iota(jnp.int32, (S, W, 128), 2)
    out_ref[0] = jnp.where(lane == 127, disp, h3).astype(out_ref.dtype)


# ------------------------------ wrapper helpers -------------------------------

def _prepare_input(disp_nchw, corr_nchw, S, c0p, matmul_dtype):
    """Pack [corr | 7x7 im2col of disp] as NHWC, zero-lane-pad to c0p channels,
    and duplicate each strip's 2-row halo so the kernel input is a plain
    auto-pipelined BlockSpec block (Pallas double-buffers the HBM->VMEM DMA).
    Pure layout plumbing — all conv arithmetic stays inside the kernel."""
    B, _, H, W = disp_nchw.shape
    disp = jnp.transpose(disp_nchw, (0, 2, 3, 1))                 # (B, H, W, 1)
    corr = jnp.transpose(corr_nchw, (0, 2, 3, 1))                 # (B, H, W, Cc)
    dpad = jnp.pad(disp, ((0, 0), (3, 3), (3, 3), (0, 0)))
    d49 = jnp.concatenate(
        [dpad[:, dy:dy + H, dx:dx + W, :] for dy in range(7) for dx in range(7)],
        axis=-1)                                                  # (B, H, W, 49)
    x0 = jnp.concatenate([corr, d49], axis=-1)                    # (B, H, W, c0)
    c0 = x0.shape[-1]
    x0 = jnp.pad(x0, ((0, 0), (2, 2), (0, 0), (0, c0p - c0)))     # row halo + lanes
    n_strips = H // S
    strips = [x0[:, s * S:s * S + S + 4] for s in range(n_strips)]
    xs = jnp.stack(strips, axis=1).reshape(B * n_strips, S + 4, W, c0p)
    return xs.astype(matmul_dtype)


def _prepare_params(params, cor_planes, c0p, matmul_dtype):
    """Fuse / pad the 5 conv weights into 3 matmul weights (see kernel)."""
    wc1, bc1, wc2, bc2, wd1, bd1, wd2, bd2, wcv, bcv = params
    f32 = jnp.float32
    c0 = cor_planes + 49

    # stage 1: block-diagonal (c0p, 128).
    w1 = jnp.zeros((c0p, 128), f32)
    w1 = w1.at[:cor_planes, :64].set(wc1[0, 0].astype(f32))
    w1 = w1.at[cor_planes:c0, 64:].set(wd1.reshape(49, 64).astype(f32))
    b1 = jnp.concatenate([bc1, bd1], axis=-1).astype(f32)            # (1, 128)

    # stage 2: per-tap block-diagonal (corr | disp) weights, taps stacked on K.
    def blkdiag(a, d):
        top = jnp.concatenate([a, jnp.zeros_like(a)], axis=1)
        bot = jnp.concatenate([jnp.zeros_like(d), d], axis=1)
        return jnp.concatenate([top, bot], axis=0)                   # (128, 128)

    w2 = jnp.concatenate(
        [blkdiag(wc2[dy, dx].astype(f32), wd2[dy, dx].astype(f32))
         for dy in range(3) for dx in range(3)], axis=0)             # (1152, 128)
    b2 = jnp.concatenate([bc2, bd2], axis=-1).astype(f32)

    # stage 3: 128 -> 127 conv padded with a zero output column to 128 lanes.
    w3 = jnp.concatenate(
        [jnp.pad(wcv[dy, dx].astype(f32), ((0, 0), (0, 1)))
         for dy in range(3) for dx in range(3)], axis=0)             # (1152, 128)
    b3 = jnp.pad(bcv, ((0, 0), (0, 1))).astype(f32)                  # (1, 128)

    return (w1.astype(matmul_dtype), b1, w2.astype(matmul_dtype), b2,
            w3.astype(matmul_dtype), b3)


def _auto_fuse_taps():
    """v6e/v7x (256-deep MXU) -> fuse taps into K=1152; v5 and older -> K=128."""
    try:
        kind = jax.devices()[0].device_kind.lower()
    except Exception:
        return True
    for g in ("v2", "v3", "v4", "v5"):
        if g in kind:
            return False
    return True


def _vmem_capacity_bytes():
    try:
        return int(pltpu.get_tpu_info().vmem_capacity_bytes)
    except Exception:
        return 64 * 2 ** 20    # conservative (v7x) fallback


def _pick_row_chunk(S, W, itemsize, fuse_taps, slab_budget=3 * 2 ** 20):
    if not fuse_taps:
        return S + 2
    per_row = max(1, W * 9 * 128 * itemsize)
    return int(max(4, min(S + 2, slab_budget // per_row)))


def _estimate_vmem_bytes(S, W, c0p, itemsize, row_chunk, fuse_taps):
    """Include 128-lane padding and x2 pipeline buffers (review feedback)."""
    w8 = _round_up(W, 8)
    w128 = _round_up(W, 128)
    wpad8 = _round_up(W + _PAD_L + _PAD_R, 8)
    x0_blk = 2 * (S + 4) * w8 * c0p * itemsize                 # input block x2
    disp_blk = 2 * _round_up(S, 8) * w128 * 4                  # f32 disp block x2
    out_blk = 2 * S * w8 * 128 * 4                             # output block x2
    weights = 2 * ((c0p + 2 * 9 * 128) * 128 * itemsize + 3 * 128 * 4)
    pads = ((S + 4) + (S + 2)) * wpad8 * 128 * itemsize        # scratch pads
    acts = (2 * (S + 4) + 2 * (S + 2) + S) * w8 * 128 * 4      # f32 h1/h2/h3 temps
    slab = (row_chunk * w8 * 9 * 128 * itemsize) if fuse_taps else 0
    return x0_blk + disp_blk + out_blk + weights + pads + acts + slab


def _strip_candidates(H):
    return [s for s in range(H, 0, -1) if H % s == 0 and (s % 8 == 0 or s == H)]


def _choose_config(H, W, c0p, itemsize, fuse_taps, budget):
    chosen = None
    for s in _strip_candidates(H):
        rc = _pick_row_chunk(s, W, itemsize, fuse_taps)
        if _estimate_vmem_bytes(s, W, c0p, itemsize, rc, fuse_taps) <= budget:
            return s, rc
        chosen = (s, rc)
    return chosen


# --------------------------------- wrapper ------------------------------------

def basic_motion_encoder(disp_nchw, corr_nchw, params, *, strip_rows=None,
                         matmul_dtype=jnp.bfloat16, fuse_taps=None):
    """BasicMotionEncoder forward.
    disp_nchw: (B, 1, H, W), corr_nchw: (B, cor_planes, H, W) -> (B, 128, H, W).
    """
    B, _, H, W = disp_nchw.shape
    cor_planes = corr_nchw.shape[1]
    c0p = _round_up(cor_planes + 49, 128)
    itemsize = jnp.dtype(matmul_dtype).itemsize

    if fuse_taps is None:
        fuse_taps = _auto_fuse_taps()

    vmem_cap = _vmem_capacity_bytes()
    budget = int(0.6 * vmem_cap)

    if strip_rows is None:
        S, row_chunk = _choose_config(H, W, c0p, itemsize, fuse_taps, budget)
    else:
        S = int(strip_rows)
        row_chunk = _pick_row_chunk(S, W, itemsize, fuse_taps)
    assert H % S == 0, "strip_rows must divide the image height"
    assert S % 8 == 0 or S == H, "strip_rows must be a multiple of 8 (or H)"
    n_strips = H // S

    x0 = _prepare_input(disp_nchw, corr_nchw, S, c0p, matmul_dtype)
    disp_img = jnp.transpose(disp_nchw, (0, 2, 3, 1))[..., 0].astype(jnp.float32)
    w1, b1, w2, b2, w3, b3 = _prepare_params(params, cor_planes, c0p, matmul_dtype)

    # Always set the scoped-VMEM limit (v5e default is only 16 MiB) and cap it
    # below physical VMEM (v7x has 64 MiB).
    est = _estimate_vmem_bytes(S, W, c0p, itemsize, row_chunk, fuse_taps)
    vmem_limit = int(1.4 * est) + (4 << 20)
    vmem_limit = max(vmem_limit, 32 << 20)
    vmem_limit = min(vmem_limit, vmem_cap - (8 << 20))

    kernel = functools.partial(_motion_encoder_kernel, S=S, W=W, C0P=c0p,
                               n_strips=n_strips, fuse_taps=fuse_taps,
                               row_chunk=row_chunk)

    wpad = W + _PAD_L + _PAD_R
    out_nhwc = pl.pallas_call(
        kernel,
        out_shape=jax.ShapeDtypeStruct((B, H, W, 128), jnp.float32),
        grid=(B, n_strips),
        in_specs=[
            # per-strip input slab (halo rows pre-duplicated / zeroed in HBM)
            pl.BlockSpec((1, S + 4, W, c0p), lambda b, s: (b * n_strips + s, 0, 0, 0)),
            # exact f32 raw-disparity passthrough
            pl.BlockSpec((1, S, W), lambda b, s: (b, s, 0)),
            pl.BlockSpec((c0p, 128), lambda b, s: (0, 0)),          # w1
            pl.BlockSpec((1, 128), lambda b, s: (0, 0)),            # b1
            pl.BlockSpec((9 * 128, 128), lambda b, s: (0, 0)),      # w2
            pl.BlockSpec((1, 128), lambda b, s: (0, 0)),            # b2
            pl.BlockSpec((9 * 128, 128), lambda b, s: (0, 0)),      # w3
            pl.BlockSpec((1, 128), lambda b, s: (0, 0)),            # b3
        ],
        out_specs=pl.BlockSpec((1, S, W, 128), lambda b, s: (b, s, 0, 0)),
        scratch_shapes=[
            pltpu.VMEM((S + 4, wpad, 128), matmul_dtype),           # padded stage-1
            pltpu.VMEM((S + 2, wpad, 128), matmul_dtype),           # padded stage-2
        ],
        compiler_params=pltpu.CompilerParams(
            dimension_semantics=("parallel", "parallel"),
            vmem_limit_bytes=int(vmem_limit)),
    )(x0, disp_img, w1, b1, w2, b2, w3, b3)

    # NHWC -> NCHW to match the PyTorch module's output convention.
    return jnp.transpose(out_nhwc, (0, 3, 1, 2))


# ----------------------------- pure-JAX reference -----------------------------

def _ref_conv(x, w, b, pad):
    y = lax.conv_general_dilated(x, w, (1, 1), [(pad, pad), (pad, pad)],
                                 dimension_numbers=('NCHW', 'HWIO', 'NCHW'))
    return y + b.reshape(1, -1, 1, 1)


def ref_forward(disp, corr, params):
    wc1, bc1, wc2, bc2, wd1, bd1, wd2, bd2, wcv, bcv = params
    cor = jax.nn.relu(_ref_conv(corr, wc1, bc1, 0))
    cor = jax.nn.relu(_ref_conv(cor, wc2, bc2, 1))
    dsp = jax.nn.relu(_ref_conv(disp, wd1, bd1, 3))
    dsp = jax.nn.relu(_ref_conv(dsp, wd2, bd2, 1))
    cd = jnp.concatenate([cor, dsp], axis=1)
    out = jax.nn.relu(_ref_conv(cd, wcv, bcv, 1))
    return jnp.concatenate([out, disp], axis=1)


# ------------------------------------ main -------------------------------------

if __name__ == "__main__":
    # args.corr_levels = 1, args.corr_radius = 1
    corr_levels, corr_radius = 1, 1
    cor_planes = corr_levels * (2 * corr_radius + 1) * (8 + 1)   # 27

    B, H, W = 2, 16, 16
    key = jax.random.PRNGKey(0)
    keys = jax.random.split(key, 12)

    disp = jax.random.normal(keys[0], (B, 1, H, W), jnp.float32)
    corr = jax.random.normal(keys[1], (B, cor_planes, H, W), jnp.float32)

    def init_conv(kw, kb, k, cin, cout):
        scale = 1.0 / np.sqrt(k * k * cin)
        w = jax.random.normal(kw, (k, k, cin, cout), jnp.float32) * scale
        b = jax.random.normal(kb, (1, cout), jnp.float32) * scale
        return w, b

    wc1, bc1 = init_conv(keys[2], keys[3], 1, cor_planes, 64)   # convc1
    wc2, bc2 = init_conv(keys[4], keys[5], 3, 64, 64)           # convc2
    wd1, bd1 = init_conv(keys[6], keys[7], 7, 1, 64)            # convd1
    wd2, bd2 = init_conv(keys[8], keys[9], 3, 64, 64)           # convd2
    wcv, bcv = init_conv(keys[10], keys[11], 3, 128, 127)       # conv

    params = [wc1, bc1, wc2, bc2, wd1, bd1, wd2, bd2, wcv, bcv]

    ref = jax.block_until_ready(ref_forward(disp, corr, params))

    # f32 matmuls, 2 row strips per image (exercises halo + boundary masking),
    # both conv tap-fusion modes (fused K=1152 vs nine native K=128 matmuls).
    for fuse in (True, False):
        out = basic_motion_encoder(disp, corr, params, strip_rows=8,
                                   matmul_dtype=jnp.float32, fuse_taps=fuse)
        out = jax.block_until_ready(out)
        assert out.shape == (B, 128, H, W), out.shape
        np.testing.assert_allclose(np.asarray(out), np.asarray(ref),
                                   rtol=2e-3, atol=2e-3)

    # Default path: bf16 matmuls + bf16 scratch (f32 accumulation), auto strip
    # size / tap fusion, exact f32 raw-disparity passthrough on lane 127.
    out_bf16 = jax.block_until_ready(basic_motion_encoder(disp, corr, params))
    np.testing.assert_allclose(np.asarray(out_bf16), np.asarray(ref),
                               rtol=6e-2, atol=6e-2)

    print("KERNEL_OK")
</pallas_src>

<mosaic_0001>
module attributes {stable_mosaic.version = 11 : i64} {
  func.func @_motion_encoder_kernel(%arg0: i32, %arg1: i32, %arg2: memref<1x12x16x128xf32, #tpu.memory_space<vmem>>, %arg3: memref<1x8x16xf32, #tpu.memory_space<vmem>>, %arg4: memref<128x128xf32, #tpu.memory_space<vmem>>, %arg5: memref<1x128xf32, #tpu.memory_space<vmem>>, %arg6: memref<1152x128xf32, #tpu.memory_space<vmem>>, %arg7: memref<1x128xf32, #tpu.memory_space<vmem>>, %arg8: memref<1152x128xf32, #tpu.memory_space<vmem>>, %arg9: memref<1x128xf32, #tpu.memory_space<vmem>>, %arg10: memref<1x8x16x128xf32, #tpu.memory_space<vmem>>, %arg11: memref<12x32x128xf32, #tpu.memory_space<vmem>>, %arg12: memref<10x32x128xf32, #tpu.memory_space<vmem>>) attributes {dimension_semantics = [#tpu.dimension_semantics<parallel>, #tpu.dimension_semantics<parallel>], iteration_bounds = array<i64: 2, 2>, scalar_prefetch = 0 : i64, scratch_operands = 2 : i64, tpu.core_type = #tpu.core_type<tc>, window_params = [{transform_indices = @transform_0, window_bounds = array<i64: 1, 12, 16, 128>}, {transform_indices = @transform_1, window_bounds = array<i64: 1, 8, 16>}, {pipeline_mode = #tpu.pipeline_mode<synchronous>, transform_indices = @transform_2, window_bounds = array<i64: 128, 128>}, {pipeline_mode = #tpu.pipeline_mode<synchronous>, transform_indices = @transform_3, window_bounds = array<i64: 1, 128>}, {pipeline_mode = #tpu.pipeline_mode<synchronous>, transform_indices = @transform_4, window_bounds = array<i64: 1152, 128>}, {pipeline_mode = #tpu.pipeline_mode<synchronous>, transform_indices = @transform_5, window_bounds = array<i64: 1, 128>}, {pipeline_mode = #tpu.pipeline_mode<synchronous>, transform_indices = @transform_6, window_bounds = array<i64: 1152, 128>}, {pipeline_mode = #tpu.pipeline_mode<synchronous>, transform_indices = @transform_7, window_bounds = array<i64: 1, 128>}, {transform_indices = @transform_8, window_bounds = array<i64: 1, 8, 16, 128>}]} {
    %cst = arith.constant 0.000000e+00 : f32
    %0 = vector.broadcast %cst : f32 to vector<12x1x128xf32>
    %c0 = arith.constant 0 : index
    %c7 = arith.constant 7 : index
    %c0_0 = arith.constant 0 : index
    %1 = vector.load %arg11[%c0, %c7, %c0_0] : memref<12x32x128xf32, #tpu.memory_space<vmem>>, vector<12x1x128xf32>
    tpu.vector_store %arg11[%c0, %c7, %c0_0], %0 {strides = array<i32>} : memref<12x32x128xf32, #tpu.memory_space<vmem>>, vector<12x1x128xf32>,
    %cst_1 = arith.constant 0.000000e+00 : f32
    %2 = vector.broadcast %cst_1 : f32 to vector<12x1x128xf32>
    %c0_2 = arith.constant 0 : index
    %c24 = arith.constant 24 : index
    %c0_3 = arith.constant 0 : index
    %3 = vector.load %arg11[%c0_2, %c24, %c0_3] : memref<12x32x128xf32, #tpu.memory_space<vmem>>, vector<12x1x128xf32>
    tpu.vector_store %arg11[%c0_2, %c24, %c0_3], %2 {strides = array<i32>} : memref<12x32x128xf32, #tpu.memory_space<vmem>>, vector<12x1x128xf32>,
    %cst_4 = arith.constant 0.000000e+00 : f32
    %4 = vector.broadcast %cst_4 : f32 to vector<10x1x128xf32>
    %c0_5 = arith.constant 0 : index
    %c7_6 = arith.constant 7 : index
    %c0_7 = arith.constant 0 : index
    %5 = vector.load %arg12[%c0_5, %c7_6, %c0_7] : memref<10x32x128xf32, #tpu.memory_space<vmem>>, vector<10x1x128xf32>
    tpu.vector_store %arg12[%c0_5, %c7_6, %c0_7], %4 {strides = array<i32>} : memref<10x32x128xf32, #tpu.memory_space<vmem>>, vector<10x1x128xf32>,
    %cst_8 = arith.constant 0.000000e+00 : f32
    %6 = vector.broadcast %cst_8 : f32 to vector<10x1x128xf32>
    %c0_9 = arith.constant 0 : index
    %c24_10 = arith.constant 24 : index
    %c0_11 = arith.constant 0 : index
    %7 = vector.load %arg12[%c0_9, %c24_10, %c0_11] : memref<10x32x128xf32, #tpu.memory_space<vmem>>, vector<10x1x128xf32>
    tpu.vector_store %arg12[%c0_9, %c24_10, %c0_11], %6 {strides = array<i32>} : memref<10x32x128xf32, #tpu.memory_space<vmem>>, vector<10x1x128xf32>,
    %c0_12 = arith.constant 0 : index
    %c0_13 = arith.constant 0 : index
    %c0_14 = arith.constant 0 : index
    %c0_15 = arith.constant 0 : index
    %8 = vector.load %arg2[%c0_12, %c0_13, %c0_14, %c0_15] : memref<1x12x16x128xf32, #tpu.memory_space<vmem>>, vector<1x12x16x128xf32>
    %9 = vector.shape_cast %8 : vector<1x12x16x128xf32> to vector<12x16x128xf32>
    %10 = vector.shape_cast %9 : vector<12x16x128xf32> to vector<192x128xf32>
    %c0_16 = arith.constant 0 : index
    %c0_17 = arith.constant 0 : index
    %11 = vector.load %arg4[%c0_16, %c0_17] : memref<128x128xf32, #tpu.memory_space<vmem>>, vector<128x128xf32>
    %cst_18 = arith.constant dense<0.000000e+00> : vector<192x128xf32>
    %12 = tpu.matmul %10, %11, %cst_18 {dimension_numbers = #tpu.dot_dimension_numbers<[1], [0], [0], [1], [0, 0, 1, 1], [], []>} : vector<192x128xf32>, vector<128x128xf32>, vector<192x128xf32> -> vector<192x128xf32>
    %c0_19 = arith.constant 0 : index
    %c0_20 = arith.constant 0 : index
    %13 = vector.load %arg5[%c0_19, %c0_20] : memref<1x128xf32, #tpu.memory_space<vmem>>, vector<1x128xf32>
    %14 = vector.broadcast %13 : vector<1x128xf32> to vector<192x128xf32>
    %15 = arith.addf %12, %14 : vector<192x128xf32>
    %cst_21 = arith.constant 0.000000e+00 : f32
    %16 = vector.broadcast %cst_21 : f32 to vector<192x128xf32>
    %17 = arith.maximumf %15, %16 : vector<192x128xf32>
    %18 = vector.shape_cast %17 : vector<192x128xf32> to vector<12x16x128xf32>
    %c0_22 = arith.constant 0 : index
    %c8 = arith.constant 8 : index
    %c0_23 = arith.constant 0 : index
    %19 = vector.load %arg11[%c0_22, %c8, %c0_23] : memref<12x32x128xf32, #tpu.memory_space<vmem>>, vector<12x16x128xf32>
    tpu.vector_store %arg11[%c0_22, %c8, %c0_23], %18 {strides = array<i32>} : memref<12x32x128xf32, #tpu.memory_space<vmem>>, vector<12x16x128xf32>,
    %c0_i32 = arith.constant 0 : i32
    %20 = arith.cmpi eq, %arg1, %c0_i32 : i32
    %21 = arith.extui %20 : i1 to i32
    %c0_i32_24 = arith.constant 0 : i32
    %22 = arith.cmpi ne, %21, %c0_i32_24 : i32
    scf.if %22 {
      %cst_103 = arith.constant 0.000000e+00 : f32
      %83 = vector.broadcast %cst_103 : f32 to vector<2x16x128xf32>
      %c0_104 = arith.constant 0 : index
      %c8_105 = arith.constant 8 : index
      %c0_106 = arith.constant 0 : index
      %84 = vector.load %arg11[%c0_104, %c8_105, %c0_106] : memref<12x32x128xf32, #tpu.memory_space<vmem>>, vector<2x16x128xf32>
      tpu.vector_store %arg11[%c0_104, %c8_105, %c0_106], %83 {strides = array<i32>} : memref<12x32x128xf32, #tpu.memory_space<vmem>>, vector<2x16x128xf32>,
    } else {
    }
    %c1_i32 = arith.constant 1 : i32
    %23 = arith.cmpi eq, %arg1, %c1_i32 : i32
    %24 = arith.extui %23 : i1 to i32
    %c0_i32_25 = arith.constant 0 : i32
    %25 = arith.cmpi ne, %24, %c0_i32_25 : i32
    scf.if %25 {
      %cst_103 = arith.constant 0.000000e+00 : f32
      %83 = vector.broadcast %cst_103 : f32 to vector<2x16x128xf32>
      %c10 = arith.constant 10 : index
      %c8_104 = arith.constant 8 : index
      %c0_105 = arith.constant 0 : index
      %84 = vector.load %arg11[%c10, %c8_104, %c0_105] : memref<12x32x128xf32, #tpu.memory_space<vmem>>, vector<2x16x128xf32>
      tpu.vector_store %arg11[%c10, %c8_104, %c0_105], %83 {strides = array<i32>} : memref<12x32x128xf32, #tpu.memory_space<vmem>>, vector<2x16x128xf32>,
    } else {
    }
    %c0_26 = arith.constant 0 : index
    %c7_27 = arith.constant 7 : index
    %c0_28 = arith.constant 0 : index
    %26 = vector.load %arg11[%c0_26, %c7_27, %c0_28] : memref<12x32x128xf32, #tpu.memory_space<vmem>>, vector<10x16x128xf32>
    %c0_29 = arith.constant 0 : index
    %c8_30 = arith.constant 8 : index
    %c0_31 = arith.constant 0 : index
    %27 = vector.load %arg11[%c0_29, %c8_30, %c0_31] : memref<12x32x128xf32, #tpu.memory_space<vmem>>, vector<10x16x128xf32>
    %c0_32 = arith.constant 0 : index
    %c9 = arith.constant 9 : index
    %c0_33 = arith.constant 0 : index
    %28 = vector.load %arg11[%c0_32, %c9, %c0_33] : memref<12x32x128xf32, #tpu.memory_space<vmem>>, vector<10x16x128xf32>
    %c1 = arith.constant 1 : index
    %c7_34 = arith.constant 7 : index
    %c0_35 = arith.constant 0 : index
    %29 = vector.load %arg11[%c1, %c7_34, %c0_35] : memref<12x32x128xf32, #tpu.memory_space<vmem>>, vector<10x16x128xf32>
    %c1_36 = arith.constant 1 : index
    %c8_37 = arith.constant 8 : index
    %c0_38 = arith.constant 0 : index
    %30 = vector.load %arg11[%c1_36, %c8_37, %c0_38] : memref<12x32x128xf32, #tpu.memory_space<vmem>>, vector<10x16x128xf32>
    %c1_39 = arith.constant 1 : index
    %c9_40 = arith.constant 9 : index
    %c0_41 = arith.constant 0 : index
    %31 = vector.load %arg11[%c1_39, %c9_40, %c0_41] : memref<12x32x128xf32, #tpu.memory_space<vmem>>, vector<10x16x128xf32>
    %c2 = arith.constant 2 : index
    %c7_42 = arith.constant 7 : index
    %c0_43 = arith.constant 0 : index
    %32 = vector.load %arg11[%c2, %c7_42, %c0_43] : memref<12x32x128xf32, #tpu.memory_space<vmem>>, vector<10x16x128xf32>
    %c2_44 = arith.constant 2 : index
    %c8_45 = arith.constant 8 : index
    %c0_46 = arith.constant 0 : index
    %33 = vector.load %arg11[%c2_44, %c8_45, %c0_46] : memref<12x32x128xf32, #tpu.memory_space<vmem>>, vector<10x16x128xf32>
    %c2_47 = arith.constant 2 : index
    %c9_48 = arith.constant 9 : index
    %c0_49 = arith.constant 0 : index
    %34 = vector.load %arg11[%c2_47, %c9_48, %c0_49] : memref<12x32x128xf32, #tpu.memory_space<vmem>>, vector<10x16x128xf32>
    %35 = tpu.concatenate %26, %27, %28, %29, %30, %31, %32, %33, %34 in 2 : vector<10x16x128xf32>, vector<10x16x128xf32>, vector<10x16x128xf32>, vector<10x16x128xf32>, vector<10x16x128xf32>, vector<10x16x128xf32>, vector<10x16x128xf32>, vector<10x16x128xf32>, vector<10x16x128xf32> -> vector<10x16x1152xf32>
    %36 = vector.shape_cast %35 : vector<10x16x1152xf32> to vector<160x1152xf32>
    %c0_50 = arith.constant 0 : index
    %c0_51 = arith.constant 0 : index
    %37 = vector.load %arg6[%c0_50, %c0_51] : memref<1152x128xf32, #tpu.memory_space<vmem>>, vector<1152x128xf32>
    %cst_52 = arith.constant dense<0.000000e+00> : vector<160x128xf32>
    %38 = tpu.matmul %36, %37, %cst_52 {dimension_numbers = #tpu.dot_dimension_numbers<[1], [0], [0], [1], [0, 0, 1, 1], [], []>} : vector<160x1152xf32>, vector<1152x128xf32>, vector<160x128xf32> -> vector<160x128xf32>
    %c0_53 = arith.constant 0 : index
    %c0_54 = arith.constant 0 : index
    %39 = vector.load %arg7[%c0_53, %c0_54] : memref<1x128xf32, #tpu.memory_space<vmem>>, vector<1x128xf32>
    %40 = vector.broadcast %39 : vector<1x128xf32> to vector<160x128xf32>
    %41 = arith.addf %38, %40 : vector<160x128xf32>
    %cst_55 = arith.constant 0.000000e+00 : f32
    %42 = vector.broadcast %cst_55 : f32 to vector<160x128xf32>
    %43 = arith.maximumf %41, %42 : vector<160x128xf32>
    %44 = vector.shape_cast %43 : vector<160x128xf32> to vector<10x16x128xf32>
    %c0_56 = arith.constant 0 : index
    %c8_57 = arith.constant 8 : index
    %c0_58 = arith.constant 0 : index
    %45 = vector.load %arg12[%c0_56, %c8_57, %c0_58] : memref<10x32x128xf32, #tpu.memory_space<vmem>>, vector<10x16x128xf32>
    tpu.vector_store %arg12[%c0_56, %c8_57, %c0_58], %44 {strides = array<i32>} : memref<10x32x128xf32, #tpu.memory_space<vmem>>, vector<10x16x128xf32>,
    %c0_i32_59 = arith.constant 0 : i32
    %46 = arith.cmpi eq, %arg1, %c0_i32_59 : i32
    %47 = arith.extui %46 : i1 to i32
    %c0_i32_60 = arith.constant 0 : i32
    %48 = arith.cmpi ne, %47, %c0_i32_60 : i32
    scf.if %48 {
      %cst_103 = arith.constant 0.000000e+00 : f32
      %83 = vector.broadcast %cst_103 : f32 to vector<1x16x128xf32>
      %c0_104 = arith.constant 0 : index
      %c8_105 = arith.constant 8 : index
      %c0_106 = arith.constant 0 : index
      %84 = vector.load %arg12[%c0_104, %c8_105, %c0_106] : memref<10x32x128xf32, #tpu.memory_space<vmem>>, vector<1x16x128xf32>
      tpu.vector_store %arg12[%c0_104, %c8_105, %c0_106], %83 {strides = array<i32>} : memref<10x32x128xf32, #tpu.memory_space<vmem>>, vector<1x16x128xf32>,
    } else {
    }
    %c1_i32_61 = arith.constant 1 : i32
    %49 = arith.cmpi eq, %arg1, %c1_i32_61 : i32
    %50 = arith.extui %49 : i1 to i32
    %c0_i32_62 = arith.constant 0 : i32
    %51 = arith.cmpi ne, %50, %c0_i32_62 : i32
    scf.if %51 {
      %cst_103 = arith.constant 0.000000e+00 : f32
      %83 = vector.broadcast %cst_103 : f32 to vector<1x16x128xf32>
      %c9_104 = arith.constant 9 : index
      %c8_105 = arith.constant 8 : index
      %c0_106 = arith.constant 0 : index
      %84 = vector.load %arg12[%c9_104, %c8_105, %c0_106] : memref<10x32x128xf32, #tpu.memory_space<vmem>>, vector<1x16x128xf32>
      tpu.vector_store %arg12[%c9_104, %c8_105, %c0_106], %83 {strides = array<i32>} : memref<10x32x128xf32, #tpu.memory_space<vmem>>, vector<1x16x128xf32>,
    } else {
    }
    %c0_63 = arith.constant 0 : index
    %c7_64 = arith.constant 7 : index
    %c0_65 = arith.constant 0 : index
    %52 = vector.load %arg12[%c0_63, %c7_64, %c0_65] : memref<10x32x128xf32, #tpu.memory_space<vmem>>, vector<8x16x128xf32>
    %c0_66 = arith.constant 0 : index
    %c8_67 = arith.constant 8 : index
    %c0_68 = arith.constant 0 : index
    %53 = vector.load %arg12[%c0_66, %c8_67, %c0_68] : memref<10x32x128xf32, #tpu.memory_space<vmem>>, vector<8x16x128xf32>
    %c0_69 = arith.constant 0 : index
    %c9_70 = arith.constant 9 : index
    %c0_71 = arith.constant 0 : index
    %54 = vector.load %arg12[%c0_69, %c9_70, %c0_71] : memref<10x32x128xf32, #tpu.memory_space<vmem>>, vector<8x16x128xf32>
    %c1_72 = arith.constant 1 : index
    %c7_73 = arith.constant 7 : index
    %c0_74 = arith.constant 0 : index
    %55 = vector.load %arg12[%c1_72, %c7_73, %c0_74] : memref<10x32x128xf32, #tpu.memory_space<vmem>>, vector<8x16x128xf32>
    %c1_75 = arith.constant 1 : index
    %c8_76 = arith.constant 8 : index
    %c0_77 = arith.constant 0 : index
    %56 = vector.load %arg12[%c1_75, %c8_76, %c0_77] : memref<10x32x128xf32, #tpu.memory_space<vmem>>, vector<8x16x128xf32>
    %c1_78 = arith.constant 1 : index
    %c9_79 = arith.constant 9 : index
    %c0_80 = arith.constant 0 : index
    %57 = vector.load %arg12[%c1_78, %c9_79, %c0_80] : memref<10x32x128xf32, #tpu.memory_space<vmem>>, vector<8x16x128xf32>
    %c2_81 = arith.constant 2 : index
    %c7_82 = arith.constant 7 : index
    %c0_83 = arith.constant 0 : index
    %58 = vector.load %arg12[%c2_81, %c7_82, %c0_83] : memref<10x32x128xf32, #tpu.memory_space<vmem>>, vector<8x16x128xf32>
    %c2_84 = arith.constant 2 : index
    %c8_85 = arith.constant 8 : index
    %c0_86 = arith.constant 0 : index
    %59 = vector.load %arg12[%c2_84, %c8_85, %c0_86] : memref<10x32x128xf32, #tpu.memory_space<vmem>>, vector<8x16x128xf32>
    %c2_87 = arith.constant 2 : index
    %c9_88 = arith.constant 9 : index
    %c0_89 = arith.constant 0 : index
    %60 = vector.load %arg12[%c2_87, %c9_88, %c0_89] : memref<10x32x128xf32, #tpu.memory_space<vmem>>, vector<8x16x128xf32>
    %61 = tpu.concatenate %52, %53, %54, %55, %56, %57, %58, %59, %60 in 2 : vector<8x16x128xf32>, vector<8x16x128xf32>, vector<8x16x128xf32>, vector<8x16x128xf32>, vector<8x16x128xf32>, vector<8x16x128xf32>, vector<8x16x128xf32>, vector<8x16x128xf32>, vector<8x16x128xf32> -> vector<8x16x1152xf32>
    %62 = vector.shape_cast %61 : vector<8x16x1152xf32> to vector<128x1152xf32>
    %c0_90 = arith.constant 0 : index
    %c0_91 = arith.constant 0 : index
    %63 = vector.load %arg8[%c0_90, %c0_91] : memref<1152x128xf32, #tpu.memory_space<vmem>>, vector<1152x128xf32>
    %cst_92 = arith.constant dense<0.000000e+00> : vector<128x128xf32>
    %64 = tpu.matmul %62, %63, %cst_92 {dimension_numbers = #tpu.dot_dimension_numbers<[1], [0], [0], [1], [0, 0, 1, 1], [], []>} : vector<128x1152xf32>, vector<1152x128xf32>, vector<128x128xf32> -> vector<128x128xf32>
    %c0_93 = arith.constant 0 : index
    %c0_94 = arith.constant 0 : index
    %65 = vector.load %arg9[%c0_93, %c0_94] : memref<1x128xf32, #tpu.memory_space<vmem>>, vector<1x128xf32>
    %66 = vector.broadcast %65 : vector<1x128xf32> to vector<128x128xf32>
    %67 = arith.addf %64, %66 : vector<128x128xf32>
    %cst_95 = arith.constant 0.000000e+00 : f32
    %68 = vector.broadcast %cst_95 : f32 to vector<128x128xf32>
    %69 = arith.maximumf %67, %68 : vector<128x128xf32>
    %70 = vector.shape_cast %69 : vector<128x128xf32> to vector<8x16x128xf32>
    %c0_96 = arith.constant 0 : index
    %c0_97 = arith.constant 0 : index
    %c0_98 = arith.constant 0 : index
    %71 = vector.load %arg3[%c0_96, %c0_97, %c0_98] : memref<1x8x16xf32, #tpu.memory_space<vmem>>, vector<1x8x16xf32>
    %72 = vector.shape_cast %71 : vector<1x8x16xf32> to vector<8x16xf32>
    %73 = vector.shape_cast %72 : vector<8x16xf32> to vector<8x16x1xf32>
    %74 = tpu.iota {dimensions = array<i32: 2>} : vector<8x16x128xi32>
    %c127_i32 = arith.constant 127 : i32
    %75 = vector.broadcast %c127_i32 : i32 to vector<8x16x128xi32>
    %76 = arith.cmpi eq, %74, %75 : vector<8x16x128xi32>
    %77 = vector.shape_cast %73 : vector<8x16x1xf32> to vector<8x16x1xf32>
    %78 = vector.broadcast %77 : vector<8x16x1xf32> to vector<8x16x128xf32>
    %79 = arith.select %76, %78, %70 : vector<8x16x128xi1>, vector<8x16x128xf32>
    %c0_99 = arith.constant 0 : index
    %c0_100 = arith.constant 0 : index
    %c0_101 = arith.constant 0 : index
    %c0_102 = arith.constant 0 : index
    %80 = vector.load %arg10[%c0_99, %c0_100, %c0_101, %c0_102] : memref<1x8x16x128xf32, #tpu.memory_space<vmem>>, vector<1x8x16x128xf32>
    %81 = vector.shape_cast %80 : vector<1x8x16x128xf32> to vector<8x16x128xf32>
    %82 = vector.shape_cast %79 : vector<8x16x128xf32> to vector<1x8x16x128xf32>
    tpu.vector_store %arg10[%c0_99, %c0_100, %c0_101, %c0_102], %82 {strides = array<i32>} : memref<1x8x16x128xf32, #tpu.memory_space<vmem>>, vector<1x8x16x128xf32>,
    return
  }
  func.func @transform_0(%arg0: i32, %arg1: i32) -> (i32, i32, i32, i32) {
    %c2_i32 = arith.constant 2 : i32
    %0 = arith.muli %arg0, %c2_i32 : i32
    %1 = arith.addi %0, %arg1 : i32
    %c0_i32 = arith.constant 0 : i32
    %c0_i32_0 = arith.constant 0 : i32
    %c0_i32_1 = arith.constant 0 : i32
    %c0_i32_2 = arith.constant 0 : i32
    return %1, %c0_i32, %c0_i32_0, %c0_i32_1 : i32, i32, i32, i32
  }
  func.func @transform_1(%arg0: i32, %arg1: i32) -> (i32, i32, i32) {
    %c0_i32 = arith.constant 0 : i32
    %c0_i32_0 = arith.constant 0 : i32
    return %arg0, %arg1, %c0_i32 : i32, i32, i32
  }
  func.func @transform_2(%arg0: i32, %arg1: i32) -> (i32, i32) {
    %c0_i32 = arith.constant 0 : i32
    %c0_i32_0 = arith.constant 0 : i32
    %c0_i32_1 = arith.constant 0 : i32
    return %c0_i32, %c0_i32_0 : i32, i32
  }
  func.func @transform_3(%arg0: i32, %arg1: i32) -> (i32, i32) {
    %c0_i32 = arith.constant 0 : i32
    %c0_i32_0 = arith.constant 0 : i32
    %c0_i32_1 = arith.constant 0 : i32
    return %c0_i32, %c0_i32_0 : i32, i32
  }
  func.func @transform_4(%arg0: i32, %arg1: i32) -> (i32, i32) {
    %c0_i32 = arith.constant 0 : i32
    %c0_i32_0 = arith.constant 0 : i32
    %c0_i32_1 = arith.constant 0 : i32
    return %c0_i32, %c0_i32_0 : i32, i32
  }
  func.func @transform_5(%arg0: i32, %arg1: i32) -> (i32, i32) {
    %c0_i32 = arith.constant 0 : i32
    %c0_i32_0 = arith.constant 0 : i32
    %c0_i32_1 = arith.constant 0 : i32
    return %c0_i32, %c0_i32_0 : i32, i32
  }
  func.func @transform_6(%arg0: i32, %arg1: i32) -> (i32, i32) {
    %c0_i32 = arith.constant 0 : i32
    %c0_i32_0 = arith.constant 0 : i32
    %c0_i32_1 = arith.constant 0 : i32
    return %c0_i32, %c0_i32_0 : i32, i32
  }
  func.func @transform_7(%arg0: i32, %arg1: i32) -> (i32, i32) {
    %c0_i32 = arith.constant 0 : i32
    %c0_i32_0 = arith.constant 0 : i32
    %c0_i32_1 = arith.constant 0 : i32
    return %c0_i32, %c0_i32_0 : i32, i32
  }
  func.func @transform_8(%arg0: i32, %arg1: i32) -> (i32, i32, i32, i32) {
    %c0_i32 = arith.constant 0 : i32
    %c0_i32_0 = arith.constant 0 : i32
    %c0_i32_1 = arith.constant 0 : i32
    return %arg0, %arg1, %c0_i32, %c0_i32_0 : i32, i32, i32, i32
  }
}

</mosaic_0001>

<llo_original>
// kernel: tpu_custom_call.1
$region0: #{tpu_custom_call.1}
  #allocation0 [shape = 'u32[]', space=smem, size = 0x4, offset = 0x4, fixed_abs, tag = 'smem constant byte address 0x4 - core index']
  #allocation1 [shape = 'u32[144,128]{1,0:T(1,128)}', space=vmem, size = 0x12000, scoped, tag = 'internal scratch']
  #allocation2 [shape = 'f32[12,32,128]{2,1,0:T(8,128)}', space=vmem, size = 0x30000, scoped, tag = 'scratch operand']
  #allocation3 [shape = 'f32[10,32,128]{2,1,0:T(8,128)}', space=vmem, size = 0x28000, scoped, tag = 'scratch operand']
  %s0 = inlined_call_operand.hbm [shape: f32[4,12,16,128], index: 0, kind: input, shape index: {}]
  %s1 = inlined_call_operand.hbm [shape: f32[2,16,16], index: 1, kind: input, shape index: {}]
  %s2 = inlined_call_operand.hbm [shape: f32[128,128], index: 2, kind: input, shape index: {}]
  %s3 = inlined_call_operand.vmem [shape: f32[1,128], index: 3, kind: input, shape index: {}]
  %s4 = inlined_call_operand.hbm [shape: f32[1152,128], index: 4, kind: input, shape index: {}]
  %s5 = inlined_call_operand.vmem [shape: f32[1,128], index: 5, kind: input, shape index: {}]
  %s6 = inlined_call_operand.hbm [shape: f32[1152,128], index: 6, kind: input, shape index: {}]
  %s7 = inlined_call_operand.vmem [shape: f32[1,128], index: 7, kind: input, shape index: {}]
  %s8 = inlined_call_operand.hbm [shape: f32[2,16,16,128], index: 8, kind: output, shape index: {}]
  %s9 = sld [smem:[#allocation0]]
  $region101: #{tpu_custom_call.1} parent=0
    _
  %s11 = ssub.s32 1, %s9
  %s12 = scalar_select 0, %s11, %s9
  $region1: #{tpu_custom_call.1} parent=0
    #allocation4 [shape = 'u8[196608]{0}', space=vmem, size = 0x30000, scoped, tag = 'input window, operand 0']
    #allocation5 [shape = 's32[2]{0}', space=sflag, size = 0x8, scoped, tag = 'scoped memory for tpu_custom_call.1']
    #allocation6 [shape = 's32[2]{0}', space=sflag, size = 0x8, scoped, tag = 'scoped memory for tpu_custom_call.1']
    #allocation7 [shape = 'u8[8192]{0}', space=vmem, size = 0x2000, scoped, tag = 'input window, operand 1']
    #allocation8 [shape = 's32[2]{0}', space=sflag, size = 0x8, scoped, tag = 'scoped memory for tpu_custom_call.1']
    #allocation9 [shape = 'u8[65536]{0}', space=vmem, size = 0x10000, scoped, tag = 'input window, operand 2, single buffered']
    #allocation10 [shape = 'u8[589824]{0}', space=vmem, size = 0x90000, scoped, tag = 'input window, operand 4, single buffered']
    #allocation11 [shape = 's32[1]{0}', space=sflag, size = 0x4, scoped, tag = 'scoped memory for tpu_custom_call.1']
    #allocation12 [shape = 'u8[589824]{0}', space=vmem, size = 0x90000, scoped, tag = 'input window, operand 6, single buffered']
    #allocation13 [shape = 'u8[131072]{0}', space=vmem, size = 0x20000, scoped, tag = 'output window, operand 0']
    %13 = vsyncpa [#allocation5], 0
    %s14 = scalar_lea.sflag [#allocation5], 1
    %15 = vsyncpa %s14, 0
    %16 = vsyncpa [#allocation8], 0
    %s17 = scalar_lea.sflag [#allocation8], 1
    %18 = vsyncpa %s17, 0
    %19 = vsyncpa [#allocation11], 0
    %20 = vsyncpa [#allocation6], 0
    %s21 = scalar_lea.sflag [#allocation6], 1
    %22 = vsyncpa %s21, 0
    loop: start=0, step=1, limit=6
    $region2: #{tpu_custom_call.1} parent=1 // loop_pre_header
      _
    $region3: #{tpu_custom_call.1} parent=1 // loop_header
      %s24 = sphi 0, %s28
      %p25 = scmp.ge.s32.totalorder %s24, 6
      %s31 = sphi 0, %s43
      %s32 = sphi 0, %s39
      %s33 = sphi 0, %s31
      %s34 = sphi 0, %s32
      %s35 = sphi 0, %s33
      %s36 = sphi 0, %s34
      %s50 = sphi 0, %s52
      %s53 = sphi 0, %s50
      %s54 = sphi 0, %s53
      %s70 = sphi 0, %s54
      %s78 = sphi 0, %s80
      %s81 = sphi 0, %s78
      %s82 = sphi 0, %s81
      %s98 = sphi 0, %s82
      %s102 = sphi 0, %s102
      %s104 = sphi 0, %s102
      %s105 = sphi 0, %s104
      %s119 = sphi 0, %s105
      %s123 = sphi 0, %s123
      %s125 = sphi 0, %s123
      %s126 = sphi 0, %s125
      %s140 = sphi 0, %s126
      %s144 = sphi 0, %s144
      %s146 = sphi 0, %s144
      %s147 = sphi 0, %s146
      %s161 = sphi 0, %s147
      %s165 = sphi 0, %s165
      %s167 = sphi 0, %s165
      %s168 = sphi 0, %s167
      %s182 = sphi 0, %s168
      %s186 = sphi 0, %s186
      %s188 = sphi 0, %s186
      %s189 = sphi 0, %s188
      %s203 = sphi 0, %s189
      %s207 = sphi 0, %s207
      %s209 = sphi 0, %s207
      %s210 = sphi 0, %s209
      %s224 = sphi 0, %s210
      %s232 = sphi 0, %s234
      %s235 = sphi 0, %s232
      %s236 = sphi 0, %s235
      %s252 = sphi 0, %s236
    $region4: #{tpu_custom_call.1} parent=1 // loop_header_branch
      %27 = sbr.rel (%p25) target = $region8
    $region5: #{tpu_custom_call.1} parent=1 // loop_body
      %s29 = ssub.s32 %s24, 1
      %s30 = ssub.s32 %s24, 2
      %s37 = sadd.s32 1, %s32
      %p38 = scmp.ge.s32.totalorder %s37, 2
      %s39 = scalar_select %p38, 0, %s37
      %s40 = sadd.s32 1, %s31
      %s41 = scalar_select %p38, %s40, %s31
      %p42 = scmp.ge.s32.totalorder %s41, 2
      %s43 = scalar_select %p42, 0, %s41
      %s44 = smul.u32 %s31, 2
      %s45 = sadd.s32 %s44, %s32
      %s46 = smul.u32 %s43, 2
      %s47 = sadd.s32 %s46, %s39
      %s48 = ssub.s32 %s45, %s47
      %p49 = scmp.eq.s32.totalorder %s48, 0
      %s51 = sadd.s32 %s50, 1
      %s52 = scalar_select %p49, %s50, %s51
      %p55 = pneg %p49
      %p56 = scmp.eq.s32.totalorder %s24, 3
      %p57 = por %p55, %p56
      %p58 = scmp.ne.s32.totalorder %s50, %s53
      %p59 = scmp.eq.s32.totalorder %s24, 0
      %p60 = por %p58, %p59
      %p61 = scmp.ne.s32.totalorder %s50, %s53
      %p62 = scmp.eq.s32.totalorder %s29, 3
      %p63 = por %p61, %p62
      %p64 = scmp.ne.s32.totalorder %s53, %s54
      %p65 = scmp.eq.s32.totalorder %s29, 0
      %p66 = por %p64, %p65
      %p67 = scmp.ne.s32.totalorder %s53, %s54
      %p68 = scmp.eq.s32.totalorder %s30, 3
      %p69 = por %p67, %p68
      %p71 = scmp.ne.s32.totalorder %s54, %s70
      %p72 = scmp.eq.s32.totalorder %s30, 0
      %p73 = por %p71, %p72
      %s74 = ssub.s32 %s31, %s43
      %s75 = ssub.s32 %s32, %s39
      %s76 = sor.u32 %s74, %s75
      %p77 = scmp.eq.s32.totalorder %s76, 0
      %s79 = sadd.s32 %s78, 1
      %s80 = scalar_select %p77, %s78, %s79
      %p83 = pneg %p77
      %p84 = scmp.eq.s32.totalorder %s24, 3
      %p85 = por %p83, %p84
      %p86 = scmp.ne.s32.totalorder %s78, %s81
      %p87 = scmp.eq.s32.totalorder %s24, 0
      %p88 = por %p86, %p87
      %p89 = scmp.ne.s32.totalorder %s78, %s81
      %p90 = scmp.eq.s32.totalorder %s29, 3
      %p91 = por %p89, %p90
      %p92 = scmp.ne.s32.totalorder %s81, %s82
      %p93 = scmp.eq.s32.totalorder %s29, 0
      %p94 = por %p92, %p93
      %p95 = scmp.ne.s32.totalorder %s81, %s82
      %p96 = scmp.eq.s32.totalorder %s30, 3
      %p97 = por %p95, %p96
      %p99 = scmp.ne.s32.totalorder %s82, %s98
      %p100 = scmp.eq.s32.totalorder %s30, 0
      %p101 = por %p99, %p100
      %s103 = sadd.s32 %s102, 1
      %p106 = scmp.eq.s32.totalorder %s24, 3
      %p107 = scmp.ne.s32.totalorder %s102, %s104
      %p108 = scmp.eq.s32.totalorder %s24, 0
      %p109 = por %p107, %p108
      %p110 = scmp.ne.s32.totalorder %s102, %s104
      %p111 = scmp.eq.s32.totalorder %s29, 3
      %p112 = por %p110, %p111
      %p113 = scmp.ne.s32.totalorder %s104, %s105
      %p114 = scmp.eq.s32.totalorder %s29, 0
      %p115 = por %p113, %p114
      %p116 = scmp.ne.s32.totalorder %s104, %s105
      %p117 = scmp.eq.s32.totalorder %s30, 3
      %p118 = por %p116, %p117
      %p120 = scmp.ne.s32.totalorder %s105, %s119
      %p121 = scmp.eq.s32.totalorder %s30, 0
      %p122 = por %p120, %p121
      %s124 = sadd.s32 %s123, 1
      %p127 = scmp.eq.s32.totalorder %s24, 3
      %p128 = scmp.ne.s32.totalorder %s123, %s125
      %p129 = scmp.eq.s32.totalorder %s24, 0
      %p130 = por %p128, %p129
      %p131 = scmp.ne.s32.totalorder %s123, %s125
      %p132 = scmp.eq.s32.totalorder %s29, 3
      %p133 = por %p131, %p132
      %p134 = scmp.ne.s32.totalorder %s125, %s126
      %p135 = scmp.eq.s32.totalorder %s29, 0
      %p136 = por %p134, %p135
      %p137 = scmp.ne.s32.totalorder %s125, %s126
      %p138 = scmp.eq.s32.totalorder %s30, 3
      %p139 = por %p137, %p138
      %p141 = scmp.ne.s32.totalorder %s126, %s140
      %p142 = scmp.eq.s32.totalorder %s30, 0
      %p143 = por %p141, %p142
      %s145 = sadd.s32 %s144, 1
      %p148 = scmp.eq.s32.totalorder %s24, 3
      %p149 = scmp.ne.s32.totalorder %s144, %s146
      %p150 = scmp.eq.s32.totalorder %s24, 0
      %p151 = por %p149, %p150
      %p152 = scmp.ne.s32.totalorder %s144, %s146
      %p153 = scmp.eq.s32.totalorder %s29, 3
      %p154 = por %p152, %p153
      %p155 = scmp.ne.s32.totalorder %s146, %s147
      %p156 = scmp.eq.s32.totalorder %s29, 0
      %p157 = por %p155, %p156
      %p158 = scmp.ne.s32.totalorder %s146, %s147
      %p159 = scmp.eq.s32.totalorder %s30, 3
      %p160 = por %p158, %p159
      %p162 = scmp.ne.s32.totalorder %s147, %s161
      %p163 = scmp.eq.s32.totalorder %s30, 0
      %p164 = por %p162, %p163
      %s166 = sadd.s32 %s165, 1
      %p169 = scmp.eq.s32.totalorder %s24, 3
      %p170 = scmp.ne.s32.totalorder %s165, %s167
      %p171 = scmp.eq.s32.totalorder %s24, 0
      %p172 = por %p170, %p171
      %p173 = scmp.ne.s32.totalorder %s165, %s167
      %p174 = scmp.eq.s32.totalorder %s29, 3
      %p175 = por %p173, %p174
      %p176 = scmp.ne.s32.totalorder %s167, %s168
      %p177 = scmp.eq.s32.totalorder %s29, 0
      %p178 = por %p176, %p177
      %p179 = scmp.ne.s32.totalorder %s167, %s168
      %p180 = scmp.eq.s32.totalorder %s30, 3
      %p181 = por %p179, %p180
      %p183 = scmp.ne.s32.totalorder %s168, %s182
      %p184 = scmp.eq.s32.totalorder %s30, 0
      %p185 = por %p183, %p184
      %s187 = sadd.s32 %s186, 1
      %p190 = scmp.eq.s32.totalorder %s24, 3
      %p191 = scmp.ne.s32.totalorder %s186, %s188
      %p192 = scmp.eq.s32.totalorder %s24, 0
      %p193 = por %p191, %p192
      %p194 = scmp.ne.s32.totalorder %s186, %s188
      %p195 = scmp.eq.s32.totalorder %s29, 3
      %p196 = por %p194, %p195
      %p197 = scmp.ne.s32.totalorder %s188, %s189
      %p198 = scmp.eq.s32.totalorder %s29, 0
      %p199 = por %p197, %p198
      %p200 = scmp.ne.s32.totalorder %s188, %s189
      %p201 = scmp.eq.s32.totalorder %s30, 3
      %p202 = por %p200, %p201
      %p204 = scmp.ne.s32.totalorder %s189, %s203
      %p205 = scmp.eq.s32.totalorder %s30, 0
      %p206 = por %p204, %p205
      %s208 = sadd.s32 %s207, 1
      %p211 = scmp.eq.s32.totalorder %s24, 3
      %p212 = scmp.ne.s32.totalorder %s207, %s209
      %p213 = scmp.eq.s32.totalorder %s24, 0
      %p214 = por %p212, %p213
      %p215 = scmp.ne.s32.totalorder %s207, %s209
      %p216 = scmp.eq.s32.totalorder %s29, 3
      %p217 = por %p215, %p216
      %p218 = scmp.ne.s32.totalorder %s209, %s210
      %p219 = scmp.eq.s32.totalorder %s29, 0
      %p220 = por %p218, %p219
      %p221 = scmp.ne.s32.totalorder %s209, %s210
      %p222 = scmp.eq.s32.totalorder %s30, 3
      %p223 = por %p221, %p222
      %p225 = scmp.ne.s32.totalorder %s210, %s224
      %p226 = scmp.eq.s32.totalorder %s30, 0
      %p227 = por %p225, %p226
      %s228 = ssub.s32 %s31, %s43
      %s229 = ssub.s32 %s32, %s39
      %s230 = sor.u32 %s228, %s229
      %p231 = scmp.eq.s32.totalorder %s230, 0
      %s233 = sadd.s32 %s232, 1
      %s234 = scalar_select %p231, %s232, %s233
      %p237 = pneg %p231
      %p238 = scmp.eq.s32.totalorder %s24, 3
      %p239 = por %p237, %p238
      %p240 = scmp.ne.s32.totalorder %s232, %s235
      %p241 = scmp.eq.s32.totalorder %s24, 0
      %p242 = por %p240, %p241
      %p243 = scmp.ne.s32.totalorder %s232, %s235
      %p244 = scmp.eq.s32.totalorder %s29, 3
      %p245 = por %p243, %p244
      %p246 = scmp.ne.s32.totalorder %s235, %s236
      %p247 = scmp.eq.s32.totalorder %s29, 0
      %p248 = por %p246, %p247
      %p249 = scmp.ne.s32.totalorder %s235, %s236
      %p250 = scmp.eq.s32.totalorder %s30, 3
      %p251 = por %p249, %p250
      %p253 = scmp.ne.s32.totalorder %s236, %s252
      %p254 = scmp.eq.s32.totalorder %s30, 0
      %p255 = por %p253, %p254
      %p256 = scmp.le.s32.totalorder 1, %s24
      %p257 = scmp.lt.s32.totalorder %s24, 5
      %p258 = pnand %p256, %p257
      %p259 = pneg %p258
      // Predicated region
      $region9: #{tpu_custom_call.1} parent=5 // pred_check
        _
      $region10: #{tpu_custom_call.1} parent=5 // pred_check_branch
        %261 = sbr.rel (%p258) target = $region12
      $region11: #{tpu_custom_call.1} parent=5 // pred_region
        %s262 = ssub.s32 %s24, 1
        // Predicated region
        $region13: #{tpu_custom_call.1} parent=11 // pred_check
          %p263 = pneg %p115
        $region14: #{tpu_custom_call.1} parent=11 // pred_check_branch
          %265 = sbr.rel (%p263) target = $region16
        $region15: #{tpu_custom_call.1} parent=11 // pred_region
          %s267 = ssub.s32 2048, 2048
          %268 = vsyncadd [#allocation8], %s267
          %s269 = sshll.u32 [#allocation9], 4
          %s270 = int_to_ptr.vmem [resolvable:$true] %s269
          %275 = dma.hbm_to_vmem [thread:$0]  %s2, 2048, %s270, [#allocation8], 128, 128, 8
        $region16: #{tpu_custom_call.1} parent=11 // pred_fallthru
          _
        // Predicated region
        $region17: #{tpu_custom_call.1} parent=11 // pred_check
          %p276 = pneg %p136
        $region18: #{tpu_custom_call.1} parent=11 // pred_check_branch
          %278 = sbr.rel (%p276) target = $region20
        $region19: #{tpu_custom_call.1} parent=11 // pred_region
          _
        $region20: #{tpu_custom_call.1} parent=11 // pred_fallthru
          _
        // Predicated region
        $region21: #{tpu_custom_call.1} parent=11 // pred_check
          %p279 = pneg %p157
        $region22: #{tpu_custom_call.1} parent=11 // pred_check_branch
          %281 = sbr.rel (%p279) target = $region24
        $region23: #{tpu_custom_call.1} parent=11 // pred_region
          %s283 = ssub.s32 18432, 18432
          %284 = vsyncadd [#allocation11], %s283
          %s285 = sshll.u32 [#allocation10], 4
          %s286 = int_to_ptr.vmem [resolvable:$true] %s285
          %291 = dma.hbm_to_vmem [thread:$0]  %s4, 18432, %s286, [#allocation11], 128, 128, 8
        $region24: #{tpu_custom_call.1} parent=11 // pred_fallthru
          _
        // Predicated region
        $region25: #{tpu_custom_call.1} parent=11 // pred_check
          %p292 = pneg %p178
        $region26: #{tpu_custom_call.1} parent=11 // pred_check_branch
          %294 = sbr.rel (%p292) target = $region28
        $region27: #{tpu_custom_call.1} parent=11 // pred_region
          _
        $region28: #{tpu_custom_call.1} parent=11 // pred_fallthru
          _
        // Predicated region
        $region29: #{tpu_custom_call.1} parent=11 // pred_check
          %p295 = pneg %p199
        $region30: #{tpu_custom_call.1} parent=11 // pred_check_branch
          %297 = sbr.rel (%p295) target = $region32
        $region31: #{tpu_custom_call.1} parent=11 // pred_region
          %s299 = ssub.s32 18432, 18432
          %300 = vsyncadd [#allocation11], %s299
          %s301 = sshll.u32 [#allocation12], 4
          %s302 = int_to_ptr.vmem [resolvable:$true] %s301
          %307 = dma.hbm_to_vmem [thread:$0]  %s6, 18432, %s302, [#allocation11], 128, 128, 8
        $region32: #{tpu_custom_call.1} parent=11 // pred_fallthru
          _
        // Predicated region
        $region33: #{tpu_custom_call.1} parent=11 // pred_check
          %p308 = pneg %p220
        $region34: #{tpu_custom_call.1} parent=11 // pred_check_branch
          %310 = sbr.rel (%p308) target = $region36
        $region35: #{tpu_custom_call.1} parent=11 // pred_region
          _
        $region36: #{tpu_custom_call.1} parent=11 // pred_fallthru
          _
      $region12: #{tpu_custom_call.1} parent=5 // pred_fallthru
        _
      %p311 = scmp.lt.s32.totalorder %s24, 4
      // Predicated region
      $region37: #{tpu_custom_call.1} parent=5 // pred_check
        %p312 = pneg %p311
      $region38: #{tpu_custom_call.1} parent=5 // pred_check_branch
        %314 = sbr.rel (%p312) target = $region40
      $region39: #{tpu_custom_call.1} parent=5 // pred_region
        // Predicated region
        $region41: #{tpu_custom_call.1} parent=39 // pred_check
          %p315 = pneg %p60
        $region42: #{tpu_custom_call.1} parent=39 // pred_check_branch
          %317 = sbr.rel (%p315) target = $region44
        $region43: #{tpu_custom_call.1} parent=39 // pred_region
          %s318 = sand.u32 %s50, 1
          %s319 = scalar_lea.sflag [#allocation5], %s318
          %s320 = sand.u32 %s50, 1
          %s321 = smul.addr %s320, 192
          %s322 = scalar_lea.vmem [#allocation4], %s321
          %s323 = smul.u32 %s31, 2
          %s324 = sadd.s32 %s323, %s32
          %s326 = ssub.s32 3072, 3072
          %327 = vsyncadd %s319, %s326
          %s328 = smul.addr %s324, 24
          %s329 = smul.addr %s328, 128
          %s330 = scalar_lea.hbm %s0, %s329
          %s331 = sshll.u32 %s322, 4
          %s332 = int_to_ptr.vmem [resolvable:$true] %s331
          %337 = dma.hbm_to_vmem [thread:$0]  %s330, 3072, %s332, %s319, 128, 128, 8
        $region44: #{tpu_custom_call.1} parent=39 // pred_fallthru
          _
        // Predicated region
        $region45: #{tpu_custom_call.1} parent=39 // pred_check
          %p338 = pneg %p88
        $region46: #{tpu_custom_call.1} parent=39 // pred_check_branch
          %340 = sbr.rel (%p338) target = $region48
        $region47: #{tpu_custom_call.1} parent=39 // pred_region
          %s341 = sand.u32 %s24, 1
          %s342 = scalar_lea.sflag [#allocation8], %s341
          %s343 = sand.u32 %s78, 1
          %s344 = smul.addr %s343, 8
          %s345 = scalar_lea.vmem [#allocation7], %s344
          %s347 = ssub.s32 128, 128
          %348 = vsyncadd %s342, %s347
          %s349 = smul.addr %s31, 2
          %s350 = sadd.s32 %s32, %s349
          %s351 = smul.addr %s350, 128
          %s352 = scalar_lea.hbm %s1, %s351
          %s354 = sshll.u32 %s345, 4
          %s355 = int_to_ptr.vmem [resolvable:$true] %s354
          %357 = dma.hbm_to_vmem [thread:$0]  %s352, 128, %s355, %s342
        $region48: #{tpu_custom_call.1} parent=39 // pred_fallthru
          _
      $region40: #{tpu_custom_call.1} parent=5 // pred_fallthru
        _
      %p358 = scmp.le.s32.totalorder 1, %s24
      %p359 = scmp.lt.s32.totalorder %s24, 5
      %p360 = pnand %p358, %p359
      %p361 = pneg %p360
      // Predicated region
      $region49: #{tpu_custom_call.1} parent=5 // pred_check
        _
      $region50: #{tpu_custom_call.1} parent=5 // pred_check_branch
        %363 = sbr.rel (%p360) target = $region52
      $region51: #{tpu_custom_call.1} parent=5 // pred_region
        %s364 = ssub.s32 %s24, 1
        %s365 = sand.u32 %s53, 1
        %s366 = scalar_lea.sflag [#allocation5], %s365
        %s367 = sand.u32 %s53, 1
        %s368 = smul.addr %s367, 192
        %s369 = scalar_lea.vmem [#allocation4], %s368
        // Predicated region
        $region53: #{tpu_custom_call.1} parent=51 // pred_check
          %p370 = pneg %p66
        $region54: #{tpu_custom_call.1} parent=51 // pred_check_branch
          %372 = sbr.rel (%p370) target = $region56
        $region55: #{tpu_custom_call.1} parent=51 // pred_region
          %373 = dma.done %s366, 3072
        $region56: #{tpu_custom_call.1} parent=51 // pred_fallthru
          _
        %s374 = sand.u32 %s29, 1
        %s375 = scalar_lea.sflag [#allocation8], %s374
        %s376 = sand.u32 %s81, 1
        %s377 = smul.addr %s376, 8
        %s378 = scalar_lea.vmem [#allocation7], %s377
        // Predicated region
        $region57: #{tpu_custom_call.1} parent=51 // pred_check
          %p379 = pneg %p94
        $region58: #{tpu_custom_call.1} parent=51 // pred_check_branch
          %381 = sbr.rel (%p379) target = $region60
        $region59: #{tpu_custom_call.1} parent=51 // pred_region
          %382 = dma.done %s375, 128
        $region60: #{tpu_custom_call.1} parent=51 // pred_fallthru
          _
        // Predicated region
        $region61: #{tpu_custom_call.1} parent=51 // pred_check
          %p383 = pneg %p115
        $region62: #{tpu_custom_call.1} parent=51 // pred_check_branch
          %385 = sbr.rel (%p383) target = $region64
        $region63: #{tpu_custom_call.1} parent=51 // pred_region
          %386 = dma.done [#allocation8], 2048
        $region64: #{tpu_custom_call.1} parent=51 // pred_fallthru
          _
        // Predicated region
        $region65: #{tpu_custom_call.1} parent=51 // pred_check
          %p387 = pneg %p157
        $region66: #{tpu_custom_call.1} parent=51 // pred_check_branch
          %389 = sbr.rel (%p387) target = $region68
        $region67: #{tpu_custom_call.1} parent=51 // pred_region
          %390 = dma.done [#allocation11], 18432
        $region68: #{tpu_custom_call.1} parent=51 // pred_fallthru
          _
        // Predicated region
        $region69: #{tpu_custom_call.1} parent=51 // pred_check
          %p391 = pneg %p199
        $region70: #{tpu_custom_call.1} parent=51 // pred_check_branch
          %393 = sbr.rel (%p391) target = $region72
        $region71: #{tpu_custom_call.1} parent=51 // pred_region
          %394 = dma.done [#allocation11], 18432
        $region72: #{tpu_custom_call.1} parent=51 // pred_fallthru
          _
        %s395 = sand.u32 %s53, 1
        %s396 = scalar_lea.sflag [#allocation5], %s395
        %s397 = sand.u32 %s53, 1
        %s398 = smul.addr %s397, 192
        %s399 = scalar_lea.vmem [#allocation4], %s398
        %p400 = pneg %p66
        %p401 = pneg %p63
        %s402 = sand.u32 %s29, 1
        %s403 = scalar_lea.sflag [#allocation8], %s402
        %s404 = sand.u32 %s81, 1
        %s405 = smul.addr %s404, 8
        %s406 = scalar_lea.vmem [#allocation7], %s405
        %p407 = pneg %p94
        %p408 = pneg %p91
        %p409 = pneg %p115
        %p410 = pneg %p112
        %p411 = pneg %p136
        %p412 = pneg %p133
        %p413 = pneg %p157
        %p414 = pneg %p154
        %p415 = pneg %p178
        %p416 = pneg %p175
        %p417 = pneg %p199
        %p418 = pneg %p196
        %p419 = pneg %p220
        %p420 = pneg %p217
        %p421 = pneg %p248
        %p422 = pneg %p245
        %s423 = sand.u32 %s235, 1
        %s424 = scalar_lea.sflag [#allocation6], %s423
        %s425 = sand.u32 %s235, 1
        %s426 = smul.addr %s425, 128
        %s427 = scalar_lea.vmem [#allocation13], %s426
        %s428 = smul.u32 %s33, 2
        %s429 = sadd.s32 %s428, %s34
        %s430 = smul.u32 8, %s34
        %431 = vst [vmem:[#allocation2 + $0x7] sm:$0x1] 0.0
        %432 = vst [vmem:[#allocation2 + $0x27] sm:$0x1] 0.0
        %433 = vst [vmem:[#allocation2 + $0x47] sm:$0x1] 0.0
        %434 = vst [vmem:[#allocation2 + $0x67] sm:$0x1] 0.0
        %435 = vst [vmem:[#allocation2 + $0x87] sm:$0x1] 0.0
        %436 = vst [vmem:[#allocation2 + $0xa7] sm:$0x1] 0.0
        %437 = vst [vmem:[#allocation2 + $0xc7] sm:$0x1] 0.0
        %438 = vst [vmem:[#allocation2 + $0xe7] sm:$0x1] 0.0
        %439 = vst [vmem:[#allocation2 + $0x107] sm:$0x1] 0.0
        %440 = vst [vmem:[#allocation2 + $0x127] sm:$0x1] 0.0
        %441 = vst [vmem:[#allocation2 + $0x147] sm:$0x1] 0.0
        %442 = vst [vmem:[#allocation2 + $0x167] sm:$0x1] 0.0
        %443 = vst [vmem:[#allocation2 + $0x18] sm:$0x1] 0.0
        %444 = vst [vmem:[#allocation2 + $0x38] sm:$0x1] 0.0
        %445 = vst [vmem:[#allocation2 + $0x58] sm:$0x1] 0.0
        %446 = vst [vmem:[#allocation2 + $0x78] sm:$0x1] 0.0
        %447 = vst [vmem:[#allocation2 + $0x98] sm:$0x1] 0.0
        %448 = vst [vmem:[#allocation2 + $0xb8] sm:$0x1] 0.0
        %449 = vst [vmem:[#allocation2 + $0xd8] sm:$0x1] 0.0
        %450 = vst [vmem:[#allocation2 + $0xf8] sm:$0x1] 0.0
        %451 = vst [vmem:[#allocation2 + $0x118] sm:$0x1] 0.0
        %452 = vst [vmem:[#allocation2 + $0x138] sm:$0x1] 0.0
        %453 = vst [vmem:[#allocation2 + $0x158] sm:$0x1] 0.0
        %454 = vst [vmem:[#allocation2 + $0x178] sm:$0x1] 0.0
        %455 = vst [vmem:[#allocation3 + $0x7] sm:$0x1] 0.0
        %456 = vst [vmem:[#allocation3 + $0x27] sm:$0x1] 0.0
        %457 = vst [vmem:[#allocation3 + $0x47] sm:$0x1] 0.0
        %458 = vst [vmem:[#allocation3 + $0x67] sm:$0x1] 0.0
        %459 = vst [vmem:[#allocation3 + $0x87] sm:$0x1] 0.0
        %460 = vst [vmem:[#allocation3 + $0xa7] sm:$0x1] 0.0
        %461 = vst [vmem:[#allocation3 + $0xc7] sm:$0x1] 0.0
        %462 = vst [vmem:[#allocation3 + $0xe7] sm:$0x1] 0.0
        %463 = vst [vmem:[#allocation3 + $0x107] sm:$0x1] 0.0
        %464 = vst [vmem:[#allocation3 + $0x127] sm:$0x1] 0.0
        %465 = vst [vmem:[#allocation3 + $0x18] sm:$0x1] 0.0
        %466 = vst [vmem:[#allocation3 + $0x38] sm:$0x1] 0.0
        %467 = vst [vmem:[#allocation3 + $0x58] sm:$0x1] 0.0
        %468 = vst [vmem:[#allocation3 + $0x78] sm:$0x1] 0.0
        %469 = vst [vmem:[#allocation3 + $0x98] sm:$0x1] 0.0
        %470 = vst [vmem:[#allocation3 + $0xb8] sm:$0x1] 0.0
        %471 = vst [vmem:[#allocation3 + $0xd8] sm:$0x1] 0.0
        %472 = vst [vmem:[#allocation3 + $0xf8] sm:$0x1] 0.0
        %473 = vst [vmem:[#allocation3 + $0x118] sm:$0x1] 0.0
        %474 = vst [vmem:[#allocation3 + $0x138] sm:$0x1] 0.0
        %v475 = vld [vmem:[%s369] sm:$0xff]
        %v476 = vld [vmem:[%s369 + $0x8] sm:$0xff]
        %v477 = vld [vmem:[%s369 + $0x10] sm:$0xff]
        %v478 = vld [vmem:[%s369 + $0x18] sm:$0xff]
        %v479 = vld [vmem:[%s369 + $0x20] sm:$0xff]
        %v480 = vld [vmem:[%s369 + $0x28] sm:$0xff]
        %v481 = vld [vmem:[%s369 + $0x30] sm:$0xff]
        %v482 = vld [vmem:[%s369 + $0x38] sm:$0xff]
        %v483 = vld [vmem:[%s369 + $0x40] sm:$0xff]
        %v484 = vld [vmem:[%s369 + $0x48] sm:$0xff]
        %v485 = vld [vmem:[%s369 + $0x50] sm:$0xff]
        %v486 = vld [vmem:[%s369 + $0x58] sm:$0xff]
        %v487 = vld [vmem:[%s369 + $0x60] sm:$0xff]
        %v488 = vld [vmem:[%s369 + $0x68] sm:$0xff]
        %v489 = vld [vmem:[%s369 + $0x70] sm:$0xff]
        %v490 = vld [vmem:[%s369 + $0x78] sm:$0xff]
        %v491 = vld [vmem:[%s369 + $0x80] sm:$0xff]
        %v492 = vld [vmem:[%s369 + $0x88] sm:$0xff]
        %v493 = vld [vmem:[%s369 + $0x90] sm:$0xff]
        %v494 = vld [vmem:[%s369 + $0x98] sm:$0xff]
        %v495 = vld [vmem:[%s369 + $0xa0] sm:$0xff]
        %v496 = vld [vmem:[%s369 + $0xa8] sm:$0xff]
        %v497 = vld [vmem:[%s369 + $0xb0] sm:$0xff]
        %v498 = vld [vmem:[%s369 + $0xb8] sm:$0xff]
        %v499 = vld [vmem:[#allocation9] sm:$0xff]
        %v500 = vld [vmem:[#allocation9 + $0x8] sm:$0xff]
        %v501 = vld [vmem:[#allocation9 + $0x10] sm:$0xff]
        %v502 = vld [vmem:[#allocation9 + $0x18] sm:$0xff]
        %v503 = vld [vmem:[#allocation9 + $0x20] sm:$0xff]
        %v504 = vld [vmem:[#allocation9 + $0x28] sm:$0xff]
        %v505 = vld [vmem:[#allocation9 + $0x30] sm:$0xff]
        %v506 = vld [vmem:[#allocation9 + $0x38] sm:$0xff]
        %v507 = vld [vmem:[#allocation9 + $0x40] sm:$0xff]
        %v508 = vld [vmem:[#allocation9 + $0x48] sm:$0xff]
        %v509 = vld [vmem:[#allocation9 + $0x50] sm:$0xff]
        %v510 = vld [vmem:[#allocation9 + $0x58] sm:$0xff]
        %v511 = vld [vmem:[#allocation9 + $0x60] sm:$0xff]
        %v512 = vld [vmem:[#allocation9 + $0x68] sm:$0xff]
        %v513 = vld [vmem:[#allocation9 + $0x70] sm:$0xff]
        %v514 = vld [vmem:[#allocation9 + $0x78] sm:$0xff]
        %v515 = vld [vmem:[%s3] sm:$0x1]
        %v517 = vlaneseq
        %v518 = vshrl.u32 %v517, 7
        %v519 = vsub.s32 0, %v518
        %v520 = vrot.slane %v515, %v519
        %522 = vmatprep.subr.mxu0 0.0
        %523 = vmatpush1.msra.mxu0 %v499
        %524 = vmatprep.subr.mxu0 0.0
        %525 = vmatpush1.msra.mxu0 %v500
        %526 = vmatprep.subr.mxu0 0.0
        %527 = vmatpush1.msra.mxu0 %v501
        %528 = vmatprep.subr.mxu0 0.0
        %529 = vmatpush1.msra.mxu0 %v502
        %530 = vmatprep.subr.mxu0 0.0
        %531 = vmatpush1.msra.mxu0 %v503
        %532 = vmatprep.subr.mxu0 0.0
        %533 = vmatpush1.msra.mxu0 %v504
        %534 = vmatprep.subr.mxu0 0.0
        %535 = vmatpush1.msra.mxu0 %v505
        %536 = vmatprep.subr.mxu0 0.0
        %537 = vmatpush1.msra.mxu0 %v506
        %538 = vmatprep.subr.mxu0 0.0
        %539 = vmatpush1.msra.mxu0 %v507
        %540 = vmatprep.subr.mxu0 0.0
        %541 = vmatpush1.msra.mxu0 %v508
        %542 = vmatprep.subr.mxu0 0.0
        %543 = vmatpush1.msra.mxu0 %v509
        %544 = vmatprep.subr.mxu0 0.0
        %545 = vmatpush1.msra.mxu0 %v510
        %546 = vmatprep.subr.mxu0 0.0
        %547 = vmatpush1.msra.mxu0 %v511
        %548 = vmatprep.subr.mxu0 0.0
        %549 = vmatpush1.msra.mxu0 %v512
        %550 = vmatprep.subr.mxu0 0.0
        %551 = vmatpush1.msra.mxu0 %v513
        %552 = vmatprep.subr.mxu0 0.0
        %553 = vmatpush1.msra.mxu0 %v514
        %554 = vmatprep.subr.mxu0 0.0
        %555 = vmatpush1.msra.mxu0 0.0
        %556 = vmatprep.subr.mxu0 0.0
        %557 = vmatpush1.msra.mxu0 0.0
        %558 = vmatprep.subr.mxu0 0.0
        %559 = vmatpush1.msra.mxu0 0.0
        %560 = vmatprep.subr.mxu0 0.0
        %561 = vmatpush1.msra.mxu0 0.0
        %562 = vmatprep.subr.mxu0 0.0
        %563 = vmatpush1.msra.mxu0 0.0
        %564 = vmatprep.subr.mxu0 0.0
        %565 = vmatpush1.msra.mxu0 0.0
        %566 = vmatprep.subr.mxu0 0.0
        %567 = vmatpush1.msra.mxu0 0.0
        %568 = vmatprep.subr.mxu0 0.0
        %569 = vmatpush1.msra.mxu0 0.0
        %570 = vmatprep.subr.mxu0 0.0
        %571 = vmatpush1.msra.mxu0 0.0
        %572 = vmatprep.subr.mxu0 0.0
        %573 = vmatpush1.msra.mxu0 0.0
        %574 = vmatprep.subr.mxu0 0.0
        %575 = vmatpush1.msra.mxu0 0.0
        %576 = vmatprep.subr.mxu0 0.0
        %577 = vmatpush1.msra.mxu0 0.0
        %578 = vmatprep.subr.mxu0 0.0
        %579 = vmatpush1.msra.mxu0 0.0
        %580 = vmatprep.subr.mxu0 0.0
        %581 = vmatpush1.msra.mxu0 0.0
        %582 = vmatprep.subr.mxu0 0.0
        %583 = vmatpush1.msra.mxu0 0.0
        %584 = vmatprep.subr.mxu0 0.0
        %585 = vmatpush1.msra.mxu0 0.0
        %586 = vmatprep.mubr.f32.mxu0 0.0
        %587 = vmatmul.mubr.f32.gmra.mrb[0].mxu0 %v475
        %v588 = vpop.f32.mrb[0].mxu0
        %v589 = vadd.f32 %v520, %v588
        %v590 = vpop.f32.mrb[0].mxu0
        %591 = vmatprep.mubr.f32.mxu0 0.0
        %592 = vmatmul.mubr.f32.gmra.mrb[0].mxu0 %v476
        %v593 = vpop.f32.mrb[0].mxu0
        %v594 = vadd.f32 %v520, %v593
        %v595 = vpop.f32.mrb[0].mxu0
        %596 = vmatprep.mubr.f32.mxu0 0.0
        %597 = vmatmul.mubr.f32.gmra.mrb[0].mxu0 %v477
        %v598 = vpop.f32.mrb[0].mxu0
        %v599 = vadd.f32 %v520, %v598
        %v600 = vpop.f32.mrb[0].mxu0
        %601 = vmatprep.mubr.f32.mxu0 0.0
        %602 = vmatmul.mubr.f32.gmra.mrb[0].mxu0 %v478
        %v603 = vpop.f32.mrb[0].mxu0
        %v604 = vadd.f32 %v520, %v603
        %v605 = vpop.f32.mrb[0].mxu0
        %606 = vmatprep.mubr.f32.mxu0 0.0
        %607 = vmatmul.mubr.f32.gmra.mrb[0].mxu0 %v479
        %v608 = vpop.f32.mrb[0].mxu0
        %v609 = vadd.f32 %v520, %v608
        %v610 = vpop.f32.mrb[0].mxu0
        %611 = vmatprep.mubr.f32.mxu0 0.0
        %612 = vmatmul.mubr.f32.gmra.mrb[0].mxu0 %v480
        %v613 = vpop.f32.mrb[0].mxu0
        %v614 = vadd.f32 %v520, %v613
        %v615 = vpop.f32.mrb[0].mxu0
        %616 = vmatprep.mubr.f32.mxu0 0.0
        %617 = vmatmul.mubr.f32.gmra.mrb[0].mxu0 %v481
        %v618 = vpop.f32.mrb[0].mxu0
        %v619 = vadd.f32 %v520, %v618
        %v620 = vpop.f32.mrb[0].mxu0
        %621 = vmatprep.mubr.f32.mxu0 0.0
        %622 = vmatmul.mubr.f32.gmra.mrb[0].mxu0 %v482
        %v623 = vpop.f32.mrb[0].mxu0
        %v624 = vadd.f32 %v520, %v623
        %v625 = vpop.f32.mrb[0].mxu0
        %626 = vmatprep.mubr.f32.mxu0 0.0
        %627 = vmatmul.mubr.f32.gmra.mrb[0].mxu0 %v483
        %v628 = vpop.f32.mrb[0].mxu0
        %v629 = vadd.f32 %v520, %v628
        %v630 = vpop.f32.mrb[0].mxu0
        %631 = vmatprep.mubr.f32.mxu0 0.0
        %632 = vmatmul.mubr.f32.gmra.mrb[0].mxu0 %v484
        %v633 = vpop.f32.mrb[0].mxu0
        %v634 = vadd.f32 %v520, %v633
        %v635 = vpop.f32.mrb[0].mxu0
        %636 = vmatprep.mubr.f32.mxu0 0.0
        %637 = vmatmul.mubr.f32.gmra.mrb[0].mxu0 %v485
        %v638 = vpop.f32.mrb[0].mxu0
        %v639 = vadd.f32 %v520, %v638
        %v640 = vpop.f32.mrb[0].mxu0
        %641 = vmatprep.mubr.f32.mxu0 0.0
        %642 = vmatmul.mubr.f32.gmra.mrb[0].mxu0 %v486
        %v643 = vpop.f32.mrb[0].mxu0
        %v644 = vadd.f32 %v520, %v643
        %v645 = vpop.f32.mrb[0].mxu0
        %646 = vmatprep.mubr.f32.mxu0 0.0
        %647 = vmatmul.mubr.f32.gmra.mrb[0].mxu0 %v487
        %v648 = vpop.f32.mrb[0].mxu0
        %v649 = vadd.f32 %v520, %v648
        %v650 = vpop.f32.mrb[0].mxu0
        %651 = vmatprep.mubr.f32.mxu0 0.0
        %652 = vmatmul.mubr.f32.gmra.mrb[0].mxu0 %v488
        %v653 = vpop.f32.mrb[0].mxu0
        %v654 = vadd.f32 %v520, %v653
        %v655 = vpop.f32.mrb[0].mxu0
        %656 = vmatprep.mubr.f32.mxu0 0.0
        %657 = vmatmul.mubr.f32.gmra.mrb[0].mxu0 %v489
        %v658 = vpop.f32.mrb[0].mxu0
        %v659 = vadd.f32 %v520, %v658
        %v660 = vpop.f32.mrb[0].mxu0
        %661 = vmatprep.mubr.f32.mxu0 0.0
        %662 = vmatmul.mubr.f32.gmra.mrb[0].mxu0 %v490
        %v663 = vpop.f32.mrb[0].mxu0
        %v664 = vadd.f32 %v520, %v663
        %v665 = vpop.f32.mrb[0].mxu0
        %666 = vmatprep.mubr.f32.mxu0 0.0
        %667 = vmatmul.mubr.f32.gmra.mrb[0].mxu0 %v491
        %v668 = vpop.f32.mrb[0].mxu0
        %v669 = vadd.f32 %v520, %v668
        %v670 = vpop.f32.mrb[0].mxu0
        %671 = vmatprep.mubr.f32.mxu0 0.0
        %672 = vmatmul.mubr.f32.gmra.mrb[0].mxu0 %v492
        %v673 = vpop.f32.mrb[0].mxu0
        %v674 = vadd.f32 %v520, %v673
        %v675 = vpop.f32.mrb[0].mxu0
        %676 = vmatprep.mubr.f32.mxu0 0.0
        %677 = vmatmul.mubr.f32.gmra.mrb[0].mxu0 %v493
        %v678 = vpop.f32.mrb[0].mxu0
        %v679 = vadd.f32 %v520, %v678
        %v680 = vpop.f32.mrb[0].mxu0
        %681 = vmatprep.mubr.f32.mxu0 0.0
        %682 = vmatmul.mubr.f32.gmra.mrb[0].mxu0 %v494
        %v683 = vpop.f32.mrb[0].mxu0
        %v684 = vadd.f32 %v520, %v683
        %v685 = vpop.f32.mrb[0].mxu0
        %686 = vmatprep.mubr.f32.mxu0 0.0
        %687 = vmatmul.mubr.f32.gmra.mrb[0].mxu0 %v495
        %v688 = vpop.f32.mrb[0].mxu0
        %v689 = vadd.f32 %v520, %v688
        %v690 = vpop.f32.mrb[0].mxu0
        %691 = vmatprep.mubr.f32.mxu0 0.0
        %692 = vmatmul.mubr.f32.gmra.mrb[0].mxu0 %v496
        %v693 = vpop.f32.mrb[0].mxu0
        %v694 = vadd.f32 %v520, %v693
        %v695 = vpop.f32.mrb[0].mxu0
        %696 = vmatprep.mubr.f32.mxu0 0.0
        %697 = vmatmul.mubr.f32.gmra.mrb[0].mxu0 %v497
        %v698 = vpop.f32.mrb[0].mxu0
        %v699 = vadd.f32 %v520, %v698
        %v700 = vpop.f32.mrb[0].mxu0
        %701 = vmatprep.mubr.f32.mxu0 0.0
        %702 = vmatmul.mubr.f32.gmra.mrb[0].mxu0 %v498
        %v703 = vpop.f32.mrb[0].mxu0
        %v704 = vadd.f32 %v520, %v703
        %v705 = vpop.f32.mrb[0].mxu0
        %706 = vdwg.mxu0
        %v707 = vmax.f32 %v589, 0.0
        %v708 = vmax.f32 %v594, 0.0
        %v709 = vmax.f32 %v599, 0.0
        %v710 = vmax.f32 %v604, 0.0
        %v711 = vmax.f32 %v609, 0.0
        %v712 = vmax.f32 %v614, 0.0
        %v713 = vmax.f32 %v619, 0.0
        %v714 = vmax.f32 %v624, 0.0
        %v715 = vmax.f32 %v629, 0.0
        %v716 = vmax.f32 %v634, 0.0
        %v717 = vmax.f32 %v639, 0.0
        %v718 = vmax.f32 %v644, 0.0
        %v719 = vmax.f32 %v649, 0.0
        %v720 = vmax.f32 %v654, 0.0
        %v721 = vmax.f32 %v659, 0.0
        %v722 = vmax.f32 %v664, 0.0
        %v723 = vmax.f32 %v669, 0.0
        %v724 = vmax.f32 %v674, 0.0
        %v725 = vmax.f32 %v679, 0.0
        %v726 = vmax.f32 %v684, 0.0
        %v727 = vmax.f32 %v689, 0.0
        %v728 = vmax.f32 %v694, 0.0
        %v729 = vmax.f32 %v699, 0.0
        %v730 = vmax.f32 %v704, 0.0
        %731 = vst [vmem:[#allocation2 + $0x8] sm:$0xff] %v707
        %732 = vst [vmem:[#allocation2 + $0x10] sm:$0xff] %v708
        %733 = vst [vmem:[#allocation2 + $0x28] sm:$0xff] %v709
        %734 = vst [vmem:[#allocation2 + $0x30] sm:$0xff] %v710
        %735 = vst [vmem:[#allocation2 + $0x48] sm:$0xff] %v711
        %736 = vst [vmem:[#allocation2 + $0x50] sm:$0xff] %v712
        %737 = vst [vmem:[#allocation2 + $0x68] sm:$0xff] %v713
        %738 = vst [vmem:[#allocation2 + $0x70] sm:$0xff] %v714
        %739 = vst [vmem:[#allocation2 + $0x88] sm:$0xff] %v715
        %740 = vst [vmem:[#allocation2 + $0x90] sm:$0xff] %v716
        %741 = vst [vmem:[#allocation2 + $0xa8] sm:$0xff] %v717
        %742 = vst [vmem:[#allocation2 + $0xb0] sm:$0xff] %v718
        %743 = vst [vmem:[#allocation2 + $0xc8] sm:$0xff] %v719
        %744 = vst [vmem:[#allocation2 + $0xd0] sm:$0xff] %v720
        %745 = vst [vmem:[#allocation2 + $0xe8] sm:$0xff] %v721
        %746 = vst [vmem:[#allocation2 + $0xf0] sm:$0xff] %v722
        %747 = vst [vmem:[#allocation2 + $0x108] sm:$0xff] %v723
        %748 = vst [vmem:[#allocation2 + $0x110] sm:$0xff] %v724
        %749 = vst [vmem:[#allocation2 + $0x128] sm:$0xff] %v725
        %750 = vst [vmem:[#allocation2 + $0x130] sm:$0xff] %v726
        %751 = vst [vmem:[#allocation2 + $0x148] sm:$0xff] %v727
        %752 = vst [vmem:[#allocation2 + $0x150] sm:$0xff] %v728
        %753 = vst [vmem:[#allocation2 + $0x168] sm:$0xff] %v729
        %754 = vst [vmem:[#allocation2 + $0x170] sm:$0xff] %v730
        %p755 = scmp.eq.s32.totalorder %s34, 0
        // Predicated region
        $region73: #{tpu_custom_call.1} parent=51 // pred_check
          %p756 = pneg %p755
        $region74: #{tpu_custom_call.1} parent=51 // pred_check_branch
          %758 = sbr.rel (%p756) target = $region76
        $region75: #{tpu_custom_call.1} parent=51 // pred_region
          %759 = vst [vmem:[#allocation2 + $0x8] sm:$0xff] 0.0
          %760 = vst [vmem:[#allocation2 + $0x10] sm:$0xff] 0.0
          %761 = vst [vmem:[#allocation2 + $0x28] sm:$0xff] 0.0
          %762 = vst [vmem:[#allocation2 + $0x30] sm:$0xff] 0.0
        $region76: #{tpu_custom_call.1} parent=51 // pred_fallthru
          _
        %p763 = scmp.eq.s32.totalorder %s34, 1
        // Predicated region
        $region77: #{tpu_custom_call.1} parent=51 // pred_check
          %p764 = pneg %p763
        $region78: #{tpu_custom_call.1} parent=51 // pred_check_branch
          %766 = sbr.rel (%p764) target = $region80
        $region79: #{tpu_custom_call.1} parent=51 // pred_region
          %s767 = scalar_lea.vmem [#allocation2], 320
          %768 = vst [vmem:[%s767 + $0x8] sm:$0xff] 0.0
          %769 = vst [vmem:[%s767 + $0x10] sm:$0xff] 0.0
          %770 = vst [vmem:[%s767 + $0x28] sm:$0xff] 0.0
          %771 = vst [vmem:[%s767 + $0x30] sm:$0xff] 0.0
        $region80: #{tpu_custom_call.1} parent=51 // pred_fallthru
          _
        %v772 = vld [vmem:[#allocation2 + $0x7] sm:$0xff]
        %v773 = vld [vmem:[#allocation2 + $0xf] sm:$0xff]
        %v774 = vld [vmem:[#allocation2 + $0x27] sm:$0xff]
        %v775 = vld [vmem:[#allocation2 + $0x2f] sm:$0xff]
        %v776 = vld [vmem:[#allocation2 + $0x47] sm:$0xff]
        %v777 = vld [vmem:[#allocation2 + $0x4f] sm:$0xff]
        %v778 = vld [vmem:[#allocation2 + $0x67] sm:$0xff]
        %v779 = vld [vmem:[#allocation2 + $0x6f] sm:$0xff]
        %v780 = vld [vmem:[#allocation2 + $0x87] sm:$0xff]
        %v781 = vld [vmem:[#allocation2 + $0x8f] sm:$0xff]
        %v782 = vld [vmem:[#allocation2 + $0xa7] sm:$0xff]
        %v783 = vld [vmem:[#allocation2 + $0xaf] sm:$0xff]
        %v784 = vld [vmem:[#allocation2 + $0xc7] sm:$0xff]
        %v785 = vld [vmem:[#allocation2 + $0xcf] sm:$0xff]
        %v786 = vld [vmem:[#allocation2 + $0xe7] sm:$0xff]
        %v787 = vld [vmem:[#allocation2 + $0xef] sm:$0xff]
        %v788 = vld [vmem:[#allocation2 + $0x107] sm:$0xff]
        %v789 = vld [vmem:[#allocation2 + $0x10f] sm:$0xff]
        %v790 = vld [vmem:[#allocation2 + $0x127] sm:$0xff]
        %v791 = vld [vmem:[#allocation2 + $0x12f] sm:$0xff]
        %v792 = vld [vmem:[#allocation2 + $0x8] sm:$0xff]
        %v793 = vld [vmem:[#allocation2 + $0x10] sm:$0xff]
        %v794 = vld [vmem:[#allocation2 + $0x28] sm:$0xff]
        %v795 = vld [vmem:[#allocation2 + $0x30] sm:$0xff]
        %v796 = vld [vmem:[#allocation2 + $0x48] sm:$0xff]
        %v797 = vld [vmem:[#allocation2 + $0x50] sm:$0xff]
        %v798 = vld [vmem:[#allocation2 + $0x68] sm:$0xff]
        %v799 = vld [vmem:[#allocation2 + $0x70] sm:$0xff]
        %v800 = vld [vmem:[#allocation2 + $0x88] sm:$0xff]
        %v801 = vld [vmem:[#allocation2 + $0x90] sm:$0xff]
        %v802 = vld [vmem:[#allocation2 + $0xa8] sm:$0xff]
        %v803 = vld [vmem:[#allocation2 + $0xb0] sm:$0xff]
        %v804 = vld [vmem:[#allocation2 + $0xc8] sm:$0xff]
        %v805 = vld [vmem:[#allocation2 + $0xd0] sm:$0xff]
        %v806 = vld [vmem:[#allocation2 + $0xe8] sm:$0xff]
        %v807 = vld [vmem:[#allocation2 + $0xf0] sm:$0xff]
        %v808 = vld [vmem:[#allocation2 + $0x108] sm:$0xff]
        %v809 = vld [vmem:[#allocation2 + $0x110] sm:$0xff]
        %v810 = vld [vmem:[#allocation2 + $0x128] sm:$0xff]
        %v811 = vld [vmem:[#allocation2 + $0x130] sm:$0xff]
        %v812 = vld [vmem:[#allocation2 + $0x9] sm:$0xff]
        %v813 = vld [vmem:[#allocation2 + $0x11] sm:$0xff]
        %v814 = vld [vmem:[#allocation2 + $0x29] sm:$0xff]
        %v815 = vld [vmem:[#allocation2 + $0x31] sm:$0xff]
        %v816 = vld [vmem:[#allocation2 + $0x49] sm:$0xff]
        %v817 = vld [vmem:[#allocation2 + $0x51] sm:$0xff]
        %v818 = vld [vmem:[#allocation2 + $0x69] sm:$0xff]
        %v819 = vld [vmem:[#allocation2 + $0x71] sm:$0xff]
        %v820 = vld [vmem:[#allocation2 + $0x89] sm:$0xff]
        %v821 = vld [vmem:[#allocation2 + $0x91] sm:$0xff]
        %v822 = vld [vmem:[#allocation2 + $0xa9] sm:$0xff]
        %v823 = vld [vmem:[#allocation2 + $0xb1] sm:$0xff]
        %v824 = vld [vmem:[#allocation2 + $0xc9] sm:$0xff]
        %v825 = vld [vmem:[#allocation2 + $0xd1] sm:$0xff]
        %v826 = vld [vmem:[#allocation2 + $0xe9] sm:$0xff]
        %v827 = vld [vmem:[#allocation2 + $0xf1] sm:$0xff]
        %v828 = vld [vmem:[#allocation2 + $0x109] sm:$0xff]
        %v829 = vld [vmem:[#allocation2 + $0x111] sm:$0xff]
        %v830 = vld [vmem:[#allocation2 + $0x129] sm:$0xff]
        %v831 = vld [vmem:[#allocation2 + $0x131] sm:$0xff]
        %s832 = scalar_lea.vmem [#allocation2], 32
        %v833 = vld [vmem:[%s832 + $0x7] sm:$0xff]
        %v834 = vld [vmem:[%s832 + $0xf] sm:$0xff]
        %v835 = vld [vmem:[%s832 + $0x27] sm:$0xff]
        %v836 = vld [vmem:[%s832 + $0x2f] sm:$0xff]
        %v837 = vld [vmem:[%s832 + $0x47] sm:$0xff]
        %v838 = vld [vmem:[%s832 + $0x4f] sm:$0xff]
        %v839 = vld [vmem:[%s832 + $0x67] sm:$0xff]
        %v840 = vld [vmem:[%s832 + $0x6f] sm:$0xff]
        %v841 = vld [vmem:[%s832 + $0x87] sm:$0xff]
        %v842 = vld [vmem:[%s832 + $0x8f] sm:$0xff]
        %v843 = vld [vmem:[%s832 + $0xa7] sm:$0xff]
        %v844 = vld [vmem:[%s832 + $0xaf] sm:$0xff]
        %v845 = vld [vmem:[%s832 + $0xc7] sm:$0xff]
        %v846 = vld [vmem:[%s832 + $0xcf] sm:$0xff]
        %v847 = vld [vmem:[%s832 + $0xe7] sm:$0xff]
        %v848 = vld [vmem:[%s832 + $0xef] sm:$0xff]
        %v849 = vld [vmem:[%s832 + $0x107] sm:$0xff]
        %v850 = vld [vmem:[%s832 + $0x10f] sm:$0xff]
        %v851 = vld [vmem:[%s832 + $0x127] sm:$0xff]
        %v852 = vld [vmem:[%s832 + $0x12f] sm:$0xff]
        %v853 = vld [vmem:[%s832 + $0x8] sm:$0xff]
        %v854 = vld [vmem:[%s832 + $0x10] sm:$0xff]
        %v855 = vld [vmem:[%s832 + $0x28] sm:$0xff]
        %v856 = vld [vmem:[%s832 + $0x30] sm:$0xff]
        %v857 = vld [vmem:[%s832 + $0x48] sm:$0xff]
        %v858 = vld [vmem:[%s832 + $0x50] sm:$0xff]
        %v859 = vld [vmem:[%s832 + $0x68] sm:$0xff]
        %v860 = vld [vmem:[%s832 + $0x70] sm:$0xff]
        %v861 = vld [vmem:[%s832 + $0x88] sm:$0xff]
        %v862 = vld [vmem:[%s832 + $0x90] sm:$0xff]
        %v863 = vld [vmem:[%s832 + $0xa8] sm:$0xff]
        %v864 = vld [vmem:[%s832 + $0xb0] sm:$0xff]
        %v865 = vld [vmem:[%s832 + $0xc8] sm:$0xff]
        %v866 = vld [vmem:[%s832 + $0xd0] sm:$0xff]
        %v867 = vld [vmem:[%s832 + $0xe8] sm:$0xff]
        %v868 = vld [vmem:[%s832 + $0xf0] sm:$0xff]
        %v869 = vld [vmem:[%s832 + $0x108] sm:$0xff]
        %v870 = vld [vmem:[%s832 + $0x110] sm:$0xff]
        %v871 = vld [vmem:[%s832 + $0x128] sm:$0xff]
        %v872 = vld [vmem:[%s832 + $0x130] sm:$0xff]
        %v873 = vld [vmem:[%s832 + $0x9] sm:$0xff]
        %v874 = vld [vmem:[%s832 + $0x11] sm:$0xff]
        %v875 = vld [vmem:[%s832 + $0x29] sm:$0xff]
        %v876 = vld [vmem:[%s832 + $0x31] sm:$0xff]
        %v877 = vld [vmem:[%s832 + $0x49] sm:$0xff]
        %v878 = vld [vmem:[%s832 + $0x51] sm:$0xff]
        %v879 = vld [vmem:[%s832 + $0x69] sm:$0xff]
        %v880 = vld [vmem:[%s832 + $0x71] sm:$0xff]
        %v881 = vld [vmem:[%s832 + $0x89] sm:$0xff]
        %v882 = vld [vmem:[%s832 + $0x91] sm:$0xff]
        %v883 = vld [vmem:[%s832 + $0xa9] sm:$0xff]
        %v884 = vld [vmem:[%s832 + $0xb1] sm:$0xff]
        %v885 = vld [vmem:[%s832 + $0xc9] sm:$0xff]
        %v886 = vld [vmem:[%s832 + $0xd1] sm:$0xff]
        %v887 = vld [vmem:[%s832 + $0xe9] sm:$0xff]
        %v888 = vld [vmem:[%s832 + $0xf1] sm:$0xff]
        %v889 = vld [vmem:[%s832 + $0x109] sm:$0xff]
        %v890 = vld [vmem:[%s832 + $0x111] sm:$0xff]
        %v891 = vld [vmem:[%s832 + $0x129] sm:$0xff]
        %v892 = vld [vmem:[%s832 + $0x131] sm:$0xff]
        %s893 = scalar_lea.vmem [#allocation2], 64
        %v894 = vld [vmem:[%s893 + $0x7] sm:$0xff]
        %v895 = vld [vmem:[%s893 + $0xf] sm:$0xff]
        %v896 = vld [vmem:[%s893 + $0x27] sm:$0xff]
        %v897 = vld [vmem:[%s893 + $0x2f] sm:$0xff]
        %v898 = vld [vmem:[%s893 + $0x47] sm:$0xff]
        %v899 = vld [vmem:[%s893 + $0x4f] sm:$0xff]
        %v900 = vld [vmem:[%s893 + $0x67] sm:$0xff]
        %v901 = vld [vmem:[%s893 + $0x6f] sm:$0xff]
        %v902 = vld [vmem:[%s893 + $0x87] sm:$0xff]
        %v903 = vld [vmem:[%s893 + $0x8f] sm:$0xff]
        %v904 = vld [vmem:[%s893 + $0xa7] sm:$0xff]
        %v905 = vld [vmem:[%s893 + $0xaf] sm:$0xff]
        %v906 = vld [vmem:[%s893 + $0xc7] sm:$0xff]
        %v907 = vld [vmem:[%s893 + $0xcf] sm:$0xff]
        %v908 = vld [vmem:[%s893 + $0xe7] sm:$0xff]
        %v909 = vld [vmem:[%s893 + $0xef] sm:$0xff]
        %v910 = vld [vmem:[%s893 + $0x107] sm:$0xff]
        %v911 = vld [vmem:[%s893 + $0x10f] sm:$0xff]
        %v912 = vld [vmem:[%s893 + $0x127] sm:$0xff]
        %v913 = vld [vmem:[%s893 + $0x12f] sm:$0xff]
        %v914 = vld [vmem:[%s893 + $0x8] sm:$0xff]
        %v915 = vld [vmem:[%s893 + $0x10] sm:$0xff]
        %v916 = vld [vmem:[%s893 + $0x28] sm:$0xff]
        %v917 = vld [vmem:[%s893 + $0x30] sm:$0xff]
        %v918 = vld [vmem:[%s893 + $0x48] sm:$0xff]
        %v919 = vld [vmem:[%s893 + $0x50] sm:$0xff]
        %v920 = vld [vmem:[%s893 + $0x68] sm:$0xff]
        %v921 = vld [vmem:[%s893 + $0x70] sm:$0xff]
        %v922 = vld [vmem:[%s893 + $0x88] sm:$0xff]
        %v923 = vld [vmem:[%s893 + $0x90] sm:$0xff]
        %v924 = vld [vmem:[%s893 + $0xa8] sm:$0xff]
        %v925 = vld [vmem:[%s893 + $0xb0] sm:$0xff]
        %v926 = vld [vmem:[%s893 + $0xc8] sm:$0xff]
        %v927 = vld [vmem:[%s893 + $0xd0] sm:$0xff]
        %v928 = vld [vmem:[%s893 + $0xe8] sm:$0xff]
        %v929 = vld [vmem:[%s893 + $0xf0] sm:$0xff]
        %v930 = vld [vmem:[%s893 + $0x108] sm:$0xff]
        %v931 = vld [vmem:[%s893 + $0x110] sm:$0xff]
        %v932 = vld [vmem:[%s893 + $0x128] sm:$0xff]
        %v933 = vld [vmem:[%s893 + $0x130] sm:$0xff]
        %v934 = vld [vmem:[%s893 + $0x9] sm:$0xff]
        %v935 = vld [vmem:[%s893 + $0x11] sm:$0xff]
        %v936 = vld [vmem:[%s893 + $0x29] sm:$0xff]
        %v937 = vld [vmem:[%s893 + $0x31] sm:$0xff]
        %v938 = vld [vmem:[%s893 + $0x49] sm:$0xff]
        %v939 = vld [vmem:[%s893 + $0x51] sm:$0xff]
        %v940 = vld [vmem:[%s893 + $0x69] sm:$0xff]
        %v941 = vld [vmem:[%s893 + $0x71] sm:$0xff]
        %v942 = vld [vmem:[%s893 + $0x89] sm:$0xff]
        %v943 = vld [vmem:[%s893 + $0x91] sm:$0xff]
        %v944 = vld [vmem:[%s893 + $0xa9] sm:$0xff]
        %v945 = vld [vmem:[%s893 + $0xb1] sm:$0xff]
        %v946 = vld [vmem:[%s893 + $0xc9] sm:$0xff]
        %v947 = vld [vmem:[%s893 + $0xd1] sm:$0xff]
        %v948 = vld [vmem:[%s893 + $0xe9] sm:$0xff]
        %v949 = vld [vmem:[%s893 + $0xf1] sm:$0xff]
        %v950 = vld [vmem:[%s893 + $0x109] sm:$0xff]
        %v951 = vld [vmem:[%s893 + $0x111] sm:$0xff]
        %v952 = vld [vmem:[%s893 + $0x129] sm:$0xff]
        %v953 = vld [vmem:[%s893 + $0x131] sm:$0xff]
        %v954 = vld [vmem:[#allocation10] sm:$0xff]
        %v955 = vld [vmem:[#allocation10 + $0x8] sm:$0xff]
        %v956 = vld [vmem:[#allocation10 + $0x10] sm:$0xff]
        %v957 = vld [vmem:[#allocation10 + $0x18] sm:$0xff]
        %v958 = vld [vmem:[#allocation10 + $0x20] sm:$0xff]
        %v959 = vld [vmem:[#allocation10 + $0x28] sm:$0xff]
        %v960 = vld [vmem:[#allocation10 + $0x30] sm:$0xff]
        %v961 = vld [vmem:[#allocation10 + $0x38] sm:$0xff]
        %v962 = vld [vmem:[#allocation10 + $0x40] sm:$0xff]
        %v963 = vld [vmem:[#allocation10 + $0x48] sm:$0xff]
        %v964 = vld [vmem:[#allocation10 + $0x50] sm:$0xff]
        %v965 = vld [vmem:[#allocation10 + $0x58] sm:$0xff]
        %v966 = vld [vmem:[#allocation10 + $0x60] sm:$0xff]
        %v967 = vld [vmem:[#allocation10 + $0x68] sm:$0xff]
        %v968 = vld [vmem:[#allocation10 + $0x70] sm:$0xff]
        %v969 = vld [vmem:[#allocation10 + $0x78] sm:$0xff]
        %v970 = vld [vmem:[#allocation10 + $0x80] sm:$0xff]
        %v971 = vld [vmem:[#allocation10 + $0x88] sm:$0xff]
        %v972 = vld [vmem:[#allocation10 + $0x90] sm:$0xff]
        %v973 = vld [vmem:[#allocation10 + $0x98] sm:$0xff]
        %v974 = vld [vmem:[#allocation10 + $0xa0] sm:$0xff]
        %v975 = vld [vmem:[#allocation10 + $0xa8] sm:$0xff]
        %v976 = vld [vmem:[#allocation10 + $0xb0] sm:$0xff]
        %v977 = vld [vmem:[#allocation10 + $0xb8] sm:$0xff]
        %v978 = vld [vmem:[#allocation10 + $0xc0] sm:$0xff]
        %v979 = vld [vmem:[#allocation10 + $0xc8] sm:$0xff]
        %v980 = vld [vmem:[#allocation10 + $0xd0] sm:$0xff]
        %v981 = vld [vmem:[#allocation10 + $0xd8] sm:$0xff]
        %v982 = vld [vmem:[#allocation10 + $0xe0] sm:$0xff]
        %v983 = vld [vmem:[#allocation10 + $0xe8] sm:$0xff]
        %v984 = vld [vmem:[#allocation10 + $0xf0] sm:$0xff]
        %v985 = vld [vmem:[#allocation10 + $0xf8] sm:$0xff]
        %v986 = vld [vmem:[#allocation10 + $0x100] sm:$0xff]
        %v987 = vld [vmem:[#allocation10 + $0x108] sm:$0xff]
        %v988 = vld [vmem:[#allocation10 + $0x110] sm:$0xff]
        %v989 = vld [vmem:[#allocation10 + $0x118] sm:$0xff]
        %v990 = vld [vmem:[#allocation10 + $0x120] sm:$0xff]
        %v991 = vld [vmem:[#allocation10 + $0x128] sm:$0xff]
        %v992 = vld [vmem:[#allocation10 + $0x130] sm:$0xff]
        %v993 = vld [vmem:[#allocation10 + $0x138] sm:$0xff]
        %v994 = vld [vmem:[#allocation10 + $0x140] sm:$0xff]
        %v995 = vld [vmem:[#allocation10 + $0x148] sm:$0xff]
        %v996 = vld [vmem:[#allocation10 + $0x150] sm:$0xff]
        %v997 = vld [vmem:[#allocation10 + $0x158] sm:$0xff]
        %v998 = vld [vmem:[#allocation10 + $0x160] sm:$0xff]
        %v999 = vld [vmem:[#allocation10 + $0x168] sm:$0xff]
        %v1000 = vld [vmem:[#allocation10 + $0x170] sm:$0xff]
        %v1001 = vld [vmem:[#allocation10 + $0x178] sm:$0xff]
        %v1002 = vld [vmem:[#allocation10 + $0x180] sm:$0xff]
        %v1003 = vld [vmem:[#allocation10 + $0x188] sm:$0xff]
        %v1004 = vld [vmem:[#allocation10 + $0x190] sm:$0xff]
        %v1005 = vld [vmem:[#allocation10 + $0x198] sm:$0xff]
        %v1006 = vld [vmem:[#allocation10 + $0x1a0] sm:$0xff]
        %v1007 = vld [vmem:[#allocation10 + $0x1a8] sm:$0xff]
        %v1008 = vld [vmem:[#allocation10 + $0x1b0] sm:$0xff]
        %v1009 = vld [vmem:[#allocation10 + $0x1b8] sm:$0xff]
        %v1010 = vld [vmem:[#allocation10 + $0x1c0] sm:$0xff]
        %v1011 = vld [vmem:[#allocation10 + $0x1c8] sm:$0xff]
        %v1012 = vld [vmem:[#allocation10 + $0x1d0] sm:$0xff]
        %v1013 = vld [vmem:[#allocation10 + $0x1d8] sm:$0xff]
        %v1014 = vld [vmem:[#allocation10 + $0x1e0] sm:$0xff]
        %v1015 = vld [vmem:[#allocation10 + $0x1e8] sm:$0xff]
        %v1016 = vld [vmem:[#allocation10 + $0x1f0] sm:$0xff]
        %v1017 = vld [vmem:[#allocation10 + $0x1f8] sm:$0xff]
        %v1018 = vld [vmem:[#allocation10 + $0x200] sm:$0xff]
        %v1019 = vld [vmem:[#allocation10 + $0x208] sm:$0xff]
        %v1020 = vld [vmem:[#allocation10 + $0x210] sm:$0xff]
        %v1021 = vld [vmem:[#allocation10 + $0x218] sm:$0xff]
        %v1022 = vld [vmem:[#allocation10 + $0x220] sm:$0xff]
        %v1023 = vld [vmem:[#allocation10 + $0x228] sm:$0xff]
        %v1024 = vld [vmem:[#allocation10 + $0x230] sm:$0xff]
        %v1025 = vld [vmem:[#allocation10 + $0x238] sm:$0xff]
        %v1026 = vld [vmem:[#allocation10 + $0x240] sm:$0xff]
        %v1027 = vld [vmem:[#allocation10 + $0x248] sm:$0xff]
        %v1028 = vld [vmem:[#allocation10 + $0x250] sm:$0xff]
        %v1029 = vld [vmem:[#allocation10 + $0x258] sm:$0xff]
        %v1030 = vld [vmem:[#allocation10 + $0x260] sm:$0xff]
        %v1031 = vld [vmem:[#allocation10 + $0x268] sm:$0xff]
        %v1032 = vld [vmem:[#allocation10 + $0x270] sm:$0xff]
        %v1033 = vld [vmem:[#allocation10 + $0x278] sm:$0xff]
        %v1034 = vld [vmem:[#allocation10 + $0x280] sm:$0xff]
        %v1035 = vld [vmem:[#allocation10 + $0x288] sm:$0xff]
        %v1036 = vld [vmem:[#allocation10 + $0x290] sm:$0xff]
        %v1037 = vld [vmem:[#allocation10 + $0x298] sm:$0xff]
        %v1038 = vld [vmem:[#allocation10 + $0x2a0] sm:$0xff]
        %v1039 = vld [vmem:[#allocation10 + $0x2a8] sm:$0xff]
        %v1040 = vld [vmem:[#allocation10 + $0x2b0] sm:$0xff]
        %v1041 = vld [vmem:[#allocation10 + $0x2b8] sm:$0xff]
        %v1042 = vld [vmem:[#allocation10 + $0x2c0] sm:$0xff]
        %v1043 = vld [vmem:[#allocation10 + $0x2c8] sm:$0xff]
        %v1044 = vld [vmem:[#allocation10 + $0x2d0] sm:$0xff]
        %v1045 = vld [vmem:[#allocation10 + $0x2d8] sm:$0xff]
        %v1046 = vld [vmem:[#allocation10 + $0x2e0] sm:$0xff]
        %v1047 = vld [vmem:[#allocation10 + $0x2e8] sm:$0xff]
        %v1048 = vld [vmem:[#allocation10 + $0x2f0] sm:$0xff]
        %v1049 = vld [vmem:[#allocation10 + $0x2f8] sm:$0xff]
        %v1050 = vld [vmem:[#allocation10 + $0x300] sm:$0xff]
        %v1051 = vld [vmem:[#allocation10 + $0x308] sm:$0xff]
        %v1052 = vld [vmem:[#allocation10 + $0x310] sm:$0xff]
        %v1053 = vld [vmem:[#allocation10 + $0x318] sm:$0xff]
        %v1054 = vld [vmem:[#allocation10 + $0x320] sm:$0xff]
        %v1055 = vld [vmem:[#allocation10 + $0x328] sm:$0xff]
        %v1056 = vld [vmem:[#allocation10 + $0x330] sm:$0xff]
        %v1057 = vld [vmem:[#allocation10 + $0x338] sm:$0xff]
        %v1058 = vld [vmem:[#allocation10 + $0x340] sm:$0xff]
        %v1059 = vld [vmem:[#allocation10 + $0x348] sm:$0xff]
        %v1060 = vld [vmem:[#allocation10 + $0x350] sm:$0xff]
        %v1061 = vld [vmem:[#allocation10 + $0x358] sm:$0xff]
        %v1062 = vld [vmem:[#allocation10 + $0x360] sm:$0xff]
        %v1063 = vld [vmem:[#allocation10 + $0x368] sm:$0xff]
        %v1064 = vld [vmem:[#allocation10 + $0x370] sm:$0xff]
        %v1065 = vld [vmem:[#allocation10 + $0x378] sm:$0xff]
        %v1066 = vld [vmem:[#allocation10 + $0x380] sm:$0xff]
        %v1067 = vld [vmem:[#allocation10 + $0x388] sm:$0xff]
        %v1068 = vld [vmem:[#allocation10 + $0x390] sm:$0xff]
        %v1069 = vld [vmem:[#allocation10 + $0x398] sm:$0xff]
        %v1070 = vld [vmem:[#allocation10 + $0x3a0] sm:$0xff]
        %v1071 = vld [vmem:[#allocation10 + $0x3a8] sm:$0xff]
        %v1072 = vld [vmem:[#allocation10 + $0x3b0] sm:$0xff]
        %v1073 = vld [vmem:[#allocation10 + $0x3b8] sm:$0xff]
        %v1074 = vld [vmem:[#allocation10 + $0x3c0] sm:$0xff]
        %v1075 = vld [vmem:[#allocation10 + $0x3c8] sm:$0xff]
        %v1076 = vld [vmem:[#allocation10 + $0x3d0] sm:$0xff]
        %v1077 = vld [vmem:[#allocation10 + $0x3d8] sm:$0xff]
        %v1078 = vld [vmem:[#allocation10 + $0x3e0] sm:$0xff]
        %v1079 = vld [vmem:[#allocation10 + $0x3e8] sm:$0xff]
        %v1080 = vld [vmem:[#allocation10 + $0x3f0] sm:$0xff]
        %v1081 = vld [vmem:[#allocation10 + $0x3f8] sm:$0xff]
        %v1082 = vld [vmem:[#allocation10 + $0x400] sm:$0xff]
        %v1083 = vld [vmem:[#allocation10 + $0x408] sm:$0xff]
        %v1084 = vld [vmem:[#allocation10 + $0x410] sm:$0xff]
        %v1085 = vld [vmem:[#allocation10 + $0x418] sm:$0xff]
        %v1086 = vld [vmem:[#allocation10 + $0x420] sm:$0xff]
        %v1087 = vld [vmem:[#allocation10 + $0x428] sm:$0xff]
        %v1088 = vld [vmem:[#allocation10 + $0x430] sm:$0xff]
        %v1089 = vld [vmem:[#allocation10 + $0x438] sm:$0xff]
        %v1090 = vld [vmem:[#allocation10 + $0x440] sm:$0xff]
        %v1091 = vld [vmem:[#allocation10 + $0x448] sm:$0xff]
        %v1092 = vld [vmem:[#allocation10 + $0x450] sm:$0xff]
        %v1093 = vld [vmem:[#allocation10 + $0x458] sm:$0xff]
        %v1094 = vld [vmem:[#allocation10 + $0x460] sm:$0xff]
        %v1095 = vld [vmem:[#allocation10 + $0x468] sm:$0xff]
        %v1096 = vld [vmem:[#allocation10 + $0x470] sm:$0xff]
        %v1097 = vld [vmem:[#allocation10 + $0x478] sm:$0xff]
        %v1098 = vld [vmem:[%s5] sm:$0x1]
        %v1100 = vlaneseq
        %v1101 = vshrl.u32 %v1100, 7
        %v1102 = vsub.s32 0, %v1101
        %v1103 = vrot.slane %v1098, %v1102
        %1105 = vmatprep.subr.mxu0 0.0
        %1106 = vmatpush1.msra.mxu0 %v954
        %1107 = vmatprep.subr.mxu0 0.0
        %1108 = vmatpush1.msra.mxu0 %v955
        %1109 = vmatprep.subr.mxu0 0.0
        %1110 = vmatpush1.msra.mxu0 %v956
        %1111 = vmatprep.subr.mxu0 0.0
        %1112 = vmatpush1.msra.mxu0 %v957
        %1113 = vmatprep.subr.mxu0 0.0
        %1114 = vmatpush1.msra.mxu0 %v958
        %1115 = vmatprep.subr.mxu0 0.0
        %1116 = vmatpush1.msra.mxu0 %v959
        %1117 = vmatprep.subr.mxu0 0.0
        %1118 = vmatpush1.msra.mxu0 %v960
        %1119 = vmatprep.subr.mxu0 0.0
        %1120 = vmatpush1.msra.mxu0 %v961
        %1121 = vmatprep.subr.mxu0 0.0
        %1122 = vmatpush1.msra.mxu0 %v962
        %1123 = vmatprep.subr.mxu0 0.0
        %1124 = vmatpush1.msra.mxu0 %v963
        %1125 = vmatprep.subr.mxu0 0.0
        %1126 = vmatpush1.msra.mxu0 %v964
        %1127 = vmatprep.subr.mxu0 0.0
        %1128 = vmatpush1.msra.mxu0 %v965
        %1129 = vmatprep.subr.mxu0 0.0
        %1130 = vmatpush1.msra.mxu0 %v966
        %1131 = vmatprep.subr.mxu0 0.0
        %1132 = vmatpush1.msra.mxu0 %v967
        %1133 = vmatprep.subr.mxu0 0.0
        %1134 = vmatpush1.msra.mxu0 %v968
        %1135 = vmatprep.subr.mxu0 0.0
        %1136 = vmatpush1.msra.mxu0 %v969
        %1137 = vmatprep.subr.mxu0 0.0
        %1138 = vmatpush1.msra.mxu0 %v970
        %1139 = vmatprep.subr.mxu0 0.0
        %1140 = vmatpush1.msra.mxu0 %v971
        %1141 = vmatprep.subr.mxu0 0.0
        %1142 = vmatpush1.msra.mxu0 %v972
        %1143 = vmatprep.subr.mxu0 0.0
        %1144 = vmatpush1.msra.mxu0 %v973
        %1145 = vmatprep.subr.mxu0 0.0
        %1146 = vmatpush1.msra.mxu0 %v974
        %1147 = vmatprep.subr.mxu0 0.0
        %1148 = vmatpush1.msra.mxu0 %v975
        %1149 = vmatprep.subr.mxu0 0.0
        %1150 = vmatpush1.msra.mxu0 %v976
        %1151 = vmatprep.subr.mxu0 0.0
        %1152 = vmatpush1.msra.mxu0 %v977
        %1153 = vmatprep.subr.mxu0 0.0
        %1154 = vmatpush1.msra.mxu0 %v978
        %1155 = vmatprep.subr.mxu0 0.0
        %1156 = vmatpush1.msra.mxu0 %v979
        %1157 = vmatprep.subr.mxu0 0.0
        %1158 = vmatpush1.msra.mxu0 %v980
        %1159 = vmatprep.subr.mxu0 0.0
        %1160 = vmatpush1.msra.mxu0 %v981
        %1161 = vmatprep.subr.mxu0 0.0
        %1162 = vmatpush1.msra.mxu0 %v982
        %1163 = vmatprep.subr.mxu0 0.0
        %1164 = vmatpush1.msra.mxu0 %v983
        %1165 = vmatprep.subr.mxu0 0.0
        %1166 = vmatpush1.msra.mxu0 %v984
        %1167 = vmatprep.subr.mxu0 0.0
        %1168 = vmatpush1.msra.mxu0 %v985
        %1169 = vmatprep.mubr.f32.mxu0 %v792
        %1170 = vmatmul.mubr.f32.gmra.mrb[0].mxu0 %v772
        %v1171 = vpop.f32.mrb[0].mxu0
        %v1172 = vadd.f32 %v1103, %v1171
        %v1173 = vpop.f32.mrb[0].mxu0
        %1174 = vmatprep.mubr.f32.mxu0 %v793
        %1175 = vmatmul.mubr.f32.gmra.mrb[0].mxu0 %v773
        %v1176 = vpop.f32.mrb[0].mxu0
        %v1177 = vadd.f32 %v1103, %v1176
        %v1178 = vpop.f32.mrb[0].mxu0
        %1179 = vmatprep.mubr.f32.mxu0 %v794
        %1180 = vmatmul.mubr.f32.gmra.mrb[0].mxu0 %v774
        %v1181 = vpop.f32.mrb[0].mxu0
        %v1182 = vadd.f32 %v1103, %v1181
        %v1183 = vpop.f32.mrb[0].mxu0
        %1184 = vmatprep.mubr.f32.mxu0 %v795
        %1185 = vmatmul.mubr.f32.gmra.mrb[0].mxu0 %v775
        %v1186 = vpop.f32.mrb[0].mxu0
        %v1187 = vadd.f32 %v1103, %v1186
        %v1188 = vpop.f32.mrb[0].mxu0
        %1189 = vmatprep.mubr.f32.mxu0 %v796
        %1190 = vmatmul.mubr.f32.gmra.mrb[0].mxu0 %v776
        %v1191 = vpop.f32.mrb[0].mxu0
        %v1192 = vadd.f32 %v1103, %v1191
        %v1193 = vpop.f32.mrb[0].mxu0
        %1194 = vmatprep.mubr.f32.mxu0 %v797
        %1195 = vmatmul.mubr.f32.gmra.mrb[0].mxu0 %v777
        %v1196 = vpop.f32.mrb[0].mxu0
        %v1197 = vadd.f32 %v1103, %v1196
        %v1198 = vpop.f32.mrb[0].mxu0
        %1199 = vmatprep.mubr.f32.mxu0 %v798
        %1200 = vmatmul.mubr.f32.gmra.mrb[0].mxu0 %v778
        %v1201 = vpop.f32.mrb[0].mxu0
        %v1202 = vadd.f32 %v1103, %v1201
        %v1203 = vpop.f32.mrb[0].mxu0
        %1204 = vmatprep.mubr.f32.mxu0 %v799
        %1205 = vmatmul.mubr.f32.gmra.mrb[0].mxu0 %v779
        %v1206 = vpop.f32.mrb[0].mxu0
        %v1207 = vadd.f32 %v1103, %v1206
        %v1208 = vpop.f32.mrb[0].mxu0
        %1209 = vmatprep.mubr.f32.mxu0 %v800
        %1210 = vmatmul.mubr.f32.gmra.mrb[0].mxu0 %v780
        %v1211 = vpop.f32.mrb[0].mxu0
        %v1212 = vadd.f32 %v1103, %v1211
        %v1213 = vpop.f32.mrb[0].mxu0
        %1214 = vmatprep.mubr.f32.mxu0 %v801
        %1215 = vmatmul.mubr.f32.gmra.mrb[0].mxu0 %v781
        %v1216 = vpop.f32.mrb[0].mxu0
        %v1217 = vadd.f32 %v1103, %v1216
        %v1218 = vpop.f32.mrb[0].mxu0
        %1219 = vmatprep.mubr.f32.mxu0 %v802
        %1220 = vmatmul.mubr.f32.gmra.mrb[0].mxu0 %v782
        %v1221 = vpop.f32.mrb[0].mxu0
        %v1222 = vadd.f32 %v1103, %v1221
        %v1223 = vpop.f32.mrb[0].mxu0
        %1224 = vmatprep.mubr.f32.mxu0 %v803
        %1225 = vmatmul.mubr.f32.gmra.mrb[0].mxu0 %v783
        %v1226 = vpop.f32.mrb[0].mxu0
        %v1227 = vadd.f32 %v1103, %v1226
        %v1228 = vpop.f32.mrb[0].mxu0
        %1229 = vmatprep.mubr.f32.mxu0 %v804
        %1230 = vmatmul.mubr.f32.gmra.mrb[0].mxu0 %v784
        %v1231 = vpop.f32.mrb[0].mxu0
        %v1232 = vadd.f32 %v1103, %v1231
        %v1233 = vpop.f32.mrb[0].mxu0
        %1234 = vmatprep.mubr.f32.mxu0 %v805
        %1235 = vmatmul.mubr.f32.gmra.mrb[0].mxu0 %v785
        %v1236 = vpop.f32.mrb[0].mxu0
        %v1237 = vadd.f32 %v1103, %v1236
        %v1238 = vpop.f32.mrb[0].mxu0
        %1239 = vmatprep.mubr.f32.mxu0 %v806
        %1240 = vmatmul.mubr.f32.gmra.mrb[0].mxu0 %v786
        %v1241 = vpop.f32.mrb[0].mxu0
        %v1242 = vadd.f32 %v1103, %v1241
        %v1243 = vpop.f32.mrb[0].mxu0
        %1244 = vmatprep.mubr.f32.mxu0 %v807
        %1245 = vmatmul.mubr.f32.gmra.mrb[0].mxu0 %v787
        %v1246 = vpop.f32.mrb[0].mxu0
        %v1247 = vadd.f32 %v1103, %v1246
        %v1248 = vpop.f32.mrb[0].mxu0
        %1249 = vmatprep.mubr.f32.mxu0 %v808
        %1250 = vmatmul.mubr.f32.gmra.mrb[0].mxu0 %v788
        %v1251 = vpop.f32.mrb[0].mxu0
        %v1252 = vadd.f32 %v1103, %v1251
        %v1253 = vpop.f32.mrb[0].mxu0
        %1254 = vmatprep.mubr.f32.mxu0 %v809
        %1255 = vmatmul.mubr.f32.gmra.mrb[0].mxu0 %v789
        %v1256 = vpop.f32.mrb[0].mxu0
        %v1257 = vadd.f32 %v1103, %v1256
        %v1258 = vpop.f32.mrb[0].mxu0
        %1259 = vmatprep.mubr.f32.mxu0 %v810
        %1260 = vmatmul.mubr.f32.gmra.mrb[0].mxu0 %v790
        %v1261 = vpop.f32.mrb[0].mxu0
        %v1262 = vadd.f32 %v1103, %v1261
        %v1263 = vpop.f32.mrb[0].mxu0
        %1264 = vmatprep.mubr.f32.mxu0 %v811
        %1265 = vmatmul.mubr.f32.gmra.mrb[0].mxu0 %v791
        %v1266 = vpop.f32.mrb[0].mxu0
        %v1267 = vadd.f32 %v1103, %v1266
        %v1268 = vpop.f32.mrb[0].mxu0
        %1269 = vdwg.mxu0
        %1270 = vmatprep.subr.mxu0 0.0
        %1271 = vmatpush1.msra.mxu0 %v986
        %1272 = vmatprep.subr.mxu0 0.0
        %1273 = vmatpush1.msra.mxu0 %v987
        %1274 = vmatprep.subr.mxu0 0.0
        %1275 = vmatpush1.msra.mxu0 %v988
        %1276 = vmatprep.subr.mxu0 0.0
        %1277 = vmatpush1.msra.mxu0 %v989
        %1278 = vmatprep.subr.mxu0 0.0
        %1279 = vmatpush1.msra.mxu0 %v990
        %1280 = vmatprep.subr.mxu0 0.0
        %1281 = vmatpush1.msra.mxu0 %v991
        %1282 = vmatprep.subr.mxu0 0.0
        %1283 = vmatpush1.msra.mxu0 %v992
        %1284 = vmatprep.subr.mxu0 0.0
        %1285 = vmatpush1.msra.mxu0 %v993
        %1286 = vmatprep.subr.mxu0 0.0
        %1287 = vmatpush1.msra.mxu0 %v994
        %1288 = vmatprep.subr.mxu0 0.0
        %1289 = vmatpush1.msra.mxu0 %v995
        %1290 = vmatprep.subr.mxu0 0.0
        %1291 = vmatpush1.msra.mxu0 %v996
        %1292 = vmatprep.subr.mxu0 0.0
        %1293 = vmatpush1.msra.mxu0 %v997
        %1294 = vmatprep.subr.mxu0 0.0
        %1295 = vmatpush1.msra.mxu0 %v998
        %1296 = vmatprep.subr.mxu0 0.0
        %1297 = vmatpush1.msra.mxu0 %v999
        %1298 = vmatprep.subr.mxu0 0.0
        %1299 = vmatpush1.msra.mxu0 %v1000
        %1300 = vmatprep.subr.mxu0 0.0
        %1301 = vmatpush1.msra.mxu0 %v1001
        %1302 = vmatprep.subr.mxu0 0.0
        %1303 = vmatpush1.msra.mxu0 %v1002
        %1304 = vmatprep.subr.mxu0 0.0
        %1305 = vmatpush1.msra.mxu0 %v1003
        %1306 = vmatprep.subr.mxu0 0.0
        %1307 = vmatpush1.msra.mxu0 %v1004
        %1308 = vmatprep.subr.mxu0 0.0
        %1309 = vmatpush1.msra.mxu0 %v1005
        %1310 = vmatprep.subr.mxu0 0.0
        %1311 = vmatpush1.msra.mxu0 %v1006
        %1312 = vmatprep.subr.mxu0 0.0
        %1313 = vmatpush1.msra.mxu0 %v1007
        %1314 = vmatprep.subr.mxu0 0.0
        %1315 = vmatpush1.msra.mxu0 %v1008
        %1316 = vmatprep.subr.mxu0 0.0
        %1317 = vmatpush1.msra.mxu0 %v1009
        %1318 = vmatprep.subr.mxu0 0.0
        %1319 = vmatpush1.msra.mxu0 %v1010
        %1320 = vmatprep.subr.mxu0 0.0
        %1321 = vmatpush1.msra.mxu0 %v1011
        %1322 = vmatprep.subr.mxu0 0.0
        %1323 = vmatpush1.msra.mxu0 %v1012
        %1324 = vmatprep.subr.mxu0 0.0
        %1325 = vmatpush1.msra.mxu0 %v1013
        %1326 = vmatprep.subr.mxu0 0.0
        %1327 = vmatpush1.msra.mxu0 %v1014
        %1328 = vmatprep.subr.mxu0 0.0
        %1329 = vmatpush1.msra.mxu0 %v1015
        %1330 = vmatprep.subr.mxu0 0.0
        %1331 = vmatpush1.msra.mxu0 %v1016
        %1332 = vmatprep.subr.mxu0 0.0
        %1333 = vmatpush1.msra.mxu0 %v1017
        %1334 = vmatprep.mubr.f32.mxu0 %v833
        %1335 = vmatmul.mubr.f32.gmra.mrb[0].mxu0 %v812
        %v1336 = vpop.f32.mrb[0].mxu0
        %v1337 = vadd.f32 %v1172, %v1336
        %v1338 = vpop.f32.mrb[0].mxu0
        %1339 = vmatprep.mubr.f32.mxu0 %v834
        %1340 = vmatmul.mubr.f32.gmra.mrb[0].mxu0 %v813
        %v1341 = vpop.f32.mrb[0].mxu0
        %v1342 = vadd.f32 %v1177, %v1341
        %v1343 = vpop.f32.mrb[0].mxu0
        %1344 = vmatprep.mubr.f32.mxu0 %v835
        %1345 = vmatmul.mubr.f32.gmra.mrb[0].mxu0 %v814
        %v1346 = vpop.f32.mrb[0].mxu0
        %v1347 = vadd.f32 %v1182, %v1346
        %v1348 = vpop.f32.mrb[0].mxu0
        %1349 = vmatprep.mubr.f32.mxu0 %v836
        %1350 = vmatmul.mubr.f32.gmra.mrb[0].mxu0 %v815
        %v1351 = vpop.f32.mrb[0].mxu0
        %v1352 = vadd.f32 %v1187, %v1351
        %v1353 = vpop.f32.mrb[0].mxu0
        %1354 = vmatprep.mubr.f32.mxu0 %v837
        %1355 = vmatmul.mubr.f32.gmra.mrb[0].mxu0 %v816
        %v1356 = vpop.f32.mrb[0].mxu0
        %v1357 = vadd.f32 %v1192, %v1356
        %v1358 = vpop.f32.mrb[0].mxu0
        %1359 = vmatprep.mubr.f32.mxu0 %v838
        %1360 = vmatmul.mubr.f32.gmra.mrb[0].mxu0 %v817
        %v1361 = vpop.f32.mrb[0].mxu0
        %v1362 = vadd.f32 %v1197, %v1361
        %v1363 = vpop.f32.mrb[0].mxu0
        %1364 = vmatprep.mubr.f32.mxu0 %v839
        %1365 = vmatmul.mubr.f32.gmra.mrb[0].mxu0 %v818
        %v1366 = vpop.f32.mrb[0].mxu0
        %v1367 = vadd.f32 %v1202, %v1366
        %v1368 = vpop.f32.mrb[0].mxu0
        %1369 = vmatprep.mubr.f32.mxu0 %v840
        %1370 = vmatmul.mubr.f32.gmra.mrb[0].mxu0 %v819
        %v1371 = vpop.f32.mrb[0].mxu0
        %v1372 = vadd.f32 %v1207, %v1371
        %v1373 = vpop.f32.mrb[0].mxu0
        %1374 = vmatprep.mubr.f32.mxu0 %v841
        %1375 = vmatmul.mubr.f32.gmra.mrb[0].mxu0 %v820
        %v1376 = vpop.f32.mrb[0].mxu0
        %v1377 = vadd.f32 %v1212, %v1376
        %v1378 = vpop.f32.mrb[0].mxu0
        %1379 = vmatprep.mubr.f32.mxu0 %v842
        %1380 = vmatmul.mubr.f32.gmra.mrb[0].mxu0 %v821
        %v1381 = vpop.f32.mrb[0].mxu0
        %v1382 = vadd.f32 %v1217, %v1381
        %v1383 = vpop.f32.mrb[0].mxu0
        %1384 = vmatprep.mubr.f32.mxu0 %v843
        %1385 = vmatmul.mubr.f32.gmra.mrb[0].mxu0 %v822
        %v1386 = vpop.f32.mrb[0].mxu0
        %v1387 = vadd.f32 %v1222, %v1386
        %v1388 = vpop.f32.mrb[0].mxu0
        %1389 = vmatprep.mubr.f32.mxu0 %v844
        %1390 = vmatmul.mubr.f32.gmra.mrb[0].mxu0 %v823
        %v1391 = vpop.f32.mrb[0].mxu0
        %v1392 = vadd.f32 %v1227, %v1391
        %v1393 = vpop.f32.mrb[0].mxu0
        %1394 = vmatprep.mubr.f32.mxu0 %v845
        %1395 = vmatmul.mubr.f32.gmra.mrb[0].mxu0 %v824
        %v1396 = vpop.f32.mrb[0].mxu0
        %v1397 = vadd.f32 %v1232, %v1396
        %v1398 = vpop.f32.mrb[0].mxu0
        %1399 = vmatprep.mubr.f32.mxu0 %v846
        %1400 = vmatmul.mubr.f32.gmra.mrb[0].mxu0 %v825
        %v1401 = vpop.f32.mrb[0].mxu0
        %v1402 = vadd.f32 %v1237, %v1401
        %v1403 = vpop.f32.mrb[0].mxu0
        %1404 = vmatprep.mubr.f32.mxu0 %v847
        %1405 = vmatmul.mubr.f32.gmra.mrb[0].mxu0 %v826
        %v1406 = vpop.f32.mrb[0].mxu0
        %v1407 = vadd.f32 %v1242, %v1406
        %v1408 = vpop.f32.mrb[0].mxu0
        %1409 = vmatprep.mubr.f32.mxu0 %v848
        %1410 = vmatmul.mubr.f32.gmra.mrb[0].mxu0 %v827
        %v1411 = vpop.f32.mrb[0].mxu0
        %v1412 = vadd.f32 %v1247, %v1411
        %v1413 = vpop.f32.mrb[0].mxu0
        %1414 = vmatprep.mubr.f32.mxu0 %v849
        %1415 = vmatmul.mubr.f32.gmra.mrb[0].mxu0 %v828
        %v1416 = vpop.f32.mrb[0].mxu0
        %v1417 = vadd.f32 %v1252, %v1416
        %v1418 = vpop.f32.mrb[0].mxu0
        %1419 = vmatprep.mubr.f32.mxu0 %v850
        %1420 = vmatmul.mubr.f32.gmra.mrb[0].mxu0 %v829
        %v1421 = vpop.f32.mrb[0].mxu0
        %v1422 = vadd.f32 %v1257, %v1421
        %v1423 = vpop.f32.mrb[0].mxu0
        %1424 = vmatprep.mubr.f32.mxu0 %v851
        %1425 = vmatmul.mubr.f32.gmra.mrb[0].mxu0 %v830
        %v1426 = vpop.f32.mrb[0].mxu0
        %v1427 = vadd.f32 %v1262, %v1426
        %v1428 = vpop.f32.mrb[0].mxu0
        %1429 = vmatprep.mubr.f32.mxu0 %v852
        %1430 = vmatmul.mubr.f32.gmra.mrb[0].mxu0 %v831
        %v1431 = vpop.f32.mrb[0].mxu0
        %v1432 = vadd.f32 %v1267, %v1431
        %v1433 = vpop.f32.mrb[0].mxu0
        %1434 = vdwg.mxu0
        %1435 = vmatprep.subr.mxu0 0.0
        %1436 = vmatpush1.msra.mxu0 %v1018
        %1437 = vmatprep.subr.mxu0 0.0
        %1438 = vmatpush1.msra.mxu0 %v1019
        %1439 = vmatprep.subr.mxu0 0.0
        %1440 = vmatpush1.msra.mxu0 %v1020
        %1441 = vmatprep.subr.mxu0 0.0
        %1442 = vmatpush1.msra.mxu0 %v1021
        %1443 = vmatprep.subr.mxu0 0.0
        %1444 = vmatpush1.msra.mxu0 %v1022
        %1445 = vmatprep.subr.mxu0 0.0
        %1446 = vmatpush1.msra.mxu0 %v1023
        %1447 = vmatprep.subr.mxu0 0.0
        %1448 = vmatpush1.msra.mxu0 %v1024
        %1449 = vmatprep.subr.mxu0 0.0
        %1450 = vmatpush1.msra.mxu0 %v1025
        %1451 = vmatprep.subr.mxu0 0.0
        %1452 = vmatpush1.msra.mxu0 %v1026
        %1453 = vmatprep.subr.mxu0 0.0
        %1454 = vmatpush1.msra.mxu0 %v1027
        %1455 = vmatprep.subr.mxu0 0.0
        %1456 = vmatpush1.msra.mxu0 %v1028
        %1457 = vmatprep.subr.mxu0 0.0
        %1458 = vmatpush1.msra.mxu0 %v1029
        %1459 = vmatprep.subr.mxu0 0.0
        %1460 = vmatpush1.msra.mxu0 %v1030
        %1461 = vmatprep.subr.mxu0 0.0
        %1462 = vmatpush1.msra.mxu0 %v1031
        %1463 = vmatprep.subr.mxu0 0.0
        %1464 = vmatpush1.msra.mxu0 %v1032
        %1465 = vmatprep.subr.mxu0 0.0
        %1466 = vmatpush1.msra.mxu0 %v1033
        %1467 = vmatprep.subr.mxu0 0.0
        %1468 = vmatpush1.msra.mxu0 %v1034
        %1469 = vmatprep.subr.mxu0 0.0
        %1470 = vmatpush1.msra.mxu0 %v1035
        %1471 = vmatprep.subr.mxu0 0.0
        %1472 = vmatpush1.msra.mxu0 %v1036
        %1473 = vmatprep.subr.mxu0 0.0
        %1474 = vmatpush1.msra.mxu0 %v1037
        %1475 = vmatprep.subr.mxu0 0.0
        %1476 = vmatpush1.msra.mxu0 %v1038
        %1477 = vmatprep.subr.mxu0 0.0
        %1478 = vmatpush1.msra.mxu0 %v1039
        %1479 = vmatprep.subr.mxu0 0.0
        %1480 = vmatpush1.msra.mxu0 %v1040
        %1481 = vmatprep.subr.mxu0 0.0
        %1482 = vmatpush1.msra.mxu0 %v1041
        %1483 = vmatprep.subr.mxu0 0.0
        %1484 = vmatpush1.msra.mxu0 %v1042
        %1485 = vmatprep.subr.mxu0 0.0
        %1486 = vmatpush1.msra.mxu0 %v1043
        %1487 = vmatprep.subr.mxu0 0.0
        %1488 = vmatpush1.msra.mxu0 %v1044
        %1489 = vmatprep.subr.mxu0 0.0
        %1490 = vmatpush1.msra.mxu0 %v1045
        %1491 = vmatprep.subr.mxu0 0.0
        %1492 = vmatpush1.msra.mxu0 %v1046
        %1493 = vmatprep.subr.mxu0 0.0
        %1494 = vmatpush1.msra.mxu0 %v1047
        %1495 = vmatprep.subr.mxu0 0.0
        %1496 = vmatpush1.msra.mxu0 %v1048
        %1497 = vmatprep.subr.mxu0 0.0
        %1498 = vmatpush1.msra.mxu0 %v1049
        %1499 = vmatprep.mubr.f32.mxu0 %v873
        %1500 = vmatmul.mubr.f32.gmra.mrb[0].mxu0 %v853
        %v1501 = vpop.f32.mrb[0].mxu0
        %v1502 = vadd.f32 %v1337, %v1501
        %v1503 = vpop.f32.mrb[0].mxu0
        %1504 = vmatprep.mubr.f32.mxu0 %v874
        %1505 = vmatmul.mubr.f32.gmra.mrb[0].mxu0 %v854
        %v1506 = vpop.f32.mrb[0].mxu0
        %v1507 = vadd.f32 %v1342, %v1506
        %v1508 = vpop.f32.mrb[0].mxu0
        %1509 = vmatprep.mubr.f32.mxu0 %v875
        %1510 = vmatmul.mubr.f32.gmra.mrb[0].mxu0 %v855
        %v1511 = vpop.f32.mrb[0].mxu0
        %v1512 = vadd.f32 %v1347, %v1511
        %v1513 = vpop.f32.mrb[0].mxu0
        %1514 = vmatprep.mubr.f32.mxu0 %v876
        %1515 = vmatmul.mubr.f32.gmra.mrb[0].mxu0 %v856
        %v1516 = vpop.f32.mrb[0].mxu0
        %v1517 = vadd.f32 %v1352, %v1516
        %v1518 = vpop.f32.mrb[0].mxu0
        %1519 = vmatprep.mubr.f32.mxu0 %v877
        %1520 = vmatmul.mubr.f32.gmra.mrb[0].mxu0 %v857
        %v1521 = vpop.f32.mrb[0].mxu0
        %v1522 = vadd.f32 %v1357, %v1521
        %v1523 = vpop.f32.mrb[0].mxu0
        %1524 = vmatprep.mubr.f32.mxu0 %v878
        %1525 = vmatmul.mubr.f32.gmra.mrb[0].mxu0 %v858
        %v1526 = vpop.f32.mrb[0].mxu0
        %v1527 = vadd.f32 %v1362, %v1526
        %v1528 = vpop.f32.mrb[0].mxu0
        %1529 = vmatprep.mubr.f32.mxu0 %v879
        %1530 = vmatmul.mubr.f32.gmra.mrb[0].mxu0 %v859
        %v1531 = vpop.f32.mrb[0].mxu0
        %v1532 = vadd.f32 %v1367, %v1531
        %v1533 = vpop.f32.mrb[0].mxu0
        %1534 = vmatprep.mubr.f32.mxu0 %v880
        %1535 = vmatmul.mubr.f32.gmra.mrb[0].mxu0 %v860
        %v1536 = vpop.f32.mrb[0].mxu0
        %v1537 = vadd.f32 %v1372, %v1536
        %v1538 = vpop.f32.mrb[0].mxu0
        %1539 = vmatprep.mubr.f32.mxu0 %v881
        %1540 = vmatmul.mubr.f32.gmra.mrb[0].mxu0 %v861
        %v1541 = vpop.f32.mrb[0].mxu0
        %v1542 = vadd.f32 %v1377, %v1541
        %v1543 = vpop.f32.mrb[0].mxu0
        %1544 = vmatprep.mubr.f32.mxu0 %v882
        %1545 = vmatmul.mubr.f32.gmra.mrb[0].mxu0 %v862
        %v1546 = vpop.f32.mrb[0].mxu0
        %v1547 = vadd.f32 %v1382, %v1546
        %v1548 = vpop.f32.mrb[0].mxu0
        %1549 = vmatprep.mubr.f32.mxu0 %v883
        %1550 = vmatmul.mubr.f32.gmra.mrb[0].mxu0 %v863
        %v1551 = vpop.f32.mrb[0].mxu0
        %v1552 = vadd.f32 %v1387, %v1551
        %v1553 = vpop.f32.mrb[0].mxu0
        %1554 = vmatprep.mubr.f32.mxu0 %v884
        %1555 = vmatmul.mubr.f32.gmra.mrb[0].mxu0 %v864
        %v1556 = vpop.f32.mrb[0].mxu0
        %v1557 = vadd.f32 %v1392, %v1556
        %v1558 = vpop.f32.mrb[0].mxu0
        %1559 = vmatprep.mubr.f32.mxu0 %v885
        %1560 = vmatmul.mubr.f32.gmra.mrb[0].mxu0 %v865
        %v1561 = vpop.f32.mrb[0].mxu0
        %v1562 = vadd.f32 %v1397, %v1561
        %v1563 = vpop.f32.mrb[0].mxu0
        %1564 = vmatprep.mubr.f32.mxu0 %v886
        %1565 = vmatmul.mubr.f32.gmra.mrb[0].mxu0 %v866
        %v1566 = vpop.f32.mrb[0].mxu0
        %v1567 = vadd.f32 %v1402, %v1566
        %v1568 = vpop.f32.mrb[0].mxu0
        %1569 = vmatprep.mubr.f32.mxu0 %v887
        %1570 = vmatmul.mubr.f32.gmra.mrb[0].mxu0 %v867
        %v1571 = vpop.f32.mrb[0].mxu0
        %v1572 = vadd.f32 %v1407, %v1571
        %v1573 = vpop.f32.mrb[0].mxu0
        %1574 = vmatprep.mubr.f32.mxu0 %v888
        %1575 = vmatmul.mubr.f32.gmra.mrb[0].mxu0 %v868
        %v1576 = vpop.f32.mrb[0].mxu0
        %v1577 = vadd.f32 %v1412, %v1576
        %v1578 = vpop.f32.mrb[0].mxu0
        %1579 = vmatprep.mubr.f32.mxu0 %v889
        %1580 = vmatmul.mubr.f32.gmra.mrb[0].mxu0 %v869
        %v1581 = vpop.f32.mrb[0].mxu0
        %v1582 = vadd.f32 %v1417, %v1581
        %v1583 = vpop.f32.mrb[0].mxu0
        %1584 = vmatprep.mubr.f32.mxu0 %v890
        %1585 = vmatmul.mubr.f32.gmra.mrb[0].mxu0 %v870
        %v1586 = vpop.f32.mrb[0].mxu0
        %v1587 = vadd.f32 %v1422, %v1586
        %v1588 = vpop.f32.mrb[0].mxu0
        %1589 = vmatprep.mubr.f32.mxu0 %v891
        %1590 = vmatmul.mubr.f32.gmra.mrb[0].mxu0 %v871
        %v1591 = vpop.f32.mrb[0].mxu0
        %v1592 = vadd.f32 %v1427, %v1591
        %v1593 = vpop.f32.mrb[0].mxu0
        %1594 = vmatprep.mubr.f32.mxu0 %v892
        %1595 = vmatmul.mubr.f32.gmra.mrb[0].mxu0 %v872
        %v1596 = vpop.f32.mrb[0].mxu0
        %v1597 = vadd.f32 %v1432, %v1596
        %v1598 = vpop.f32.mrb[0].mxu0
        %1599 = vdwg.mxu0
        %1600 = vmatprep.subr.mxu0 0.0
        %1601 = vmatpush1.msra.mxu0 %v1050
        %1602 = vmatprep.subr.mxu0 0.0
        %1603 = vmatpush1.msra.mxu0 %v1051
        %1604 = vmatprep.subr.mxu0 0.0
        %1605 = vmatpush1.msra.mxu0 %v1052
        %1606 = vmatprep.subr.mxu0 0.0
        %1607 = vmatpush1.msra.mxu0 %v1053
        %1608 = vmatprep.subr.mxu0 0.0
        %1609 = vmatpush1.msra.mxu0 %v1054
        %1610 = vmatprep.subr.mxu0 0.0
        %1611 = vmatpush1.msra.mxu0 %v1055
        %1612 = vmatprep.subr.mxu0 0.0
        %1613 = vmatpush1.msra.mxu0 %v1056
        %1614 = vmatprep.subr.mxu0 0.0
        %1615 = vmatpush1.msra.mxu0 %v1057
        %1616 = vmatprep.subr.mxu0 0.0
        %1617 = vmatpush1.msra.mxu0 %v1058
        %1618 = vmatprep.subr.mxu0 0.0
        %1619 = vmatpush1.msra.mxu0 %v1059
        %1620 = vmatprep.subr.mxu0 0.0
        %1621 = vmatpush1.msra.mxu0 %v1060
        %1622 = vmatprep.subr.mxu0 0.0
        %1623 = vmatpush1.msra.mxu0 %v1061
        %1624 = vmatprep.subr.mxu0 0.0
        %1625 = vmatpush1.msra.mxu0 %v1062
        %1626 = vmatprep.subr.mxu0 0.0
        %1627 = vmatpush1.msra.mxu0 %v1063
        %1628 = vmatprep.subr.mxu0 0.0
        %1629 = vmatpush1.msra.mxu0 %v1064
        %1630 = vmatprep.subr.mxu0 0.0
        %1631 = vmatpush1.msra.mxu0 %v1065
        %1632 = vmatprep.subr.mxu0 0.0
        %1633 = vmatpush1.msra.mxu0 %v1066
        %1634 = vmatprep.subr.mxu0 0.0
        %1635 = vmatpush1.msra.mxu0 %v1067
        %1636 = vmatprep.subr.mxu0 0.0
        %1637 = vmatpush1.msra.mxu0 %v1068
        %1638 = vmatprep.subr.mxu0 0.0
        %1639 = vmatpush1.msra.mxu0 %v1069
        %1640 = vmatprep.subr.mxu0 0.0
        %1641 = vmatpush1.msra.mxu0 %v1070
        %1642 = vmatprep.subr.mxu0 0.0
        %1643 = vmatpush1.msra.mxu0 %v1071
        %1644 = vmatprep.subr.mxu0 0.0
        %1645 = vmatpush1.msra.mxu0 %v1072
        %1646 = vmatprep.subr.mxu0 0.0
        %1647 = vmatpush1.msra.mxu0 %v1073
        %1648 = vmatprep.subr.mxu0 0.0
        %1649 = vmatpush1.msra.mxu0 %v1074
        %1650 = vmatprep.subr.mxu0 0.0
        %1651 = vmatpush1.msra.mxu0 %v1075
        %1652 = vmatprep.subr.mxu0 0.0
        %1653 = vmatpush1.msra.mxu0 %v1076
        %1654 = vmatprep.subr.mxu0 0.0
        %1655 = vmatpush1.msra.mxu0 %v1077
        %1656 = vmatprep.subr.mxu0 0.0
        %1657 = vmatpush1.msra.mxu0 %v1078
        %1658 = vmatprep.subr.mxu0 0.0
        %1659 = vmatpush1.msra.mxu0 %v1079
        %1660 = vmatprep.subr.mxu0 0.0
        %1661 = vmatpush1.msra.mxu0 %v1080
        %1662 = vmatprep.subr.mxu0 0.0
        %1663 = vmatpush1.msra.mxu0 %v1081
        %1664 = vmatprep.mubr.f32.mxu0 %v914
        %1665 = vmatmul.mubr.f32.gmra.mrb[0].mxu0 %v894
        %v1666 = vpop.f32.mrb[0].mxu0
        %v1667 = vadd.f32 %v1502, %v1666
        %v1668 = vpop.f32.mrb[0].mxu0
        %1669 = vmatprep.mubr.f32.mxu0 %v915
        %1670 = vmatmul.mubr.f32.gmra.mrb[0].mxu0 %v895
        %v1671 = vpop.f32.mrb[0].mxu0
        %v1672 = vadd.f32 %v1507, %v1671
        %v1673 = vpop.f32.mrb[0].mxu0
        %1674 = vmatprep.mubr.f32.mxu0 %v916
        %1675 = vmatmul.mubr.f32.gmra.mrb[0].mxu0 %v896
        %v1676 = vpop.f32.mrb[0].mxu0
        %v1677 = vadd.f32 %v1512, %v1676
        %v1678 = vpop.f32.mrb[0].mxu0
        %1679 = vmatprep.mubr.f32.mxu0 %v917
        %1680 = vmatmul.mubr.f32.gmra.mrb[0].mxu0 %v897
        %v1681 = vpop.f32.mrb[0].mxu0
        %v1682 = vadd.f32 %v1517, %v1681
        %v1683 = vpop.f32.mrb[0].mxu0
        %1684 = vmatprep.mubr.f32.mxu0 %v918
        %1685 = vmatmul.mubr.f32.gmra.mrb[0].mxu0 %v898
        %v1686 = vpop.f32.mrb[0].mxu0
        %v1687 = vadd.f32 %v1522, %v1686
        %v1688 = vpop.f32.mrb[0].mxu0
        %1689 = vmatprep.mubr.f32.mxu0 %v919
        %1690 = vmatmul.mubr.f32.gmra.mrb[0].mxu0 %v899
        %v1691 = vpop.f32.mrb[0].mxu0
        %v1692 = vadd.f32 %v1527, %v1691
        %v1693 = vpop.f32.mrb[0].mxu0
        %1694 = vmatprep.mubr.f32.mxu0 %v920
        %1695 = vmatmul.mubr.f32.gmra.mrb[0].mxu0 %v900
        %v1696 = vpop.f32.mrb[0].mxu0
        %v1697 = vadd.f32 %v1532, %v1696
        %v1698 = vpop.f32.mrb[0].mxu0
        %1699 = vmatprep.mubr.f32.mxu0 %v921
        %1700 = vmatmul.mubr.f32.gmra.mrb[0].mxu0 %v901
        %v1701 = vpop.f32.mrb[0].mxu0
        %v1702 = vadd.f32 %v1537, %v1701
        %v1703 = vpop.f32.mrb[0].mxu0
        %1704 = vmatprep.mubr.f32.mxu0 %v922
        %1705 = vmatmul.mubr.f32.gmra.mrb[0].mxu0 %v902
        %v1706 = vpop.f32.mrb[0].mxu0
        %v1707 = vadd.f32 %v1542, %v1706
        %v1708 = vpop.f32.mrb[0].mxu0
        %1709 = vmatprep.mubr.f32.mxu0 %v923
        %1710 = vmatmul.mubr.f32.gmra.mrb[0].mxu0 %v903
        %v1711 = vpop.f32.mrb[0].mxu0
        %v1712 = vadd.f32 %v1547, %v1711
        %v1713 = vpop.f32.mrb[0].mxu0
        %1714 = vmatprep.mubr.f32.mxu0 %v924
        %1715 = vmatmul.mubr.f32.gmra.mrb[0].mxu0 %v904
        %v1716 = vpop.f32.mrb[0].mxu0
        %v1717 = vadd.f32 %v1552, %v1716
        %v1718 = vpop.f32.mrb[0].mxu0
        %1719 = vmatprep.mubr.f32.mxu0 %v925
        %1720 = vmatmul.mubr.f32.gmra.mrb[0].mxu0 %v905
        %v1721 = vpop.f32.mrb[0].mxu0
        %v1722 = vadd.f32 %v1557, %v1721
        %v1723 = vpop.f32.mrb[0].mxu0
        %1724 = vmatprep.mubr.f32.mxu0 %v926
        %1725 = vmatmul.mubr.f32.gmra.mrb[0].mxu0 %v906
        %v1726 = vpop.f32.mrb[0].mxu0
        %v1727 = vadd.f32 %v1562, %v1726
        %v1728 = vpop.f32.mrb[0].mxu0
        %1729 = vmatprep.mubr.f32.mxu0 %v927
        %1730 = vmatmul.mubr.f32.gmra.mrb[0].mxu0 %v907
        %v1731 = vpop.f32.mrb[0].mxu0
        %v1732 = vadd.f32 %v1567, %v1731
        %v1733 = vpop.f32.mrb[0].mxu0
        %1734 = vmatprep.mubr.f32.mxu0 %v928
        %1735 = vmatmul.mubr.f32.gmra.mrb[0].mxu0 %v908
        %v1736 = vpop.f32.mrb[0].mxu0
        %v1737 = vadd.f32 %v1572, %v1736
        %v1738 = vpop.f32.mrb[0].mxu0
        %1739 = vmatprep.mubr.f32.mxu0 %v929
        %1740 = vmatmul.mubr.f32.gmra.mrb[0].mxu0 %v909
        %v1741 = vpop.f32.mrb[0].mxu0
        %v1742 = vadd.f32 %v1577, %v1741
        %v1743 = vpop.f32.mrb[0].mxu0
        %1744 = vmatprep.mubr.f32.mxu0 %v930
        %1745 = vmatmul.mubr.f32.gmra.mrb[0].mxu0 %v910
        %v1746 = vpop.f32.mrb[0].mxu0
        %v1747 = vadd.f32 %v1582, %v1746
        %v1748 = vpop.f32.mrb[0].mxu0
        %1749 = vmatprep.mubr.f32.mxu0 %v931
        %1750 = vmatmul.mubr.f32.gmra.mrb[0].mxu0 %v911
        %v1751 = vpop.f32.mrb[0].mxu0
        %v1752 = vadd.f32 %v1587, %v1751
        %v1753 = vpop.f32.mrb[0].mxu0
        %1754 = vmatprep.mubr.f32.mxu0 %v932
        %1755 = vmatmul.mubr.f32.gmra.mrb[0].mxu0 %v912
        %v1756 = vpop.f32.mrb[0].mxu0
        %v1757 = vadd.f32 %v1592, %v1756
        %v1758 = vpop.f32.mrb[0].mxu0
        %1759 = vmatprep.mubr.f32.mxu0 %v933
        %1760 = vmatmul.mubr.f32.gmra.mrb[0].mxu0 %v913
        %v1761 = vpop.f32.mrb[0].mxu0
        %v1762 = vadd.f32 %v1597, %v1761
        %v1763 = vpop.f32.mrb[0].mxu0
        %1764 = vdwg.mxu0
        %1765 = vmatprep.subr.mxu0 0.0
        %1766 = vmatpush1.msra.mxu0 %v1082
        %1767 = vmatprep.subr.mxu0 0.0
        %1768 = vmatpush1.msra.mxu0 %v1083
        %1769 = vmatprep.subr.mxu0 0.0
        %1770 = vmatpush1.msra.mxu0 %v1084
        %1771 = vmatprep.subr.mxu0 0.0
        %1772 = vmatpush1.msra.mxu0 %v1085
        %1773 = vmatprep.subr.mxu0 0.0
        %1774 = vmatpush1.msra.mxu0 %v1086
        %1775 = vmatprep.subr.mxu0 0.0
        %1776 = vmatpush1.msra.mxu0 %v1087
        %1777 = vmatprep.subr.mxu0 0.0
        %1778 = vmatpush1.msra.mxu0 %v1088
        %1779 = vmatprep.subr.mxu0 0.0
        %1780 = vmatpush1.msra.mxu0 %v1089
        %1781 = vmatprep.subr.mxu0 0.0
        %1782 = vmatpush1.msra.mxu0 %v1090
        %1783 = vmatprep.subr.mxu0 0.0
        %1784 = vmatpush1.msra.mxu0 %v1091
        %1785 = vmatprep.subr.mxu0 0.0
        %1786 = vmatpush1.msra.mxu0 %v1092
        %1787 = vmatprep.subr.mxu0 0.0
        %1788 = vmatpush1.msra.mxu0 %v1093
        %1789 = vmatprep.subr.mxu0 0.0
        %1790 = vmatpush1.msra.mxu0 %v1094
        %1791 = vmatprep.subr.mxu0 0.0
        %1792 = vmatpush1.msra.mxu0 %v1095
        %1793 = vmatprep.subr.mxu0 0.0
        %1794 = vmatpush1.msra.mxu0 %v1096
        %1795 = vmatprep.subr.mxu0 0.0
        %1796 = vmatpush1.msra.mxu0 %v1097
        %1797 = vmatprep.subr.mxu0 0.0
        %1798 = vmatpush1.msra.mxu0 0.0
        %1799 = vmatprep.subr.mxu0 0.0
        %1800 = vmatpush1.msra.mxu0 0.0
        %1801 = vmatprep.subr.mxu0 0.0
        %1802 = vmatpush1.msra.mxu0 0.0
        %1803 = vmatprep.subr.mxu0 0.0
        %1804 = vmatpush1.msra.mxu0 0.0
        %1805 = vmatprep.subr.mxu0 0.0
        %1806 = vmatpush1.msra.mxu0 0.0
        %1807 = vmatprep.subr.mxu0 0.0
        %1808 = vmatpush1.msra.mxu0 0.0
        %1809 = vmatprep.subr.mxu0 0.0
        %1810 = vmatpush1.msra.mxu0 0.0
        %1811 = vmatprep.subr.mxu0 0.0
        %1812 = vmatpush1.msra.mxu0 0.0
        %1813 = vmatprep.subr.mxu0 0.0
        %1814 = vmatpush1.msra.mxu0 0.0
        %1815 = vmatprep.subr.mxu0 0.0
        %1816 = vmatpush1.msra.mxu0 0.0
        %1817 = vmatprep.subr.mxu0 0.0
        %1818 = vmatpush1.msra.mxu0 0.0
        %1819 = vmatprep.subr.mxu0 0.0
        %1820 = vmatpush1.msra.mxu0 0.0
        %1821 = vmatprep.subr.mxu0 0.0
        %1822 = vmatpush1.msra.mxu0 0.0
        %1823 = vmatprep.subr.mxu0 0.0
        %1824 = vmatpush1.msra.mxu0 0.0
        %1825 = vmatprep.subr.mxu0 0.0
        %1826 = vmatpush1.msra.mxu0 0.0
        %1827 = vmatprep.subr.mxu0 0.0
        %1828 = vmatpush1.msra.mxu0 0.0
        %1829 = vmatprep.mubr.f32.mxu0 0.0
        %1830 = vmatmul.mubr.f32.gmra.mrb[0].mxu0 %v934
        %v1831 = vpop.f32.mrb[0].mxu0
        %v1832 = vadd.f32 %v1667, %v1831
        %v1833 = vpop.f32.mrb[0].mxu0
        %1834 = vmatprep.mubr.f32.mxu0 0.0
        %1835 = vmatmul.mubr.f32.gmra.mrb[0].mxu0 %v935
        %v1836 = vpop.f32.mrb[0].mxu0
        %v1837 = vadd.f32 %v1672, %v1836
        %v1838 = vpop.f32.mrb[0].mxu0
        %1839 = vmatprep.mubr.f32.mxu0 0.0
        %1840 = vmatmul.mubr.f32.gmra.mrb[0].mxu0 %v936
        %v1841 = vpop.f32.mrb[0].mxu0
        %v1842 = vadd.f32 %v1677, %v1841
        %v1843 = vpop.f32.mrb[0].mxu0
        %1844 = vmatprep.mubr.f32.mxu0 0.0
        %1845 = vmatmul.mubr.f32.gmra.mrb[0].mxu0 %v937
        %v1846 = vpop.f32.mrb[0].mxu0
        %v1847 = vadd.f32 %v1682, %v1846
        %v1848 = vpop.f32.mrb[0].mxu0
        %1849 = vmatprep.mubr.f32.mxu0 0.0
        %1850 = vmatmul.mubr.f32.gmra.mrb[0].mxu0 %v938
        %v1851 = vpop.f32.mrb[0].mxu0
        %v1852 = vadd.f32 %v1687, %v1851
        %v1853 = vpop.f32.mrb[0].mxu0
        %1854 = vmatprep.mubr.f32.mxu0 0.0
        %1855 = vmatmul.mubr.f32.gmra.mrb[0].mxu0 %v939
        %v1856 = vpop.f32.mrb[0].mxu0
        %v1857 = vadd.f32 %v1692, %v1856
        %v1858 = vpop.f32.mrb[0].mxu0
        %1859 = vmatprep.mubr.f32.mxu0 0.0
        %1860 = vmatmul.mubr.f32.gmra.mrb[0].mxu0 %v940
        %v1861 = vpop.f32.mrb[0].mxu0
        %v1862 = vadd.f32 %v1697, %v1861
        %v1863 = vpop.f32.mrb[0].mxu0
        %1864 = vmatprep.mubr.f32.mxu0 0.0
        %1865 = vmatmul.mubr.f32.gmra.mrb[0].mxu0 %v941
        %v1866 = vpop.f32.mrb[0].mxu0
        %v1867 = vadd.f32 %v1702, %v1866
        %v1868 = vpop.f32.mrb[0].mxu0
        %1869 = vmatprep.mubr.f32.mxu0 0.0
        %1870 = vmatmul.mubr.f32.gmra.mrb[0].mxu0 %v942
        %v1871 = vpop.f32.mrb[0].mxu0
        %v1872 = vadd.f32 %v1707, %v1871
        %v1873 = vpop.f32.mrb[0].mxu0
        %1874 = vmatprep.mubr.f32.mxu0 0.0
        %1875 = vmatmul.mubr.f32.gmra.mrb[0].mxu0 %v943
        %v1876 = vpop.f32.mrb[0].mxu0
        %v1877 = vadd.f32 %v1712, %v1876
        %v1878 = vpop.f32.mrb[0].mxu0
        %1879 = vmatprep.mubr.f32.mxu0 0.0
        %1880 = vmatmul.mubr.f32.gmra.mrb[0].mxu0 %v944
        %v1881 = vpop.f32.mrb[0].mxu0
        %v1882 = vadd.f32 %v1717, %v1881
        %v1883 = vpop.f32.mrb[0].mxu0
        %1884 = vmatprep.mubr.f32.mxu0 0.0
        %1885 = vmatmul.mubr.f32.gmra.mrb[0].mxu0 %v945
        %v1886 = vpop.f32.mrb[0].mxu0
        %v1887 = vadd.f32 %v1722, %v1886
        %v1888 = vpop.f32.mrb[0].mxu0
        %1889 = vmatprep.mubr.f32.mxu0 0.0
        %1890 = vmatmul.mubr.f32.gmra.mrb[0].mxu0 %v946
        %v1891 = vpop.f32.mrb[0].mxu0
        %v1892 = vadd.f32 %v1727, %v1891
        %v1893 = vpop.f32.mrb[0].mxu0
        %1894 = vmatprep.mubr.f32.mxu0 0.0
        %1895 = vmatmul.mubr.f32.gmra.mrb[0].mxu0 %v947
        %v1896 = vpop.f32.mrb[0].mxu0
        %v1897 = vadd.f32 %v1732, %v1896
        %v1898 = vpop.f32.mrb[0].mxu0
        %1899 = vmatprep.mubr.f32.mxu0 0.0
        %1900 = vmatmul.mubr.f32.gmra.mrb[0].mxu0 %v948
        %v1901 = vpop.f32.mrb[0].mxu0
        %v1902 = vadd.f32 %v1737, %v1901
        %v1903 = vpop.f32.mrb[0].mxu0
        %1904 = vmatprep.mubr.f32.mxu0 0.0
        %1905 = vmatmul.mubr.f32.gmra.mrb[0].mxu0 %v949
        %v1906 = vpop.f32.mrb[0].mxu0
        %v1907 = vadd.f32 %v1742, %v1906
        %v1908 = vpop.f32.mrb[0].mxu0
        %1909 = vmatprep.mubr.f32.mxu0 0.0
        %1910 = vmatmul.mubr.f32.gmra.mrb[0].mxu0 %v950
        %v1911 = vpop.f32.mrb[0].mxu0
        %v1912 = vadd.f32 %v1747, %v1911
        %v1913 = vpop.f32.mrb[0].mxu0
        %1914 = vmatprep.mubr.f32.mxu0 0.0
        %1915 = vmatmul.mubr.f32.gmra.mrb[0].mxu0 %v951
        %v1916 = vpop.f32.mrb[0].mxu0
        %v1917 = vadd.f32 %v1752, %v1916
        %v1918 = vpop.f32.mrb[0].mxu0
        %1919 = vmatprep.mubr.f32.mxu0 0.0
        %1920 = vmatmul.mubr.f32.gmra.mrb[0].mxu0 %v952
        %v1921 = vpop.f32.mrb[0].mxu0
        %v1922 = vadd.f32 %v1757, %v1921
        %v1923 = vpop.f32.mrb[0].mxu0
        %1924 = vmatprep.mubr.f32.mxu0 0.0
        %1925 = vmatmul.mubr.f32.gmra.mrb[0].mxu0 %v953
        %v1926 = vpop.f32.mrb[0].mxu0
        %v1927 = vadd.f32 %v1762, %v1926
        %v1928 = vpop.f32.mrb[0].mxu0
        %1929 = vdwg.mxu0
        %v1930 = vmax.f32 %v1832, 0.0
        %v1931 = vmax.f32 %v1837, 0.0
        %v1932 = vmax.f32 %v1842, 0.0
        %v1933 = vmax.f32 %v1847, 0.0
        %v1934 = vmax.f32 %v1852, 0.0
        %v1935 = vmax.f32 %v1857, 0.0
        %v1936 = vmax.f32 %v1862, 0.0
        %v1937 = vmax.f32 %v1867, 0.0
        %v1938 = vmax.f32 %v1872, 0.0
        %v1939 = vmax.f32 %v1877, 0.0
        %v1940 = vmax.f32 %v1882, 0.0
        %v1941 = vmax.f32 %v1887, 0.0
        %v1942 = vmax.f32 %v1892, 0.0
        %v1943 = vmax.f32 %v1897, 0.0
        %v1944 = vmax.f32 %v1902, 0.0
        %v1945 = vmax.f32 %v1907, 0.0
        %v1946 = vmax.f32 %v1912, 0.0
        %v1947 = vmax.f32 %v1917, 0.0
        %v1948 = vmax.f32 %v1922, 0.0
        %v1949 = vmax.f32 %v1927, 0.0
        %1950 = vst [vmem:[#allocation3 + $0x8] sm:$0xff] %v1930
        %1951 = vst [vmem:[#allocation3 + $0x10] sm:$0xff] %v1931
        %1952 = vst [vmem:[#allocation3 + $0x28] sm:$0xff] %v1932
        %1953 = vst [vmem:[#allocation3 + $0x30] sm:$0xff] %v1933
        %1954 = vst [vmem:[#allocation3 + $0x48] sm:$0xff] %v1934
        %1955 = vst [vmem:[#allocation3 + $0x50] sm:$0xff] %v1935
        %1956 = vst [vmem:[#allocation3 + $0x68] sm:$0xff] %v1936
        %1957 = vst [vmem:[#allocation3 + $0x70] sm:$0xff] %v1937
        %1958 = vst [vmem:[#allocation3 + $0x88] sm:$0xff] %v1938
        %1959 = vst [vmem:[#allocation3 + $0x90] sm:$0xff] %v1939
        %1960 = vst [vmem:[#allocation3 + $0xa8] sm:$0xff] %v1940
        %1961 = vst [vmem:[#allocation3 + $0xb0] sm:$0xff] %v1941
        %1962 = vst [vmem:[#allocation3 + $0xc8] sm:$0xff] %v1942
        %1963 = vst [vmem:[#allocation3 + $0xd0] sm:$0xff] %v1943
        %1964 = vst [vmem:[#allocation3 + $0xe8] sm:$0xff] %v1944
        %1965 = vst [vmem:[#allocation3 + $0xf0] sm:$0xff] %v1945
        %1966 = vst [vmem:[#allocation3 + $0x108] sm:$0xff] %v1946
        %1967 = vst [vmem:[#allocation3 + $0x110] sm:$0xff] %v1947
        %1968 = vst [vmem:[#allocation3 + $0x128] sm:$0xff] %v1948
        %1969 = vst [vmem:[#allocation3 + $0x130] sm:$0xff] %v1949
        // Predicated region
        $region81: #{tpu_custom_call.1} parent=51 // pred_check
          %p1970 = pneg %p755
        $region82: #{tpu_custom_call.1} parent=51 // pred_check_branch
          %1972 = sbr.rel (%p1970) target = $region84
        $region83: #{tpu_custom_call.1} parent=51 // pred_region
          %1973 = vst [vmem:[#allocation3 + $0x8] sm:$0xff] 0.0
          %1974 = vst [vmem:[#allocation3 + $0x10] sm:$0xff] 0.0
        $region84: #{tpu_custom_call.1} parent=51 // pred_fallthru
          _
        // Predicated region
        $region85: #{tpu_custom_call.1} parent=51 // pred_check
          %p1975 = pneg %p763
        $region86: #{tpu_custom_call.1} parent=51 // pred_check_branch
          %1977 = sbr.rel (%p1975) target = $region88
        $region87: #{tpu_custom_call.1} parent=51 // pred_region
          %s1978 = scalar_lea.vmem [#allocation3], 288
          %1979 = vst [vmem:[%s1978 + $0x8] sm:$0xff] 0.0
          %1980 = vst [vmem:[%s1978 + $0x10] sm:$0xff] 0.0
        $region88: #{tpu_custom_call.1} parent=51 // pred_fallthru
          _
        %v1981 = vld [vmem:[#allocation3 + $0x7] sm:$0xff]
        %v1982 = vld [vmem:[#allocation3 + $0xf] sm:$0xff]
        %v1983 = vld [vmem:[#allocation3 + $0x27] sm:$0xff]
        %v1984 = vld [vmem:[#allocation3 + $0x2f] sm:$0xff]
        %v1985 = vld [vmem:[#allocation3 + $0x47] sm:$0xff]
        %v1986 = vld [vmem:[#allocation3 + $0x4f] sm:$0xff]
        %v1987 = vld [vmem:[#allocation3 + $0x67] sm:$0xff]
        %v1988 = vld [vmem:[#allocation3 + $0x6f] sm:$0xff]
        %v1989 = vld [vmem:[#allocation3 + $0x87] sm:$0xff]
        %v1990 = vld [vmem:[#allocation3 + $0x8f] sm:$0xff]
        %v1991 = vld [vmem:[#allocation3 + $0xa7] sm:$0xff]
        %v1992 = vld [vmem:[#allocation3 + $0xaf] sm:$0xff]
        %v1993 = vld [vmem:[#allocation3 + $0xc7] sm:$0xff]
        %v1994 = vld [vmem:[#allocation3 + $0xcf] sm:$0xff]
        %v1995 = vld [vmem:[#allocation3 + $0xe7] sm:$0xff]
        %v1996 = vld [vmem:[#allocation3 + $0xef] sm:$0xff]
        %v1997 = vld [vmem:[#allocation3 + $0x8] sm:$0xff]
        %v1998 = vld [vmem:[#allocation3 + $0x10] sm:$0xff]
        %v1999 = vld [vmem:[#allocation3 + $0x28] sm:$0xff]
        %v2000 = vld [vmem:[#allocation3 + $0x30] sm:$0xff]
        %v2001 = vld [vmem:[#allocation3 + $0x48] sm:$0xff]
        %v2002 = vld [vmem:[#allocation3 + $0x50] sm:$0xff]
        %v2003 = vld [vmem:[#allocation3 + $0x68] sm:$0xff]
        %v2004 = vld [vmem:[#allocation3 + $0x70] sm:$0xff]
        %v2005 = vld [vmem:[#allocation3 + $0x88] sm:$0xff]
        %v2006 = vld [vmem:[#allocation3 + $0x90] sm:$0xff]
        %v2007 = vld [vmem:[#allocation3 + $0xa8] sm:$0xff]
        %v2008 = vld [vmem:[#allocation3 + $0xb0] sm:$0xff]
        %v2009 = vld [vmem:[#allocation3 + $0xc8] sm:$0xff]
        %v2010 = vld [vmem:[#allocation3 + $0xd0] sm:$0xff]
        %v2011 = vld [vmem:[#allocation3 + $0xe8] sm:$0xff]
        %v2012 = vld [vmem:[#allocation3 + $0xf0] sm:$0xff]
        %v2013 = vld [vmem:[#allocation3 + $0x9] sm:$0xff]
        %v2014 = vld [vmem:[#allocation3 + $0x11] sm:$0xff]
        %v2015 = vld [vmem:[#allocation3 + $0x29] sm:$0xff]
        %v2016 = vld [vmem:[#allocation3 + $0x31] sm:$0xff]
        %v2017 = vld [vmem:[#allocation3 + $0x49] sm:$0xff]
        %v2018 = vld [vmem:[#allocation3 + $0x51] sm:$0xff]
        %v2019 = vld [vmem:[#allocation3 + $0x69] sm:$0xff]
        %v2020 = vld [vmem:[#allocation3 + $0x71] sm:$0xff]
        %v2021 = vld [vmem:[#allocation3 + $0x89] sm:$0xff]
        %v2022 = vld [vmem:[#allocation3 + $0x91] sm:$0xff]
        %v2023 = vld [vmem:[#allocation3 + $0xa9] sm:$0xff]
        %v2024 = vld [vmem:[#allocation3 + $0xb1] sm:$0xff]
        %v2025 = vld [vmem:[#allocation3 + $0xc9] sm:$0xff]
        %v2026 = vld [vmem:[#allocation3 + $0xd1] sm:$0xff]
        %v2027 = vld [vmem:[#allocation3 + $0xe9] sm:$0xff]
        %v2028 = vld [vmem:[#allocation3 + $0xf1] sm:$0xff]
        %s2029 = scalar_lea.vmem [#allocation3], 32
        %v2030 = vld [vmem:[%s2029 + $0x7] sm:$0xff]
        %v2031 = vld [vmem:[%s2029 + $0xf] sm:$0xff]
        %v2032 = vld [vmem:[%s2029 + $0x27] sm:$0xff]
        %v2033 = vld [vmem:[%s2029 + $0x2f] sm:$0xff]
        %v2034 = vld [vmem:[%s2029 + $0x47] sm:$0xff]
        %v2035 = vld [vmem:[%s2029 + $0x4f] sm:$0xff]
        %v2036 = vld [vmem:[%s2029 + $0x67] sm:$0xff]
        %v2037 = vld [vmem:[%s2029 + $0x6f] sm:$0xff]
        %v2038 = vld [vmem:[%s2029 + $0x87] sm:$0xff]
        %v2039 = vld [vmem:[%s2029 + $0x8f] sm:$0xff]
        %v2040 = vld [vmem:[%s2029 + $0xa7] sm:$0xff]
        %v2041 = vld [vmem:[%s2029 + $0xaf] sm:$0xff]
        %v2042 = vld [vmem:[%s2029 + $0xc7] sm:$0xff]
        %v2043 = vld [vmem:[%s2029 + $0xcf] sm:$0xff]
        %v2044 = vld [vmem:[%s2029 + $0xe7] sm:$0xff]
        %v2045 = vld [vmem:[%s2029 + $0xef] sm:$0xff]
        %v2046 = vld [vmem:[%s2029 + $0x8] sm:$0xff]
        %v2047 = vld [vmem:[%s2029 + $0x10] sm:$0xff]
        %v2048 = vld [vmem:[%s2029 + $0x28] sm:$0xff]
        %v2049 = vld [vmem:[%s2029 + $0x30] sm:$0xff]
        %v2050 = vld [vmem:[%s2029 + $0x48] sm:$0xff]
        %v2051 = vld [vmem:[%s2029 + $0x50] sm:$0xff]
        %v2052 = vld [vmem:[%s2029 + $0x68] sm:$0xff]
        %v2053 = vld [vmem:[%s2029 + $0x70] sm:$0xff]
        %v2054 = vld [vmem:[%s2029 + $0x88] sm:$0xff]
        %v2055 = vld [vmem:[%s2029 + $0x90] sm:$0xff]
        %v2056 = vld [vmem:[%s2029 + $0xa8] sm:$0xff]
        %v2057 = vld [vmem:[%s2029 + $0xb0] sm:$0xff]
        %v2058 = vld [vmem:[%s2029 + $0xc8] sm:$0xff]
        %v2059 = vld [vmem:[%s2029 + $0xd0] sm:$0xff]
        %v2060 = vld [vmem:[%s2029 + $0xe8] sm:$0xff]
        %v2061 = vld [vmem:[%s2029 + $0xf0] sm:$0xff]
        %v2062 = vld [vmem:[%s2029 + $0x9] sm:$0xff]
        %v2063 = vld [vmem:[%s2029 + $0x11] sm:$0xff]
        %v2064 = vld [vmem:[%s2029 + $0x29] sm:$0xff]
        %v2065 = vld [vmem:[%s2029 + $0x31] sm:$0xff]
        %v2066 = vld [vmem:[%s2029 + $0x49] sm:$0xff]
        %v2067 = vld [vmem:[%s2029 + $0x51] sm:$0xff]
        %v2068 = vld [vmem:[%s2029 + $0x69] sm:$0xff]
        %v2069 = vld [vmem:[%s2029 + $0x71] sm:$0xff]
        %v2070 = vld [vmem:[%s2029 + $0x89] sm:$0xff]
        %v2071 = vld [vmem:[%s2029 + $0x91] sm:$0xff]
        %v2072 = vld [vmem:[%s2029 + $0xa9] sm:$0xff]
        %v2073 = vld [vmem:[%s2029 + $0xb1] sm:$0xff]
        %v2074 = vld [vmem:[%s2029 + $0xc9] sm:$0xff]
        %v2075 = vld [vmem:[%s2029 + $0xd1] sm:$0xff]
        %v2076 = vld [vmem:[%s2029 + $0xe9] sm:$0xff]
        %v2077 = vld [vmem:[%s2029 + $0xf1] sm:$0xff]
        %s2078 = scalar_lea.vmem [#allocation3], 64
        %v2079 = vld [vmem:[%s2078 + $0x7] sm:$0xff]
        %v2080 = vld [vmem:[%s2078 + $0xf] sm:$0xff]
        %v2081 = vld [vmem:[%s2078 + $0x27] sm:$0xff]
        %v2082 = vld [vmem:[%s2078 + $0x2f] sm:$0xff]
        %v2083 = vld [vmem:[%s2078 + $0x47] sm:$0xff]
        %v2084 = vld [vmem:[%s2078 + $0x4f] sm:$0xff]
        %v2085 = vld [vmem:[%s2078 + $0x67] sm:$0xff]
        %v2086 = vld [vmem:[%s2078 + $0x6f] sm:$0xff]
        %v2087 = vld [vmem:[%s2078 + $0x87] sm:$0xff]
        %v2088 = vld [vmem:[%s2078 + $0x8f] sm:$0xff]
        %v2089 = vld [vmem:[%s2078 + $0xa7] sm:$0xff]
        %v2090 = vld [vmem:[%s2078 + $0xaf] sm:$0xff]
        %v2091 = vld [vmem:[%s2078 + $0xc7] sm:$0xff]
        %v2092 = vld [vmem:[%s2078 + $0xcf] sm:$0xff]
        %v2093 = vld [vmem:[%s2078 + $0xe7] sm:$0xff]
        %v2094 = vld [vmem:[%s2078 + $0xef] sm:$0xff]
        %v2095 = vld [vmem:[%s2078 + $0x8] sm:$0xff]
        %v2096 = vld [vmem:[%s2078 + $0x10] sm:$0xff]
        %v2097 = vld [vmem:[%s2078 + $0x28] sm:$0xff]
        %v2098 = vld [vmem:[%s2078 + $0x30] sm:$0xff]
        %v2099 = vld [vmem:[%s2078 + $0x48] sm:$0xff]
        %v2100 = vld [vmem:[%s2078 + $0x50] sm:$0xff]
        %v2101 = vld [vmem:[%s2078 + $0x68] sm:$0xff]
        %v2102 = vld [vmem:[%s2078 + $0x70] sm:$0xff]
        %v2103 = vld [vmem:[%s2078 + $0x88] sm:$0xff]
        %v2104 = vld [vmem:[%s2078 + $0x90] sm:$0xff]
        %v2105 = vld [vmem:[%s2078 + $0xa8] sm:$0xff]
        %v2106 = vld [vmem:[%s2078 + $0xb0] sm:$0xff]
        %v2107 = vld [vmem:[%s2078 + $0xc8] sm:$0xff]
        %v2108 = vld [vmem:[%s2078 + $0xd0] sm:$0xff]
        %v2109 = vld [vmem:[%s2078 + $0xe8] sm:$0xff]
        %v2110 = vld [vmem:[%s2078 + $0xf0] sm:$0xff]
        %v2111 = vld [vmem:[%s2078 + $0x9] sm:$0xff]
        %v2112 = vld [vmem:[%s2078 + $0x11] sm:$0xff]
        %v2113 = vld [vmem:[%s2078 + $0x29] sm:$0xff]
        %v2114 = vld [vmem:[%s2078 + $0x31] sm:$0xff]
        %v2115 = vld [vmem:[%s2078 + $0x49] sm:$0xff]
        %v2116 = vld [vmem:[%s2078 + $0x51] sm:$0xff]
        %v2117 = vld [vmem:[%s2078 + $0x69] sm:$0xff]
        %v2118 = vld [vmem:[%s2078 + $0x71] sm:$0xff]
        %v2119 = vld [vmem:[%s2078 + $0x89] sm:$0xff]
        %v2120 = vld [vmem:[%s2078 + $0x91] sm:$0xff]
        %v2121 = vld [vmem:[%s2078 + $0xa9] sm:$0xff]
        %v2122 = vld [vmem:[%s2078 + $0xb1] sm:$0xff]
        %v2123 = vld [vmem:[%s2078 + $0xc9] sm:$0xff]
        %v2124 = vld [vmem:[%s2078 + $0xd1] sm:$0xff]
        %v2125 = vld [vmem:[%s2078 + $0xe9] sm:$0xff]
        %v2126 = vld [vmem:[%s2078 + $0xf1] sm:$0xff]
        %v2127 = vld [vmem:[#allocation12] sm:$0xff]
        %v2128 = vld [vmem:[#allocation12 + $0x8] sm:$0xff]
        %v2129 = vld [vmem:[#allocation12 + $0x10] sm:$0xff]
        %v2130 = vld [vmem:[#allocation12 + $0x18] sm:$0xff]
        %v2131 = vld [vmem:[#allocation12 + $0x20] sm:$0xff]
        %v2132 = vld [vmem:[#allocation12 + $0x28] sm:$0xff]
        %v2133 = vld [vmem:[#allocation12 + $0x30] sm:$0xff]
        %v2134 = vld [vmem:[#allocation12 + $0x38] sm:$0xff]
        %v2135 = vld [vmem:[#allocation12 + $0x40] sm:$0xff]
        %v2136 = vld [vmem:[#allocation12 + $0x48] sm:$0xff]
        %v2137 = vld [vmem:[#allocation12 + $0x50] sm:$0xff]
        %v2138 = vld [vmem:[#allocation12 + $0x58] sm:$0xff]
        %v2139 = vld [vmem:[#allocation12 + $0x60] sm:$0xff]
        %v2140 = vld [vmem:[#allocation12 + $0x68] sm:$0xff]
        %v2141 = vld [vmem:[#allocation12 + $0x70] sm:$0xff]
        %v2142 = vld [vmem:[#allocation12 + $0x78] sm:$0xff]
        %v2143 = vld [vmem:[#allocation12 + $0x80] sm:$0xff]
        %v2144 = vld [vmem:[#allocation12 + $0x88] sm:$0xff]
        %v2145 = vld [vmem:[#allocation12 + $0x90] sm:$0xff]
        %v2146 = vld [vmem:[#allocation12 + $0x98] sm:$0xff]
        %v2147 = vld [vmem:[#allocation12 + $0xa0] sm:$0xff]
        %v2148 = vld [vmem:[#allocation12 + $0xa8] sm:$0xff]
        %v2149 = vld [vmem:[#allocation12 + $0xb0] sm:$0xff]
        %v2150 = vld [vmem:[#allocation12 + $0xb8] sm:$0xff]
        %v2151 = vld [vmem:[#allocation12 + $0xc0] sm:$0xff]
        %v2152 = vld [vmem:[#allocation12 + $0xc8] sm:$0xff]
        %v2153 = vld [vmem:[#allocation12 + $0xd0] sm:$0xff]
        %v2154 = vld [vmem:[#allocation12 + $0xd8] sm:$0xff]
        %v2155 = vld [vmem:[#allocation12 + $0xe0] sm:$0xff]
        %v2156 = vld [vmem:[#allocation12 + $0xe8] sm:$0xff]
        %v2157 = vld [vmem:[#allocation12 + $0xf0] sm:$0xff]
        %v2158 = vld [vmem:[#allocation12 + $0xf8] sm:$0xff]
        %v2159 = vld [vmem:[#allocation12 + $0x100] sm:$0xff]
        %v2160 = vld [vmem:[#allocation12 + $0x108] sm:$0xff]
        %v2161 = vld [vmem:[#allocation12 + $0x110] sm:$0xff]
        %v2162 = vld [vmem:[#allocation12 + $0x118] sm:$0xff]
        %v2163 = vld [vmem:[#allocation12 + $0x120] sm:$0xff]
        %v2164 = vld [vmem:[#allocation12 + $0x128] sm:$0xff]
        %v2165 = vld [vmem:[#allocation12 + $0x130] sm:$0xff]
        %v2166 = vld [vmem:[#allocation12 + $0x138] sm:$0xff]
        %v2167 = vld [vmem:[#allocation12 + $0x140] sm:$0xff]
        %v2168 = vld [vmem:[#allocation12 + $0x148] sm:$0xff]
        %v2169 = vld [vmem:[#allocation12 + $0x150] sm:$0xff]
        %v2170 = vld [vmem:[#allocation12 + $0x158] sm:$0xff]
        %v2171 = vld [vmem:[#allocation12 + $0x160] sm:$0xff]
        %v2172 = vld [vmem:[#allocation12 + $0x168] sm:$0xff]
        %v2173 = vld [vmem:[#allocation12 + $0x170] sm:$0xff]
        %v2174 = vld [vmem:[#allocation12 + $0x178] sm:$0xff]
        %v2175 = vld [vmem:[#allocation12 + $0x180] sm:$0xff]
        %v2176 = vld [vmem:[#allocation12 + $0x188] sm:$0xff]
        %v2177 = vld [vmem:[#allocation12 + $0x190] sm:$0xff]
        %v2178 = vld [vmem:[#allocation12 + $0x198] sm:$0xff]
        %v2179 = vld [vmem:[#allocation12 + $0x1a0] sm:$0xff]
        %v2180 = vld [vmem:[#allocation12 + $0x1a8] sm:$0xff]
        %v2181 = vld [vmem:[#allocation12 + $0x1b0] sm:$0xff]
        %v2182 = vld [vmem:[#allocation12 + $0x1b8] sm:$0xff]
        %v2183 = vld [vmem:[#allocation12 + $0x1c0] sm:$0xff]
        %v2184 = vld [vmem:[#allocation12 + $0x1c8] sm:$0xff]
        %v2185 = vld [vmem:[#allocation12 + $0x1d0] sm:$0xff]
        %v2186 = vld [vmem:[#allocation12 + $0x1d8] sm:$0xff]
        %v2187 = vld [vmem:[#allocation12 + $0x1e0] sm:$0xff]
        %v2188 = vld [vmem:[#allocation12 + $0x1e8] sm:$0xff]
        %v2189 = vld [vmem:[#allocation12 + $0x1f0] sm:$0xff]
        %v2190 = vld [vmem:[#allocation12 + $0x1f8] sm:$0xff]
        %v2191 = vld [vmem:[#allocation12 + $0x200] sm:$0xff]
        %v2192 = vld [vmem:[#allocation12 + $0x208] sm:$0xff]
        %v2193 = vld [vmem:[#allocation12 + $0x210] sm:$0xff]
        %v2194 = vld [vmem:[#allocation12 + $0x218] sm:$0xff]
        %v2195 = vld [vmem:[#allocation12 + $0x220] sm:$0xff]
        %v2196 = vld [vmem:[#allocation12 + $0x228] sm:$0xff]
        %v2197 = vld [vmem:[#allocation12 + $0x230] sm:$0xff]
        %v2198 = vld [vmem:[#allocation12 + $0x238] sm:$0xff]
        %v2199 = vld [vmem:[#allocation12 + $0x240] sm:$0xff]
        %v2200 = vld [vmem:[#allocation12 + $0x248] sm:$0xff]
        %v2201 = vld [vmem:[#allocation12 + $0x250] sm:$0xff]
        %v2202 = vld [vmem:[#allocation12 + $0x258] sm:$0xff]
        %v2203 = vld [vmem:[#allocation12 + $0x260] sm:$0xff]
        %v2204 = vld [vmem:[#allocation12 + $0x268] sm:$0xff]
        %v2205 = vld [vmem:[#allocation12 + $0x270] sm:$0xff]
        %v2206 = vld [vmem:[#allocation12 + $0x278] sm:$0xff]
        %v2207 = vld [vmem:[#allocation12 + $0x280] sm:$0xff]
        %v2208 = vld [vmem:[#allocation12 + $0x288] sm:$0xff]
        %v2209 = vld [vmem:[#allocation12 + $0x290] sm:$0xff]
        %v2210 = vld [vmem:[#allocation12 + $0x298] sm:$0xff]
        %v2211 = vld [vmem:[#allocation12 + $0x2a0] sm:$0xff]
        %v2212 = vld [vmem:[#allocation12 + $0x2a8] sm:$0xff]
        %v2213 = vld [vmem:[#allocation12 + $0x2b0] sm:$0xff]
        %v2214 = vld [vmem:[#allocation12 + $0x2b8] sm:$0xff]
        %v2215 = vld [vmem:[#allocation12 + $0x2c0] sm:$0xff]
        %v2216 = vld [vmem:[#allocation12 + $0x2c8] sm:$0xff]
        %v2217 = vld [vmem:[#allocation12 + $0x2d0] sm:$0xff]
        %v2218 = vld [vmem:[#allocation12 + $0x2d8] sm:$0xff]
        %v2219 = vld [vmem:[#allocation12 + $0x2e0] sm:$0xff]
        %v2220 = vld [vmem:[#allocation12 + $0x2e8] sm:$0xff]
        %v2221 = vld [vmem:[#allocation12 + $0x2f0] sm:$0xff]
        %v2222 = vld [vmem:[#allocation12 + $0x2f8] sm:$0xff]
        %v2223 = vld [vmem:[#allocation12 + $0x300] sm:$0xff]
        %v2224 = vld [vmem:[#allocation12 + $0x308] sm:$0xff]
        %v2225 = vld [vmem:[#allocation12 + $0x310] sm:$0xff]
        %v2226 = vld [vmem:[#allocation12 + $0x318] sm:$0xff]
        %v2227 = vld [vmem:[#allocation12 + $0x320] sm:$0xff]
        %v2228 = vld [vmem:[#allocation12 + $0x328] sm:$0xff]
        %v2229 = vld [vmem:[#allocation12 + $0x330] sm:$0xff]
        %v2230 = vld [vmem:[#allocation12 + $0x338] sm:$0xff]
        %v2231 = vld [vmem:[#allocation12 + $0x340] sm:$0xff]
        %v2232 = vld [vmem:[#allocation12 + $0x348] sm:$0xff]
        %v2233 = vld [vmem:[#allocation12 + $0x350] sm:$0xff]
        %v2234 = vld [vmem:[#allocation12 + $0x358] sm:$0xff]
        %v2235 = vld [vmem:[#allocation12 + $0x360] sm:$0xff]
        %v2236 = vld [vmem:[#allocation12 + $0x368] sm:$0xff]
        %v2237 = vld [vmem:[#allocation12 + $0x370] sm:$0xff]
        %v2238 = vld [vmem:[#allocation12 + $0x378] sm:$0xff]
        %v2239 = vld [vmem:[#allocation12 + $0x380] sm:$0xff]
        %v2240 = vld [vmem:[#allocation12 + $0x388] sm:$0xff]
        %v2241 = vld [vmem:[#allocation12 + $0x390] sm:$0xff]
        %v2242 = vld [vmem:[#allocation12 + $0x398] sm:$0xff]
        %v2243 = vld [vmem:[#allocation12 + $0x3a0] sm:$0xff]
        %v2244 = vld [vmem:[#allocation12 + $0x3a8] sm:$0xff]
        %v2245 = vld [vmem:[#allocation12 + $0x3b0] sm:$0xff]
        %v2246 = vld [vmem:[#allocation12 + $0x3b8] sm:$0xff]
        %v2247 = vld [vmem:[#allocation12 + $0x3c0] sm:$0xff]
        %v2248 = vld [vmem:[#allocation12 + $0x3c8] sm:$0xff]
        %v2249 = vld [vmem:[#allocation12 + $0x3d0] sm:$0xff]
        %v2250 = vld [vmem:[#allocation12 + $0x3d8] sm:$0xff]
        %v2251 = vld [vmem:[#allocation12 + $0x3e0] sm:$0xff]
        %v2252 = vld [vmem:[#allocation12 + $0x3e8] sm:$0xff]
        %v2253 = vld [vmem:[#allocation12 + $0x3f0] sm:$0xff]
        %v2254 = vld [vmem:[#allocation12 + $0x3f8] sm:$0xff]
        %v2255 = vld [vmem:[#allocation12 + $0x400] sm:$0xff]
        %v2256 = vld [vmem:[#allocation12 + $0x408] sm:$0xff]
        %v2257 = vld [vmem:[#allocation12 + $0x410] sm:$0xff]
        %v2258 = vld [vmem:[#allocation12 + $0x418] sm:$0xff]
        %v2259 = vld [vmem:[#allocation12 + $0x420] sm:$0xff]
        %v2260 = vld [vmem:[#allocation12 + $0x428] sm:$0xff]
        %v2261 = vld [vmem:[#allocation12 + $0x430] sm:$0xff]
        %v2262 = vld [vmem:[#allocation12 + $0x438] sm:$0xff]
        %v2263 = vld [vmem:[#allocation12 + $0x440] sm:$0xff]
        %v2264 = vld [vmem:[#allocation12 + $0x448] sm:$0xff]
        %v2265 = vld [vmem:[#allocation12 + $0x450] sm:$0xff]
        %v2266 = vld [vmem:[#allocation12 + $0x458] sm:$0xff]
        %v2267 = vld [vmem:[#allocation12 + $0x460] sm:$0xff]
        %v2268 = vld [vmem:[#allocation12 + $0x468] sm:$0xff]
        %v2269 = vld [vmem:[#allocation12 + $0x470] sm:$0xff]
        %v2270 = vld [vmem:[#allocation12 + $0x478] sm:$0xff]
        %v2271 = vld [vmem:[%s7] sm:$0x1]
        %v2273 = vlaneseq
        %v2274 = vshrl.u32 %v2273, 7
        %v2275 = vsub.s32 0, %v2274
        %v2276 = vrot.slane %v2271, %v2275
        %2278 = vmatprep.subr.mxu0 0.0
        %2279 = vmatpush1.msra.mxu0 %v2127
        %2280 = vmatprep.subr.mxu0 0.0
        %2281 = vmatpush1.msra.mxu0 %v2128
        %2282 = vmatprep.subr.mxu0 0.0
        %2283 = vmatpush1.msra.mxu0 %v2129
        %2284 = vmatprep.subr.mxu0 0.0
        %2285 = vmatpush1.msra.mxu0 %v2130
        %2286 = vmatprep.subr.mxu0 0.0
        %2287 = vmatpush1.msra.mxu0 %v2131
        %2288 = vmatprep.subr.mxu0 0.0
        %2289 = vmatpush1.msra.mxu0 %v2132
        %2290 = vmatprep.subr.mxu0 0.0
        %2291 = vmatpush1.msra.mxu0 %v2133
        %2292 = vmatprep.subr.mxu0 0.0
        %2293 = vmatpush1.msra.mxu0 %v2134
        %2294 = vmatprep.subr.mxu0 0.0
        %2295 = vmatpush1.msra.mxu0 %v2135
        %2296 = vmatprep.subr.mxu0 0.0
        %2297 = vmatpush1.msra.mxu0 %v2136
        %2298 = vmatprep.subr.mxu0 0.0
        %2299 = vmatpush1.msra.mxu0 %v2137
        %2300 = vmatprep.subr.mxu0 0.0
        %2301 = vmatpush1.msra.mxu0 %v2138
        %2302 = vmatprep.subr.mxu0 0.0
        %2303 = vmatpush1.msra.mxu0 %v2139
        %2304 = vmatprep.subr.mxu0 0.0
        %2305 = vmatpush1.msra.mxu0 %v2140
        %2306 = vmatprep.subr.mxu0 0.0
        %2307 = vmatpush1.msra.mxu0 %v2141
        %2308 = vmatprep.subr.mxu0 0.0
        %2309 = vmatpush1.msra.mxu0 %v2142
        %2310 = vmatprep.subr.mxu0 0.0
        %2311 = vmatpush1.msra.mxu0 %v2143
        %2312 = vmatprep.subr.mxu0 0.0
        %2313 = vmatpush1.msra.mxu0 %v2144
        %2314 = vmatprep.subr.mxu0 0.0
        %2315 = vmatpush1.msra.mxu0 %v2145
        %2316 = vmatprep.subr.mxu0 0.0
        %2317 = vmatpush1.msra.mxu0 %v2146
        %2318 = vmatprep.subr.mxu0 0.0
        %2319 = vmatpush1.msra.mxu0 %v2147
        %2320 = vmatprep.subr.mxu0 0.0
        %2321 = vmatpush1.msra.mxu0 %v2148
        %2322 = vmatprep.subr.mxu0 0.0
        %2323 = vmatpush1.msra.mxu0 %v2149
        %2324 = vmatprep.subr.mxu0 0.0
        %2325 = vmatpush1.msra.mxu0 %v2150
        %2326 = vmatprep.subr.mxu0 0.0
        %2327 = vmatpush1.msra.mxu0 %v2151
        %2328 = vmatprep.subr.mxu0 0.0
        %2329 = vmatpush1.msra.mxu0 %v2152
        %2330 = vmatprep.subr.mxu0 0.0
        %2331 = vmatpush1.msra.mxu0 %v2153
        %2332 = vmatprep.subr.mxu0 0.0
        %2333 = vmatpush1.msra.mxu0 %v2154
        %2334 = vmatprep.subr.mxu0 0.0
        %2335 = vmatpush1.msra.mxu0 %v2155
        %2336 = vmatprep.subr.mxu0 0.0
        %2337 = vmatpush1.msra.mxu0 %v2156
        %2338 = vmatprep.subr.mxu0 0.0
        %2339 = vmatpush1.msra.mxu0 %v2157
        %2340 = vmatprep.subr.mxu0 0.0
        %2341 = vmatpush1.msra.mxu0 %v2158
        %2342 = vmatprep.mubr.f32.mxu0 %v1997
        %2343 = vmatmul.mubr.f32.gmra.mrb[0].mxu0 %v1981
        %v2344 = vpop.f32.mrb[0].mxu0
        %v2345 = vadd.f32 %v2276, %v2344
        %v2346 = vpop.f32.mrb[0].mxu0
        %2347 = vmatprep.mubr.f32.mxu0 %v1998
        %2348 = vmatmul.mubr.f32.gmra.mrb[0].mxu0 %v1982
        %v2349 = vpop.f32.mrb[0].mxu0
        %v2350 = vadd.f32 %v2276, %v2349
        %v2351 = vpop.f32.mrb[0].mxu0
        %2352 = vmatprep.mubr.f32.mxu0 %v1999
        %2353 = vmatmul.mubr.f32.gmra.mrb[0].mxu0 %v1983
        %v2354 = vpop.f32.mrb[0].mxu0
        %v2355 = vadd.f32 %v2276, %v2354
        %v2356 = vpop.f32.mrb[0].mxu0
        %2357 = vmatprep.mubr.f32.mxu0 %v2000
        %2358 = vmatmul.mubr.f32.gmra.mrb[0].mxu0 %v1984
        %v2359 = vpop.f32.mrb[0].mxu0
        %v2360 = vadd.f32 %v2276, %v2359
        %v2361 = vpop.f32.mrb[0].mxu0
        %2362 = vmatprep.mubr.f32.mxu0 %v2001
        %2363 = vmatmul.mubr.f32.gmra.mrb[0].mxu0 %v1985
        %v2364 = vpop.f32.mrb[0].mxu0
        %v2365 = vadd.f32 %v2276, %v2364
        %v2366 = vpop.f32.mrb[0].mxu0
        %2367 = vmatprep.mubr.f32.mxu0 %v2002
        %2368 = vmatmul.mubr.f32.gmra.mrb[0].mxu0 %v1986
        %v2369 = vpop.f32.mrb[0].mxu0
        %v2370 = vadd.f32 %v2276, %v2369
        %v2371 = vpop.f32.mrb[0].mxu0
        %2372 = vmatprep.mubr.f32.mxu0 %v2003
        %2373 = vmatmul.mubr.f32.gmra.mrb[0].mxu0 %v1987
        %v2374 = vpop.f32.mrb[0].mxu0
        %v2375 = vadd.f32 %v2276, %v2374
        %v2376 = vpop.f32.mrb[0].mxu0
        %2377 = vmatprep.mubr.f32.mxu0 %v2004
        %2378 = vmatmul.mubr.f32.gmra.mrb[0].mxu0 %v1988
        %v2379 = vpop.f32.mrb[0].mxu0
        %v2380 = vadd.f32 %v2276, %v2379
        %v2381 = vpop.f32.mrb[0].mxu0
        %2382 = vmatprep.mubr.f32.mxu0 %v2005
        %2383 = vmatmul.mubr.f32.gmra.mrb[0].mxu0 %v1989
        %v2384 = vpop.f32.mrb[0].mxu0
        %v2385 = vadd.f32 %v2276, %v2384
        %v2386 = vpop.f32.mrb[0].mxu0
        %2387 = vmatprep.mubr.f32.mxu0 %v2006
        %2388 = vmatmul.mubr.f32.gmra.mrb[0].mxu0 %v1990
        %v2389 = vpop.f32.mrb[0].mxu0
        %v2390 = vadd.f32 %v2276, %v2389
        %v2391 = vpop.f32.mrb[0].mxu0
        %2392 = vmatprep.mubr.f32.mxu0 %v2007
        %2393 = vmatmul.mubr.f32.gmra.mrb[0].mxu0 %v1991
        %v2394 = vpop.f32.mrb[0].mxu0
        %v2395 = vadd.f32 %v2276, %v2394
        %v2396 = vpop.f32.mrb[0].mxu0
        %2397 = vmatprep.mubr.f32.mxu0 %v2008
        %2398 = vmatmul.mubr.f32.gmra.mrb[0].mxu0 %v1992
        %v2399 = vpop.f32.mrb[0].mxu0
        %v2400 = vadd.f32 %v2276, %v2399
        %v2401 = vpop.f32.mrb[0].mxu0
        %2402 = vmatprep.mubr.f32.mxu0 %v2009
        %2403 = vmatmul.mubr.f32.gmra.mrb[0].mxu0 %v1993
        %v2404 = vpop.f32.mrb[0].mxu0
        %v2405 = vadd.f32 %v2276, %v2404
        %v2406 = vpop.f32.mrb[0].mxu0
        %2407 = vmatprep.mubr.f32.mxu0 %v2010
        %2408 = vmatmul.mubr.f32.gmra.mrb[0].mxu0 %v1994
        %v2409 = vpop.f32.mrb[0].mxu0
        %v2410 = vadd.f32 %v2276, %v2409
        %v2411 = vpop.f32.mrb[0].mxu0
        %2412 = vmatprep.mubr.f32.mxu0 %v2011
        %2413 = vmatmul.mubr.f32.gmra.mrb[0].mxu0 %v1995
        %v2414 = vpop.f32.mrb[0].mxu0
        %v2415 = vadd.f32 %v2276, %v2414
        %v2416 = vpop.f32.mrb[0].mxu0
        %2417 = vmatprep.mubr.f32.mxu0 %v2012
        %2418 = vmatmul.mubr.f32.gmra.mrb[0].mxu0 %v1996
        %v2419 = vpop.f32.mrb[0].mxu0
        %v2420 = vadd.f32 %v2276, %v2419
        %v2421 = vpop.f32.mrb[0].mxu0
        %2422 = vdwg.mxu0
        %2423 = vmatprep.subr.mxu0 0.0
        %2424 = vmatpush1.msra.mxu0 %v2159
        %2425 = vmatprep.subr.mxu0 0.0
        %2426 = vmatpush1.msra.mxu0 %v2160
        %2427 = vmatprep.subr.mxu0 0.0
        %2428 = vmatpush1.msra.mxu0 %v2161
        %2429 = vmatprep.subr.mxu0 0.0
        %2430 = vmatpush1.msra.mxu0 %v2162
        %2431 = vmatprep.subr.mxu0 0.0
        %2432 = vmatpush1.msra.mxu0 %v2163
        %2433 = vmatprep.subr.mxu0 0.0
        %2434 = vmatpush1.msra.mxu0 %v2164
        %2435 = vmatprep.subr.mxu0 0.0
        %2436 = vmatpush1.msra.mxu0 %v2165
        %2437 = vmatprep.subr.mxu0 0.0
        %2438 = vmatpush1.msra.mxu0 %v2166
        %2439 = vmatprep.subr.mxu0 0.0
        %2440 = vmatpush1.msra.mxu0 %v2167
        %2441 = vmatprep.subr.mxu0 0.0
        %2442 = vmatpush1.msra.mxu0 %v2168
        %2443 = vmatprep.subr.mxu0 0.0
        %2444 = vmatpush1.msra.mxu0 %v2169
        %2445 = vmatprep.subr.mxu0 0.0
        %2446 = vmatpush1.msra.mxu0 %v2170
        %2447 = vmatprep.subr.mxu0 0.0
        %2448 = vmatpush1.msra.mxu0 %v2171
        %2449 = vmatprep.subr.mxu0 0.0
        %2450 = vmatpush1.msra.mxu0 %v2172
        %2451 = vmatprep.subr.mxu0 0.0
        %2452 = vmatpush1.msra.mxu0 %v2173
        %2453 = vmatprep.subr.mxu0 0.0
        %2454 = vmatpush1.msra.mxu0 %v2174
        %2455 = vmatprep.subr.mxu0 0.0
        %2456 = vmatpush1.msra.mxu0 %v2175
        %2457 = vmatprep.subr.mxu0 0.0
        %2458 = vmatpush1.msra.mxu0 %v2176
        %2459 = vmatprep.subr.mxu0 0.0
        %2460 = vmatpush1.msra.mxu0 %v2177
        %2461 = vmatprep.subr.mxu0 0.0
        %2462 = vmatpush1.msra.mxu0 %v2178
        %2463 = vmatprep.subr.mxu0 0.0
        %2464 = vmatpush1.msra.mxu0 %v2179
        %2465 = vmatprep.subr.mxu0 0.0
        %2466 = vmatpush1.msra.mxu0 %v2180
        %2467 = vmatprep.subr.mxu0 0.0
        %2468 = vmatpush1.msra.mxu0 %v2181
        %2469 = vmatprep.subr.mxu0 0.0
        %2470 = vmatpush1.msra.mxu0 %v2182
        %2471 = vmatprep.subr.mxu0 0.0
        %2472 = vmatpush1.msra.mxu0 %v2183
        %2473 = vmatprep.subr.mxu0 0.0
        %2474 = vmatpush1.msra.mxu0 %v2184
        %2475 = vmatprep.subr.mxu0 0.0
        %2476 = vmatpush1.msra.mxu0 %v2185
        %2477 = vmatprep.subr.mxu0 0.0
        %2478 = vmatpush1.msra.mxu0 %v2186
        %2479 = vmatprep.subr.mxu0 0.0
        %2480 = vmatpush1.msra.mxu0 %v2187
        %2481 = vmatprep.subr.mxu0 0.0
        %2482 = vmatpush1.msra.mxu0 %v2188
        %2483 = vmatprep.subr.mxu0 0.0
        %2484 = vmatpush1.msra.mxu0 %v2189
        %2485 = vmatprep.subr.mxu0 0.0
        %2486 = vmatpush1.msra.mxu0 %v2190
        %2487 = vmatprep.mubr.f32.mxu0 %v2030
        %2488 = vmatmul.mubr.f32.gmra.mrb[0].mxu0 %v2013
        %v2489 = vpop.f32.mrb[0].mxu0
        %v2490 = vadd.f32 %v2345, %v2489
        %v2491 = vpop.f32.mrb[0].mxu0
        %2492 = vmatprep.mubr.f32.mxu0 %v2031
        %2493 = vmatmul.mubr.f32.gmra.mrb[0].mxu0 %v2014
        %v2494 = vpop.f32.mrb[0].mxu0
        %v2495 = vadd.f32 %v2350, %v2494
        %v2496 = vpop.f32.mrb[0].mxu0
        %2497 = vmatprep.mubr.f32.mxu0 %v2032
        %2498 = vmatmul.mubr.f32.gmra.mrb[0].mxu0 %v2015
        %v2499 = vpop.f32.mrb[0].mxu0
        %v2500 = vadd.f32 %v2355, %v2499
        %v2501 = vpop.f32.mrb[0].mxu0
        %2502 = vmatprep.mubr.f32.mxu0 %v2033
        %2503 = vmatmul.mubr.f32.gmra.mrb[0].mxu0 %v2016
        %v2504 = vpop.f32.mrb[0].mxu0
        %v2505 = vadd.f32 %v2360, %v2504
        %v2506 = vpop.f32.mrb[0].mxu0
        %2507 = vmatprep.mubr.f32.mxu0 %v2034
        %2508 = vmatmul.mubr.f32.gmra.mrb[0].mxu0 %v2017
        %v2509 = vpop.f32.mrb[0].mxu0
        %v2510 = vadd.f32 %v2365, %v2509
        %v2511 = vpop.f32.mrb[0].mxu0
        %2512 = vmatprep.mubr.f32.mxu0 %v2035
        %2513 = vmatmul.mubr.f32.gmra.mrb[0].mxu0 %v2018
        %v2514 = vpop.f32.mrb[0].mxu0
        %v2515 = vadd.f32 %v2370, %v2514
        %v2516 = vpop.f32.mrb[0].mxu0
        %2517 = vmatprep.mubr.f32.mxu0 %v2036
        %2518 = vmatmul.mubr.f32.gmra.mrb[0].mxu0 %v2019
        %v2519 = vpop.f32.mrb[0].mxu0
        %v2520 = vadd.f32 %v2375, %v2519
        %v2521 = vpop.f32.mrb[0].mxu0
        %2522 = vmatprep.mubr.f32.mxu0 %v2037
        %2523 = vmatmul.mubr.f32.gmra.mrb[0].mxu0 %v2020
        %v2524 = vpop.f32.mrb[0].mxu0
        %v2525 = vadd.f32 %v2380, %v2524
        %v2526 = vpop.f32.mrb[0].mxu0
        %2527 = vmatprep.mubr.f32.mxu0 %v2038
        %2528 = vmatmul.mubr.f32.gmra.mrb[0].mxu0 %v2021
        %v2529 = vpop.f32.mrb[0].mxu0
        %v2530 = vadd.f32 %v2385, %v2529
        %v2531 = vpop.f32.mrb[0].mxu0
        %2532 = vmatprep.mubr.f32.mxu0 %v2039
        %2533 = vmatmul.mubr.f32.gmra.mrb[0].mxu0 %v2022
        %v2534 = vpop.f32.mrb[0].mxu0
        %v2535 = vadd.f32 %v2390, %v2534
        %v2536 = vpop.f32.mrb[0].mxu0
        %2537 = vmatprep.mubr.f32.mxu0 %v2040
        %2538 = vmatmul.mubr.f32.gmra.mrb[0].mxu0 %v2023
        %v2539 = vpop.f32.mrb[0].mxu0
        %v2540 = vadd.f32 %v2395, %v2539
        %v2541 = vpop.f32.mrb[0].mxu0
        %2542 = vmatprep.mubr.f32.mxu0 %v2041
        %2543 = vmatmul.mubr.f32.gmra.mrb[0].mxu0 %v2024
        %v2544 = vpop.f32.mrb[0].mxu0
        %v2545 = vadd.f32 %v2400, %v2544
        %v2546 = vpop.f32.mrb[0].mxu0
        %2547 = vmatprep.mubr.f32.mxu0 %v2042
        %2548 = vmatmul.mubr.f32.gmra.mrb[0].mxu0 %v2025
        %v2549 = vpop.f32.mrb[0].mxu0
        %v2550 = vadd.f32 %v2405, %v2549
        %v2551 = vpop.f32.mrb[0].mxu0
        %2552 = vmatprep.mubr.f32.mxu0 %v2043
        %2553 = vmatmul.mubr.f32.gmra.mrb[0].mxu0 %v2026
        %v2554 = vpop.f32.mrb[0].mxu0
        %v2555 = vadd.f32 %v2410, %v2554
        %v2556 = vpop.f32.mrb[0].mxu0
        %2557 = vmatprep.mubr.f32.mxu0 %v2044
        %2558 = vmatmul.mubr.f32.gmra.mrb[0].mxu0 %v2027
        %v2559 = vpop.f32.mrb[0].mxu0
        %v2560 = vadd.f32 %v2415, %v2559
        %v2561 = vpop.f32.mrb[0].mxu0
        %2562 = vmatprep.mubr.f32.mxu0 %v2045
        %2563 = vmatmul.mubr.f32.gmra.mrb[0].mxu0 %v2028
        %v2564 = vpop.f32.mrb[0].mxu0
        %v2565 = vadd.f32 %v2420, %v2564
        %v2566 = vpop.f32.mrb[0].mxu0
        %2567 = vdwg.mxu0
        %2568 = vmatprep.subr.mxu0 0.0
        %2569 = vmatpush1.msra.mxu0 %v2191
        %2570 = vmatprep.subr.mxu0 0.0
        %2571 = vmatpush1.msra.mxu0 %v2192
        %2572 = vmatprep.subr.mxu0 0.0
        %2573 = vmatpush1.msra.mxu0 %v2193
        %2574 = vmatprep.subr.mxu0 0.0
        %2575 = vmatpush1.msra.mxu0 %v2194
        %2576 = vmatprep.subr.mxu0 0.0
        %2577 = vmatpush1.msra.mxu0 %v2195
        %2578 = vmatprep.subr.mxu0 0.0
        %2579 = vmatpush1.msra.mxu0 %v2196
        %2580 = vmatprep.subr.mxu0 0.0
        %2581 = vmatpush1.msra.mxu0 %v2197
        %2582 = vmatprep.subr.mxu0 0.0
        %2583 = vmatpush1.msra.mxu0 %v2198
        %2584 = vmatprep.subr.mxu0 0.0
        %2585 = vmatpush1.msra.mxu0 %v2199
        %2586 = vmatprep.subr.mxu0 0.0
        %2587 = vmatpush1.msra.mxu0 %v2200
        %2588 = vmatprep.subr.mxu0 0.0
        %2589 = vmatpush1.msra.mxu0 %v2201
        %2590 = vmatprep.subr.mxu0 0.0
        %2591 = vmatpush1.msra.mxu0 %v2202
        %2592 = vmatprep.subr.mxu0 0.0
        %2593 = vmatpush1.msra.mxu0 %v2203
        %2594 = vmatprep.subr.mxu0 0.0
        %2595 = vmatpush1.msra.mxu0 %v2204
        %2596 = vmatprep.subr.mxu0 0.0
        %2597 = vmatpush1.msra.mxu0 %v2205
        %2598 = vmatprep.subr.mxu0 0.0
        %2599 = vmatpush1.msra.mxu0 %v2206
        %2600 = vmatprep.subr.mxu0 0.0
        %2601 = vmatpush1.msra.mxu0 %v2207
        %2602 = vmatprep.subr.mxu0 0.0
        %2603 = vmatpush1.msra.mxu0 %v2208
        %2604 = vmatprep.subr.mxu0 0.0
        %2605 = vmatpush1.msra.mxu0 %v2209
        %2606 = vmatprep.subr.mxu0 0.0
        %2607 = vmatpush1.msra.mxu0 %v2210
        %2608 = vmatprep.subr.mxu0 0.0
        %2609 = vmatpush1.msra.mxu0 %v2211
        %2610 = vmatprep.subr.mxu0 0.0
        %2611 = vmatpush1.msra.mxu0 %v2212
        %2612 = vmatprep.subr.mxu0 0.0
        %2613 = vmatpush1.msra.mxu0 %v2213
        %2614 = vmatprep.subr.mxu0 0.0
        %2615 = vmatpush1.msra.mxu0 %v2214
        %2616 = vmatprep.subr.mxu0 0.0
        %2617 = vmatpush1.msra.mxu0 %v2215
        %2618 = vmatprep.subr.mxu0 0.0
        %2619 = vmatpush1.msra.mxu0 %v2216
        %2620 = vmatprep.subr.mxu0 0.0
        %2621 = vmatpush1.msra.mxu0 %v2217
        %2622 = vmatprep.subr.mxu0 0.0
        %2623 = vmatpush1.msra.mxu0 %v2218
        %2624 = vmatprep.subr.mxu0 0.0
        %2625 = vmatpush1.msra.mxu0 %v2219
        %2626 = vmatprep.subr.mxu0 0.0
        %2627 = vmatpush1.msra.mxu0 %v2220
        %2628 = vmatprep.subr.mxu0 0.0
        %2629 = vmatpush1.msra.mxu0 %v2221
        %2630 = vmatprep.subr.mxu0 0.0
        %2631 = vmatpush1.msra.mxu0 %v2222
        %2632 = vmatprep.mubr.f32.mxu0 %v2062
        %2633 = vmatmul.mubr.f32.gmra.mrb[0].mxu0 %v2046
        %v2634 = vpop.f32.mrb[0].mxu0
        %v2635 = vadd.f32 %v2490, %v2634
        %v2636 = vpop.f32.mrb[0].mxu0
        %2637 = vmatprep.mubr.f32.mxu0 %v2063
        %2638 = vmatmul.mubr.f32.gmra.mrb[0].mxu0 %v2047
        %v2639 = vpop.f32.mrb[0].mxu0
        %v2640 = vadd.f32 %v2495, %v2639
        %v2641 = vpop.f32.mrb[0].mxu0
        %2642 = vmatprep.mubr.f32.mxu0 %v2064
        %2643 = vmatmul.mubr.f32.gmra.mrb[0].mxu0 %v2048
        %v2644 = vpop.f32.mrb[0].mxu0
        %v2645 = vadd.f32 %v2500, %v2644
        %v2646 = vpop.f32.mrb[0].mxu0
        %2647 = vmatprep.mubr.f32.mxu0 %v2065
        %2648 = vmatmul.mubr.f32.gmra.mrb[0].mxu0 %v2049
        %v2649 = vpop.f32.mrb[0].mxu0
        %v2650 = vadd.f32 %v2505, %v2649
        %v2651 = vpop.f32.mrb[0].mxu0
        %2652 = vmatprep.mubr.f32.mxu0 %v2066
        %2653 = vmatmul.mubr.f32.gmra.mrb[0].mxu0 %v2050
        %v2654 = vpop.f32.mrb[0].mxu0
        %v2655 = vadd.f32 %v2510, %v2654
        %v2656 = vpop.f32.mrb[0].mxu0
        %2657 = vmatprep.mubr.f32.mxu0 %v2067
        %2658 = vmatmul.mubr.f32.gmra.mrb[0].mxu0 %v2051
        %v2659 = vpop.f32.mrb[0].mxu0
        %v2660 = vadd.f32 %v2515, %v2659
        %v2661 = vpop.f32.mrb[0].mxu0
        %2662 = vmatprep.mubr.f32.mxu0 %v2068
        %2663 = vmatmul.mubr.f32.gmra.mrb[0].mxu0 %v2052
        %v2664 = vpop.f32.mrb[0].mxu0
        %v2665 = vadd.f32 %v2520, %v2664
        %v2666 = vpop.f32.mrb[0].mxu0
        %2667 = vmatprep.mubr.f32.mxu0 %v2069
        %2668 = vmatmul.mubr.f32.gmra.mrb[0].mxu0 %v2053
        %v2669 = vpop.f32.mrb[0].mxu0
        %v2670 = vadd.f32 %v2525, %v2669
        %v2671 = vpop.f32.mrb[0].mxu0
        %2672 = vmatprep.mubr.f32.mxu0 %v2070
        %2673 = vmatmul.mubr.f32.gmra.mrb[0].mxu0 %v2054
        %v2674 = vpop.f32.mrb[0].mxu0
        %v2675 = vadd.f32 %v2530, %v2674
        %v2676 = vpop.f32.mrb[0].mxu0
        %2677 = vmatprep.mubr.f32.mxu0 %v2071
        %2678 = vmatmul.mubr.f32.gmra.mrb[0].mxu0 %v2055
        %v2679 = vpop.f32.mrb[0].mxu0
        %v2680 = vadd.f32 %v2535, %v2679
        %v2681 = vpop.f32.mrb[0].mxu0
        %2682 = vmatprep.mubr.f32.mxu0 %v2072
        %2683 = vmatmul.mubr.f32.gmra.mrb[0].mxu0 %v2056
        %v2684 = vpop.f32.mrb[0].mxu0
        %v2685 = vadd.f32 %v2540, %v2684
        %v2686 = vpop.f32.mrb[0].mxu0
        %2687 = vmatprep.mubr.f32.mxu0 %v2073
        %2688 = vmatmul.mubr.f32.gmra.mrb[0].mxu0 %v2057
        %v2689 = vpop.f32.mrb[0].mxu0
        %v2690 = vadd.f32 %v2545, %v2689
        %v2691 = vpop.f32.mrb[0].mxu0
        %2692 = vmatprep.mubr.f32.mxu0 %v2074
        %2693 = vmatmul.mubr.f32.gmra.mrb[0].mxu0 %v2058
        %v2694 = vpop.f32.mrb[0].mxu0
        %v2695 = vadd.f32 %v2550, %v2694
        %v2696 = vpop.f32.mrb[0].mxu0
        %2697 = vmatprep.mubr.f32.mxu0 %v2075
        %2698 = vmatmul.mubr.f32.gmra.mrb[0].mxu0 %v2059
        %v2699 = vpop.f32.mrb[0].mxu0
        %v2700 = vadd.f32 %v2555, %v2699
        %v2701 = vpop.f32.mrb[0].mxu0
        %2702 = vmatprep.mubr.f32.mxu0 %v2076
        %2703 = vmatmul.mubr.f32.gmra.mrb[0].mxu0 %v2060
        %v2704 = vpop.f32.mrb[0].mxu0
        %v2705 = vadd.f32 %v2560, %v2704
        %v2706 = vpop.f32.mrb[0].mxu0
        %2707 = vmatprep.mubr.f32.mxu0 %v2077
        %2708 = vmatmul.mubr.f32.gmra.mrb[0].mxu0 %v2061
        %v2709 = vpop.f32.mrb[0].mxu0
        %v2710 = vadd.f32 %v2565, %v2709
        %v2711 = vpop.f32.mrb[0].mxu0
        %2712 = vdwg.mxu0
        %2713 = vmatprep.subr.mxu0 0.0
        %2714 = vmatpush1.msra.mxu0 %v2223
        %2715 = vmatprep.subr.mxu0 0.0
        %2716 = vmatpush1.msra.mxu0 %v2224
        %2717 = vmatprep.subr.mxu0 0.0
        %2718 = vmatpush1.msra.mxu0 %v2225
        %2719 = vmatprep.subr.mxu0 0.0
        %2720 = vmatpush1.msra.mxu0 %v2226
        %2721 = vmatprep.subr.mxu0 0.0
        %2722 = vmatpush1.msra.mxu0 %v2227
        %2723 = vmatprep.subr.mxu0 0.0
        %2724 = vmatpush1.msra.mxu0 %v2228
        %2725 = vmatprep.subr.mxu0 0.0
        %2726 = vmatpush1.msra.mxu0 %v2229
        %2727 = vmatprep.subr.mxu0 0.0
        %2728 = vmatpush1.msra.mxu0 %v2230
        %2729 = vmatprep.subr.mxu0 0.0
        %2730 = vmatpush1.msra.mxu0 %v2231
        %2731 = vmatprep.subr.mxu0 0.0
        %2732 = vmatpush1.msra.mxu0 %v2232
        %2733 = vmatprep.subr.mxu0 0.0
        %2734 = vmatpush1.msra.mxu0 %v2233
        %2735 = vmatprep.subr.mxu0 0.0
        %2736 = vmatpush1.msra.mxu0 %v2234
        %2737 = vmatprep.subr.mxu0 0.0
        %2738 = vmatpush1.msra.mxu0 %v2235
        %2739 = vmatprep.subr.mxu0 0.0
        %2740 = vmatpush1.msra.mxu0 %v2236
        %2741 = vmatprep.subr.mxu0 0.0
        %2742 = vmatpush1.msra.mxu0 %v2237
        %2743 = vmatprep.subr.mxu0 0.0
        %2744 = vmatpush1.msra.mxu0 %v2238
        %2745 = vmatprep.subr.mxu0 0.0
        %2746 = vmatpush1.msra.mxu0 %v2239
        %2747 = vmatprep.subr.mxu0 0.0
        %2748 = vmatpush1.msra.mxu0 %v2240
        %2749 = vmatprep.subr.mxu0 0.0
        %2750 = vmatpush1.msra.mxu0 %v2241
        %2751 = vmatprep.subr.mxu0 0.0
        %2752 = vmatpush1.msra.mxu0 %v2242
        %2753 = vmatprep.subr.mxu0 0.0
        %2754 = vmatpush1.msra.mxu0 %v2243
        %2755 = vmatprep.subr.mxu0 0.0
        %2756 = vmatpush1.msra.mxu0 %v2244
        %2757 = vmatprep.subr.mxu0 0.0
        %2758 = vmatpush1.msra.mxu0 %v2245
        %2759 = vmatprep.subr.mxu0 0.0
        %2760 = vmatpush1.msra.mxu0 %v2246
        %2761 = vmatprep.subr.mxu0 0.0
        %2762 = vmatpush1.msra.mxu0 %v2247
        %2763 = vmatprep.subr.mxu0 0.0
        %2764 = vmatpush1.msra.mxu0 %v2248
        %2765 = vmatprep.subr.mxu0 0.0
        %2766 = vmatpush1.msra.mxu0 %v2249
        %2767 = vmatprep.subr.mxu0 0.0
        %2768 = vmatpush1.msra.mxu0 %v2250
        %2769 = vmatprep.subr.mxu0 0.0
        %2770 = vmatpush1.msra.mxu0 %v2251
        %2771 = vmatprep.subr.mxu0 0.0
        %2772 = vmatpush1.msra.mxu0 %v2252
        %2773 = vmatprep.subr.mxu0 0.0
        %2774 = vmatpush1.msra.mxu0 %v2253
        %2775 = vmatprep.subr.mxu0 0.0
        %2776 = vmatpush1.msra.mxu0 %v2254
        %2777 = vmatprep.mubr.f32.mxu0 %v2095
        %2778 = vmatmul.mubr.f32.gmra.mrb[0].mxu0 %v2079
        %v2779 = vpop.f32.mrb[0].mxu0
        %v2780 = vadd.f32 %v2635, %v2779
        %v2781 = vpop.f32.mrb[0].mxu0
        %2782 = vmatprep.mubr.f32.mxu0 %v2096
        %2783 = vmatmul.mubr.f32.gmra.mrb[0].mxu0 %v2080
        %v2784 = vpop.f32.mrb[0].mxu0
        %v2785 = vadd.f32 %v2640, %v2784
        %v2786 = vpop.f32.mrb[0].mxu0
        %2787 = vmatprep.mubr.f32.mxu0 %v2097
        %2788 = vmatmul.mubr.f32.gmra.mrb[0].mxu0 %v2081
        %v2789 = vpop.f32.mrb[0].mxu0
        %v2790 = vadd.f32 %v2645, %v2789
        %v2791 = vpop.f32.mrb[0].mxu0
        %2792 = vmatprep.mubr.f32.mxu0 %v2098
        %2793 = vmatmul.mubr.f32.gmra.mrb[0].mxu0 %v2082
        %v2794 = vpop.f32.mrb[0].mxu0
        %v2795 = vadd.f32 %v2650, %v2794
        %v2796 = vpop.f32.mrb[0].mxu0
        %2797 = vmatprep.mubr.f32.mxu0 %v2099
        %2798 = vmatmul.mubr.f32.gmra.mrb[0].mxu0 %v2083
        %v2799 = vpop.f32.mrb[0].mxu0
        %v2800 = vadd.f32 %v2655, %v2799
        %v2801 = vpop.f32.mrb[0].mxu0
        %2802 = vmatprep.mubr.f32.mxu0 %v2100
        %2803 = vmatmul.mubr.f32.gmra.mrb[0].mxu0 %v2084
        %v2804 = vpop.f32.mrb[0].mxu0
        %v2805 = vadd.f32 %v2660, %v2804
        %v2806 = vpop.f32.mrb[0].mxu0
        %2807 = vmatprep.mubr.f32.mxu0 %v2101
        %2808 = vmatmul.mubr.f32.gmra.mrb[0].mxu0 %v2085
        %v2809 = vpop.f32.mrb[0].mxu0
        %v2810 = vadd.f32 %v2665, %v2809
        %v2811 = vpop.f32.mrb[0].mxu0
        %2812 = vmatprep.mubr.f32.mxu0 %v2102
        %2813 = vmatmul.mubr.f32.gmra.mrb[0].mxu0 %v2086
        %v2814 = vpop.f32.mrb[0].mxu0
        %v2815 = vadd.f32 %v2670, %v2814
        %v2816 = vpop.f32.mrb[0].mxu0
        %2817 = vmatprep.mubr.f32.mxu0 %v2103
        %2818 = vmatmul.mubr.f32.gmra.mrb[0].mxu0 %v2087
        %v2819 = vpop.f32.mrb[0].mxu0
        %v2820 = vadd.f32 %v2675, %v2819
        %v2821 = vpop.f32.mrb[0].mxu0
        %2822 = vmatprep.mubr.f32.mxu0 %v2104
        %2823 = vmatmul.mubr.f32.gmra.mrb[0].mxu0 %v2088
        %v2824 = vpop.f32.mrb[0].mxu0
        %v2825 = vadd.f32 %v2680, %v2824
        %v2826 = vpop.f32.mrb[0].mxu0
        %2827 = vmatprep.mubr.f32.mxu0 %v2105
        %2828 = vmatmul.mubr.f32.gmra.mrb[0].mxu0 %v2089
        %v2829 = vpop.f32.mrb[0].mxu0
        %v2830 = vadd.f32 %v2685, %v2829
        %v2831 = vpop.f32.mrb[0].mxu0
        %2832 = vmatprep.mubr.f32.mxu0 %v2106
        %2833 = vmatmul.mubr.f32.gmra.mrb[0].mxu0 %v2090
        %v2834 = vpop.f32.mrb[0].mxu0
        %v2835 = vadd.f32 %v2690, %v2834
        %v2836 = vpop.f32.mrb[0].mxu0
        %2837 = vmatprep.mubr.f32.mxu0 %v2107
        %2838 = vmatmul.mubr.f32.gmra.mrb[0].mxu0 %v2091
        %v2839 = vpop.f32.mrb[0].mxu0
        %v2840 = vadd.f32 %v2695, %v2839
        %v2841 = vpop.f32.mrb[0].mxu0
        %2842 = vmatprep.mubr.f32.mxu0 %v2108
        %2843 = vmatmul.mubr.f32.gmra.mrb[0].mxu0 %v2092
        %v2844 = vpop.f32.mrb[0].mxu0
        %v2845 = vadd.f32 %v2700, %v2844
        %v2846 = vpop.f32.mrb[0].mxu0
        %2847 = vmatprep.mubr.f32.mxu0 %v2109
        %2848 = vmatmul.mubr.f32.gmra.mrb[0].mxu0 %v2093
        %v2849 = vpop.f32.mrb[0].mxu0
        %v2850 = vadd.f32 %v2705, %v2849
        %v2851 = vpop.f32.mrb[0].mxu0
        %2852 = vmatprep.mubr.f32.mxu0 %v2110
        %2853 = vmatmul.mubr.f32.gmra.mrb[0].mxu0 %v2094
        %v2854 = vpop.f32.mrb[0].mxu0
        %v2855 = vadd.f32 %v2710, %v2854
        %v2856 = vpop.f32.mrb[0].mxu0
        %2857 = vdwg.mxu0
        %2858 = vmatprep.subr.mxu0 0.0
        %2859 = vmatpush1.msra.mxu0 %v2255
        %2860 = vmatprep.subr.mxu0 0.0
        %2861 = vmatpush1.msra.mxu0 %v2256
        %2862 = vmatprep.subr.mxu0 0.0
        %2863 = vmatpush1.msra.mxu0 %v2257
        %2864 = vmatprep.subr.mxu0 0.0
        %2865 = vmatpush1.msra.mxu0 %v2258
        %2866 = vmatprep.subr.mxu0 0.0
        %2867 = vmatpush1.msra.mxu0 %v2259
        %2868 = vmatprep.subr.mxu0 0.0
        %2869 = vmatpush1.msra.mxu0 %v2260
        %2870 = vmatprep.subr.mxu0 0.0
        %2871 = vmatpush1.msra.mxu0 %v2261
        %2872 = vmatprep.subr.mxu0 0.0
        %2873 = vmatpush1.msra.mxu0 %v2262
        %2874 = vmatprep.subr.mxu0 0.0
        %2875 = vmatpush1.msra.mxu0 %v2263
        %2876 = vmatprep.subr.mxu0 0.0
        %2877 = vmatpush1.msra.mxu0 %v2264
        %2878 = vmatprep.subr.mxu0 0.0
        %2879 = vmatpush1.msra.mxu0 %v2265
        %2880 = vmatprep.subr.mxu0 0.0
        %2881 = vmatpush1.msra.mxu0 %v2266
        %2882 = vmatprep.subr.mxu0 0.0
        %2883 = vmatpush1.msra.mxu0 %v2267
        %2884 = vmatprep.subr.mxu0 0.0
        %2885 = vmatpush1.msra.mxu0 %v2268
        %2886 = vmatprep.subr.mxu0 0.0
        %2887 = vmatpush1.msra.mxu0 %v2269
        %2888 = vmatprep.subr.mxu0 0.0
        %2889 = vmatpush1.msra.mxu0 %v2270
        %2890 = vmatprep.subr.mxu0 0.0
        %2891 = vmatpush1.msra.mxu0 0.0
        %2892 = vmatprep.subr.mxu0 0.0
        %2893 = vmatpush1.msra.mxu0 0.0
        %2894 = vmatprep.subr.mxu0 0.0
        %2895 = vmatpush1.msra.mxu0 0.0
        %2896 = vmatprep.subr.mxu0 0.0
        %2897 = vmatpush1.msra.mxu0 0.0
        %2898 = vmatprep.subr.mxu0 0.0
        %2899 = vmatpush1.msra.mxu0 0.0
        %2900 = vmatprep.subr.mxu0 0.0
        %2901 = vmatpush1.msra.mxu0 0.0
        %2902 = vmatprep.subr.mxu0 0.0
        %2903 = vmatpush1.msra.mxu0 0.0
        %2904 = vmatprep.subr.mxu0 0.0
        %2905 = vmatpush1.msra.mxu0 0.0
        %2906 = vmatprep.subr.mxu0 0.0
        %2907 = vmatpush1.msra.mxu0 0.0
        %2908 = vmatprep.subr.mxu0 0.0
        %2909 = vmatpush1.msra.mxu0 0.0
        %2910 = vmatprep.subr.mxu0 0.0
        %2911 = vmatpush1.msra.mxu0 0.0
        %2912 = vmatprep.subr.mxu0 0.0
        %2913 = vmatpush1.msra.mxu0 0.0
        %2914 = vmatprep.subr.mxu0 0.0
        %2915 = vmatpush1.msra.mxu0 0.0
        %2916 = vmatprep.subr.mxu0 0.0
        %2917 = vmatpush1.msra.mxu0 0.0
        %2918 = vmatprep.subr.mxu0 0.0
        %2919 = vmatpush1.msra.mxu0 0.0
        %2920 = vmatprep.subr.mxu0 0.0
        %2921 = vmatpush1.msra.mxu0 0.0
        %2922 = vmatprep.mubr.f32.mxu0 0.0
        %2923 = vmatmul.mubr.f32.gmra.mrb[0].mxu0 %v2111
        %v2924 = vpop.f32.mrb[0].mxu0
        %v2925 = vadd.f32 %v2780, %v2924
        %v2926 = vpop.f32.mrb[0].mxu0
        %2927 = vmatprep.mubr.f32.mxu0 0.0
        %2928 = vmatmul.mubr.f32.gmra.mrb[0].mxu0 %v2112
        %v2929 = vpop.f32.mrb[0].mxu0
        %v2930 = vadd.f32 %v2785, %v2929
        %v2931 = vpop.f32.mrb[0].mxu0
        %2932 = vmatprep.mubr.f32.mxu0 0.0
        %2933 = vmatmul.mubr.f32.gmra.mrb[0].mxu0 %v2113
        %v2934 = vpop.f32.mrb[0].mxu0
        %v2935 = vadd.f32 %v2790, %v2934
        %v2936 = vpop.f32.mrb[0].mxu0
        %2937 = vmatprep.mubr.f32.mxu0 0.0
        %2938 = vmatmul.mubr.f32.gmra.mrb[0].mxu0 %v2114
        %v2939 = vpop.f32.mrb[0].mxu0
        %v2940 = vadd.f32 %v2795, %v2939
        %v2941 = vpop.f32.mrb[0].mxu0
        %2942 = vmatprep.mubr.f32.mxu0 0.0
        %2943 = vmatmul.mubr.f32.gmra.mrb[0].mxu0 %v2115
        %v2944 = vpop.f32.mrb[0].mxu0
        %v2945 = vadd.f32 %v2800, %v2944
        %v2946 = vpop.f32.mrb[0].mxu0
        %2947 = vmatprep.mubr.f32.mxu0 0.0
        %2948 = vmatmul.mubr.f32.gmra.mrb[0].mxu0 %v2116
        %v2949 = vpop.f32.mrb[0].mxu0
        %v2950 = vadd.f32 %v2805, %v2949
        %v2951 = vpop.f32.mrb[0].mxu0
        %2952 = vmatprep.mubr.f32.mxu0 0.0
        %2953 = vmatmul.mubr.f32.gmra.mrb[0].mxu0 %v2117
        %v2954 = vpop.f32.mrb[0].mxu0
        %v2955 = vadd.f32 %v2810, %v2954
        %v2956 = vpop.f32.mrb[0].mxu0
        %2957 = vmatprep.mubr.f32.mxu0 0.0
        %2958 = vmatmul.mubr.f32.gmra.mrb[0].mxu0 %v2118
        %v2959 = vpop.f32.mrb[0].mxu0
        %v2960 = vadd.f32 %v2815, %v2959
        %v2961 = vpop.f32.mrb[0].mxu0
        %2962 = vmatprep.mubr.f32.mxu0 0.0
        %2963 = vmatmul.mubr.f32.gmra.mrb[0].mxu0 %v2119
        %v2964 = vpop.f32.mrb[0].mxu0
        %v2965 = vadd.f32 %v2820, %v2964
        %v2966 = vpop.f32.mrb[0].mxu0
        %2967 = vmatprep.mubr.f32.mxu0 0.0
        %2968 = vmatmul.mubr.f32.gmra.mrb[0].mxu0 %v2120
        %v2969 = vpop.f32.mrb[0].mxu0
        %v2970 = vadd.f32 %v2825, %v2969
        %v2971 = vpop.f32.mrb[0].mxu0
        %2972 = vmatprep.mubr.f32.mxu0 0.0
        %2973 = vmatmul.mubr.f32.gmra.mrb[0].mxu0 %v2121
        %v2974 = vpop.f32.mrb[0].mxu0
        %v2975 = vadd.f32 %v2830, %v2974
        %v2976 = vpop.f32.mrb[0].mxu0
        %2977 = vmatprep.mubr.f32.mxu0 0.0
        %2978 = vmatmul.mubr.f32.gmra.mrb[0].mxu0 %v2122
        %v2979 = vpop.f32.mrb[0].mxu0
        %v2980 = vadd.f32 %v2835, %v2979
        %v2981 = vpop.f32.mrb[0].mxu0
        %2982 = vmatprep.mubr.f32.mxu0 0.0
        %2983 = vmatmul.mubr.f32.gmra.mrb[0].mxu0 %v2123
        %v2984 = vpop.f32.mrb[0].mxu0
        %v2985 = vadd.f32 %v2840, %v2984
        %v2986 = vpop.f32.mrb[0].mxu0
        %2987 = vmatprep.mubr.f32.mxu0 0.0
        %2988 = vmatmul.mubr.f32.gmra.mrb[0].mxu0 %v2124
        %v2989 = vpop.f32.mrb[0].mxu0
        %v2990 = vadd.f32 %v2845, %v2989
        %v2991 = vpop.f32.mrb[0].mxu0
        %2992 = vmatprep.mubr.f32.mxu0 0.0
        %2993 = vmatmul.mubr.f32.gmra.mrb[0].mxu0 %v2125
        %v2994 = vpop.f32.mrb[0].mxu0
        %v2995 = vadd.f32 %v2850, %v2994
        %v2996 = vpop.f32.mrb[0].mxu0
        %2997 = vmatprep.mubr.f32.mxu0 0.0
        %2998 = vmatmul.mubr.f32.gmra.mrb[0].mxu0 %v2126
        %v2999 = vpop.f32.mrb[0].mxu0
        %v3000 = vadd.f32 %v2855, %v2999
        %v3001 = vpop.f32.mrb[0].mxu0
        %3002 = vdwg.mxu0
        %v3003 = vmax.f32 %v2925, 0.0
        %v3004 = vmax.f32 %v2930, 0.0
        %v3005 = vmax.f32 %v2935, 0.0
        %v3006 = vmax.f32 %v2940, 0.0
        %v3007 = vmax.f32 %v2945, 0.0
        %v3008 = vmax.f32 %v2950, 0.0
        %v3009 = vmax.f32 %v2955, 0.0
        %v3010 = vmax.f32 %v2960, 0.0
        %v3011 = vmax.f32 %v2965, 0.0
        %v3012 = vmax.f32 %v2970, 0.0
        %v3013 = vmax.f32 %v2975, 0.0
        %v3014 = vmax.f32 %v2980, 0.0
        %v3015 = vmax.f32 %v2985, 0.0
        %v3016 = vmax.f32 %v2990, 0.0
        %v3017 = vmax.f32 %v2995, 0.0
        %v3018 = vmax.f32 %v3000, 0.0
        %v3019 = vld [vmem:[%s378] sm:$0xff]
        %v3020 = vlaneseq
        %v3021 = vshrl.u32 %v3020, 7
        %v3022 = vsub.s32 0, %v3021
        %v3023 = vrot.slane %v3019, %v3022
        %3025 = vbcast.lane.b32.xlu0 %v3023, 256
        %v3026 = vpop.permute.xlu0 %3025
        %s3028 = sor.u32 256, 8
        %3029 = vbcast.lane.b32.xlu0 %v3023, %s3028
        %v3030 = vpop.permute.xlu0 %3029
        %v3031 = vlaneseq
        %v3032 = vshrl.u32 %v3031, 7
        %v3033 = vsub.s32 1, %v3032
        %v3034 = vrot.slane %v3019, %v3033
        %3036 = vbcast.lane.b32.xlu0 %v3034, 256
        %v3037 = vpop.permute.xlu0 %3036
        %s3039 = sor.u32 256, 8
        %3040 = vbcast.lane.b32.xlu0 %v3034, %s3039
        %v3041 = vpop.permute.xlu0 %3040
        %v3042 = vlaneseq
        %v3043 = vshrl.u32 %v3042, 7
        %v3044 = vsub.s32 2, %v3043
        %v3045 = vrot.slane %v3019, %v3044
        %3047 = vbcast.lane.b32.xlu0 %v3045, 256
        %v3048 = vpop.permute.xlu0 %3047
        %s3050 = sor.u32 256, 8
        %3051 = vbcast.lane.b32.xlu0 %v3045, %s3050
        %v3052 = vpop.permute.xlu0 %3051
        %v3053 = vlaneseq
        %v3054 = vshrl.u32 %v3053, 7
        %v3055 = vsub.s32 3, %v3054
        %v3056 = vrot.slane %v3019, %v3055
        %3058 = vbcast.lane.b32.xlu0 %v3056, 256
        %v3059 = vpop.permute.xlu0 %3058
        %s3061 = sor.u32 256, 8
        %3062 = vbcast.lane.b32.xlu0 %v3056, %s3061
        %v3063 = vpop.permute.xlu0 %3062
        %v3064 = vlaneseq
        %v3065 = vshrl.u32 %v3064, 7
        %v3066 = vsub.s32 4, %v3065
        %v3067 = vrot.slane %v3019, %v3066
        %3069 = vbcast.lane.b32.xlu0 %v3067, 256
        %v3070 = vpop.permute.xlu0 %3069
        %s3072 = sor.u32 256, 8
        %3073 = vbcast.lane.b32.xlu0 %v3067, %s3072
        %v3074 = vpop.permute.xlu0 %3073
        %v3075 = vlaneseq
        %v3076 = vshrl.u32 %v3075, 7
        %v3077 = vsub.s32 5, %v3076
        %v3078 = vrot.slane %v3019, %v3077
        %3080 = vbcast.lane.b32.xlu0 %v3078, 256
        %v3081 = vpop.permute.xlu0 %3080
        %s3083 = sor.u32 256, 8
        %3084 = vbcast.lane.b32.xlu0 %v3078, %s3083
        %v3085 = vpop.permute.xlu0 %3084
        %v3086 = vlaneseq
        %v3087 = vshrl.u32 %v3086, 7
        %v3088 = vsub.s32 6, %v3087
        %v3089 = vrot.slane %v3019, %v3088
        %3091 = vbcast.lane.b32.xlu0 %v3089, 256
        %v3092 = vpop.permute.xlu0 %3091
        %s3094 = sor.u32 256, 8
        %3095 = vbcast.lane.b32.xlu0 %v3089, %s3094
        %v3096 = vpop.permute.xlu0 %3095
        %v3097 = vlaneseq
        %v3098 = vshrl.u32 %v3097, 7
        %v3099 = vsub.s32 7, %v3098
        %v3100 = vrot.slane %v3019, %v3099
        %3102 = vbcast.lane.b32.xlu0 %v3100, 256
        %v3103 = vpop.permute.xlu0 %3102
        %s3105 = sor.u32 256, 8
        %3106 = vbcast.lane.b32.xlu0 %v3100, %s3105
        %v3107 = vpop.permute.xlu0 %3106
        %v3108 = vlaneseq
        %v3109 = vand.u32 %v3108, 127
        %vm3110 = vcmp.eq.s32.totalorder %v3109, 127
        %v3111 = vsel %vm3110, %v3026, %v3003
        %v3112 = vsel %vm3110, %v3030, %v3004
        %v3113 = vsel %vm3110, %v3037, %v3005
        %v3114 = vsel %vm3110, %v3041, %v3006
        %v3115 = vsel %vm3110, %v3048, %v3007
        %v3116 = vsel %vm3110, %v3052, %v3008
        %v3117 = vsel %vm3110, %v3059, %v3009
        %v3118 = vsel %vm3110, %v3063, %v3010
        %v3119 = vsel %vm3110, %v3070, %v3011
        %v3120 = vsel %vm3110, %v3074, %v3012
        %v3121 = vsel %vm3110, %v3081, %v3013
        %v3122 = vsel %vm3110, %v3085, %v3014
        %v3123 = vsel %vm3110, %v3092, %v3015
        %v3124 = vsel %vm3110, %v3096, %v3016
        %v3125 = vsel %vm3110, %v3103, %v3017
        %v3126 = vsel %vm3110, %v3107, %v3018
        %3127 = vst [vmem:[%s427] sm:$0xff] %v3111
        %3128 = vst [vmem:[%s427 + $0x8] sm:$0xff] %v3112
        %3129 = vst [vmem:[%s427 + $0x10] sm:$0xff] %v3113
        %3130 = vst [vmem:[%s427 + $0x18] sm:$0xff] %v3114
        %3131 = vst [vmem:[%s427 + $0x20] sm:$0xff] %v3115
        %3132 = vst [vmem:[%s427 + $0x28] sm:$0xff] %v3116
        %3133 = vst [vmem:[%s427 + $0x30] sm:$0xff] %v3117
        %3134 = vst [vmem:[%s427 + $0x38] sm:$0xff] %v3118
        %3135 = vst [vmem:[%s427 + $0x40] sm:$0xff] %v3119
        %3136 = vst [vmem:[%s427 + $0x48] sm:$0xff] %v3120
        %3137 = vst [vmem:[%s427 + $0x50] sm:$0xff] %v3121
        %3138 = vst [vmem:[%s427 + $0x58] sm:$0xff] %v3122
        %3139 = vst [vmem:[%s427 + $0x60] sm:$0xff] %v3123
        %3140 = vst [vmem:[%s427 + $0x68] sm:$0xff] %v3124
        %3141 = vst [vmem:[%s427 + $0x70] sm:$0xff] %v3125
        %3142 = vst [vmem:[%s427 + $0x78] sm:$0xff] %v3126
        %s3143 = sand.u32 %s235, 1
        %s3144 = scalar_lea.sflag [#allocation6], %s3143
        %s3145 = sand.u32 %s235, 1
        %s3146 = smul.addr %s3145, 128
        %s3147 = scalar_lea.vmem [#allocation13], %s3146
        // Predicated region
        $region89: #{tpu_custom_call.1} parent=51 // pred_check
          %p3148 = pneg %p245
        $region90: #{tpu_custom_call.1} parent=51 // pred_check_branch
          %3150 = sbr.rel (%p3148) target = $region92
        $region91: #{tpu_custom_call.1} parent=51 // pred_region
          %s3151 = smul.u32 8, %s34
          %s3153 = ssub.s32 2048, 2048
          %3154 = vsyncadd %s3144, %s3153
          %s3155 = smul.addr %s3151, 2
          %s3156 = smul.addr %s33, 32
          %s3157 = sadd.s32 %s3155, %s3156
          %s3158 = smul.addr %s3157, 128
          %s3159 = scalar_lea.hbm %s8, %s3158
          %s3160 = sshll.u32 %s3147, 4
          %s3161 = int_to_ptr.vmem [resolvable:$true] %s3160
          %3166 = dma.vmem_to_hbm [thread:$0]  %s3161, 2048, %s3159, %s3144, 128, 128, 8
        $region92: #{tpu_custom_call.1} parent=51 // pred_fallthru
          _
      $region52: #{tpu_custom_call.1} parent=5 // pred_fallthru
        _
      %p3167 = scmp.le.s32.totalorder 2, %s24
      // Predicated region
      $region93: #{tpu_custom_call.1} parent=5 // pred_check
        %p3168 = pneg %p3167
      $region94: #{tpu_custom_call.1} parent=5 // pred_check_branch
        %3170 = sbr.rel (%p3168) target = $region96
      $region95: #{tpu_custom_call.1} parent=5 // pred_region
        %s3171 = ssub.s32 %s24, 2
        // Predicated region
        $region97: #{tpu_custom_call.1} parent=95 // pred_check
          %p3172 = pneg %p251
        $region98: #{tpu_custom_call.1} parent=95 // pred_check_branch
          %3174 = sbr.rel (%p3172) target = $region100
        $region99: #{tpu_custom_call.1} parent=95 // pred_region
          %s3175 = sand.u32 %s236, 1
          %s3176 = scalar_lea.sflag [#allocation6], %s3175
          %s3177 = sand.u32 %s236, 1
          %s3178 = smul.addr %s3177, 128
          %s3179 = scalar_lea.vmem [#allocation13], %s3178
          %3180 = dma.done %s3176, 2048
        $region100: #{tpu_custom_call.1} parent=95 // pred_fallthru
          _
      $region96: #{tpu_custom_call.1} parent=5 // pred_fallthru
        _
    $region6: #{tpu_custom_call.1} parent=1 // loop_footer
      %s28 = sadd.s32 1, %s24
    $region7: #{tpu_custom_call.1} parent=1 // loop_footer_branch
      %23 = sbr.rel target = $region3
    $region8: #{tpu_custom_call.1} parent=1 // loop_exit
      _
    %3181 = vsyncpa [#allocation5], 1
    %s3182 = scalar_lea.sflag [#allocation5], 1
    %3183 = vsyncpa %s3182, 1
    %3184 = vsyncpa [#allocation8], 1
    %s3185 = scalar_lea.sflag [#allocation8], 1
    %3186 = vsyncpa %s3185, 1
    %3187 = vsyncpa [#allocation11], 1
    %3188 = vsyncpa [#allocation6], 1
    %s3189 = scalar_lea.sflag [#allocation6], 1
    %3190 = vsyncpa %s3189, 1

</llo_original>
